<compile_context>
chip_gen: v5e
topology: v5e:2x2
jax: 0.10.0
libtpu: 0.0.40
codegen_flags: <defaults>
</compile_context>

<pallas_src>
import functools

import jax
import jax.numpy as jnp
from jax import lax
from jax.experimental import pallas as pl
from jax.experimental.pallas import tpu as pltpu


# ----------------------------------------------------------------------------
# In-kernel compute: one knn_feature(...) + ReLU layer, single batch element
# ----------------------------------------------------------------------------
def _knn_conv_relu(x, w_d, w_c, bias, col_f, *, k, mxu_dtype):
    """x: (C, N) f32 (channel-major). w_d/w_c: (Co, C) mxu_dtype. bias: (Co, 1) f32.
    col_f: (N, N) f32 column-index iota (hoisted, shared). Returns (Co, N) f32."""
    N = x.shape[1]

    # --- k nearest neighbours (ranking kept in f32: matches lax.top_k) ---
    xt = x.T                                                         # (N, C)
    inner = jnp.dot(xt, x, preferred_element_type=jnp.float32)       # (N, N)
    sq = jnp.sum(x * x, axis=0, keepdims=True)                       # (1, N) = ||x_m||^2
    # top-k over m of -||x_n - x_m||^2; the per-row constant -||x_n||^2 is dropped.
    score = 2.0 * inner - sq

    neg = jnp.finfo(jnp.float32).min
    big = jnp.float32(N)

    def select(_, carry):
        sel, sc = carry
        row_max = jnp.max(sc, axis=-1, keepdims=True)
        cand = jnp.where(sc >= row_max, col_f, big)
        amin = jnp.min(cand, axis=-1, keepdims=True)   # lowest column attaining the max
        onehot = col_f == amin
        sel = sel + onehot.astype(jnp.float32)
        sc = jnp.where(onehot, neg, sc)
        return sel, sc

    sel, _ = lax.fori_loop(
        0, k, select, (jnp.zeros((N, N), jnp.float32), score),
        unroll=(True if k <= 8 else 4))   # cap unroll for large k (vreg pressure)

    # --- gather-free neighbour mean + 1x1 conv + bias + ReLU ---
    xm = x.astype(mxu_dtype)
    # nbr_mean[c, n] = (1/k) * sum_m x[c, m] * sel[n, m]
    nbr_mean = lax.dot_general(
        xm, sel.astype(mxu_dtype), (((1,), (1,)), ((), ())),
        preferred_element_type=jnp.float32) * (1.0 / k)              # (C, N)
    out = (
        jnp.dot(w_d, (nbr_mean - x).astype(mxu_dtype),
                preferred_element_type=jnp.float32)
        + jnp.dot(w_c, xm, preferred_element_type=jnp.float32)
        + bias
    )
    return jnp.maximum(out, 0.0)                                     # (Co, N)


# ----------------------------------------------------------------------------
# Fused kernel: layer1 -> layer2 -> residual, for a block of `bb` batch elems
# ----------------------------------------------------------------------------
def _fused_resnet_kernel(x_ref, wd1_ref, wc1_ref, b1_ref,
                         wd2_ref, wc2_ref, b2_ref, o_ref, *, k, bb, mxu_dtype):
    N = x_ref.shape[-1]
    # column-index iota, hoisted out of the per-element / per-layer work
    col_f = lax.broadcasted_iota(jnp.int32, (N, N), 1).astype(jnp.float32)

    wd1 = wd1_ref[...]
    wc1 = wc1_ref[...]
    b1 = b1_ref[...].astype(jnp.float32)
    wd2 = wd2_ref[...]
    wc2 = wc2_ref[...]
    b2 = b2_ref[...].astype(jnp.float32)

    for b in range(bb):                                    # static, bb is small
        x = x_ref[b].astype(jnp.float32)                   # (C, N)
        h = _knn_conv_relu(x, wd1, wc1, b1, col_f, k=k, mxu_dtype=mxu_dtype)
        y = _knn_conv_relu(h, wd2, wc2, b2, col_f, k=k, mxu_dtype=mxu_dtype)
        o_ref[b] = (y + x).astype(o_ref.dtype)             # residual (Co == C)


# ----------------------------------------------------------------------------
# Wrapper
# ----------------------------------------------------------------------------
def _per_element_vmem_bytes(C, N):
    # ~5 live (N, N) f32 temporaries (inner/score, sel, col_f, cand/onehot)
    # plus a handful of (C, N)-sized f32 buffers per batch element.
    return (5 * N * N + 8 * C * N) * 4


def _pick_batch_block(B, C, N):
    """Largest divisor of B fitting the VMEM budget while keeping >= 2 grid
    steps so the batch axis can be sharded across TensorCores (megacore)."""
    budget = 20 * 2 ** 20
    max_bb = max(1, budget // max(_per_element_vmem_bytes(C, N), 1))
    best = 1
    for d in range(1, B + 1):
        if B % d == 0 and d <= max_bb and (B // d >= 2 or B == 1):
            best = d
    return best


def _vmem_limit_bytes(bb, C, N):
    est = 2 * bb * _per_element_vmem_bytes(C, N) + 16 * C * N * 4 + 8 * C * C * 4
    return int(min(max(est, 32 * 2 ** 20), 48 * 2 ** 20))


def conv1d_resnet_block_knnGraph_forward(x, params, *, k,
                                         mxu_dtype=jnp.bfloat16,
                                         batch_block=None):
    """Forward pass of conv1d_resnet_block_knnGraph.

    x      : (B, C, N) in the PyTorch NCW layout (kept end-to-end, no transposes).
    params : w1/w2 of shape (C, 2C) (squeezed Conv2d(2C, C, 1) weights), b1/b2 (C,).
    k      : nb_neighbors.
    mxu_dtype : operand dtype of the selection / 1x1-conv matmuls (accumulation
                is always f32, distance ranking is always f32). bf16 ~doubles
                MXU throughput on v6e/v7x; use jnp.float32 for bit-closer results.
    """
    B, C, N = x.shape
    w1, b1, w2, b2 = params["w1"], params["b1"], params["w2"], params["b2"]
    Co = w1.shape[0]
    if Co != C or w1.shape != (C, 2 * C) or w2.shape != (C, 2 * C):
        raise ValueError("residual block requires in_channel == out_channel and (C, 2C) weights")
    if not 1 <= k <= N:
        raise ValueError(f"need 1 <= k <= N, got k={k}, N={N}")

    f32 = jnp.float32
    wd1 = w1[:, :C].astype(mxu_dtype)   # acts on (nbr_mean - x)
    wc1 = w1[:, C:].astype(mxu_dtype)   # acts on x (the repeated centre point)
    wd2 = w2[:, :C].astype(mxu_dtype)
    wc2 = w2[:, C:].astype(mxu_dtype)
    b1c = b1.astype(f32).reshape(Co, 1)
    b2c = b2.astype(f32).reshape(Co, 1)

    bb = batch_block if batch_block is not None else _pick_batch_block(B, C, N)
    if B % bb != 0:
        raise ValueError(f"batch_block={bb} must divide B={B}")

    kernel = functools.partial(_fused_resnet_kernel, k=k, bb=bb, mxu_dtype=mxu_dtype)
    return pl.pallas_call(
        kernel,
        out_shape=jax.ShapeDtypeStruct((B, C, N), x.dtype),
        grid_spec=pltpu.PrefetchScalarGridSpec(
            num_scalar_prefetch=0,
            grid=(B // bb,),
            in_specs=[
                pl.BlockSpec((bb, C, N), lambda i: (i, 0, 0)),   # x (NCW block)
                pl.BlockSpec((Co, C), lambda i: (0, 0)),          # W_d layer 1
                pl.BlockSpec((Co, C), lambda i: (0, 0)),          # W_c layer 1
                pl.BlockSpec((Co, 1), lambda i: (0, 0)),          # bias layer 1
                pl.BlockSpec((Co, C), lambda i: (0, 0)),          # W_d layer 2
                pl.BlockSpec((Co, C), lambda i: (0, 0)),          # W_c layer 2
                pl.BlockSpec((Co, 1), lambda i: (0, 0)),          # bias layer 2
            ],
            out_specs=pl.BlockSpec((bb, C, N), lambda i: (i, 0, 0)),
        ),
        compiler_params=pltpu.CompilerParams(
            dimension_semantics=("parallel",),
            vmem_limit_bytes=_vmem_limit_bytes(bb, C, N),
        ),
    )(x, wd1, wc1, b1c, wd2, wc2, b2c)


# ----------------------------------------------------------------------------
# Pure-JAX reference (mirrors the PyTorch code, gather-based) for validation
# ----------------------------------------------------------------------------
def _reference_layer(x_bcn, w, b, k):
    B, C, N = x_bcn.shape
    xt = jnp.transpose(x_bcn, (0, 2, 1))                 # (B, N, C)
    sq = jnp.sum(x_bcn ** 2, axis=1)                     # (B, N)
    inner = jnp.einsum("bnc,bmc->bnm", xt, xt)           # (B, N, N)
    pdist = 2.0 * inner - sq[:, :, None] - sq[:, None, :]
    _, idx = lax.top_k(pdist, k)                         # (B, N, k)
    feature = jax.vmap(lambda xi, ii: xi[ii])(xt, idx)   # (B, N, k, C)
    nbr_mean = jnp.mean(feature, axis=2)                 # (B, N, C)
    w_d, w_c = w[:, :C], w[:, C:]
    out = (jnp.einsum("bnc,oc->bno", nbr_mean - xt, w_d)
           + jnp.einsum("bnc,oc->bno", xt, w_c) + b)
    out = jnp.maximum(out, 0.0)
    return jnp.transpose(out, (0, 2, 1))                 # (B, Co, N)


def _reference_forward(x_bcn, params, *, k):
    h = _reference_layer(x_bcn, params["w1"], params["b1"], k)
    o = _reference_layer(h, params["w2"], params["b2"], k)
    return o + x_bcn


# ----------------------------------------------------------------------------
if __name__ == "__main__":
    B, C, N, K = 2, 32, 128, 8    # in_channel == out_channel (required for the residual)
    key = jax.random.PRNGKey(0)
    kx, kw1, kb1, kw2, kb2 = jax.random.split(key, 5)

    # Quantize inputs to multiples of 1/8: pairwise-distance arithmetic is then
    # exact, so the kernel's iterative top-k provably selects the same neighbour
    # set as the reference's lax.top_k (no near-tie ambiguity between impls).
    x = jnp.round(jax.random.normal(kx, (B, C, N), jnp.float32) * 8.0) / 8.0

    lim = float(1.0 / (2.0 * C) ** 0.5)     # Conv2d(2C, C, 1) kaiming-uniform-like bound
    params = {
        "w1": jax.random.uniform(kw1, (C, 2 * C), jnp.float32, -lim, lim),
        "b1": jax.random.uniform(kb1, (C,), jnp.float32, -lim, lim),
        "w2": jax.random.uniform(kw2, (C, 2 * C), jnp.float32, -lim, lim),
        "b2": jax.random.uniform(kb2, (C,), jnp.float32, -lim, lim),
    }

    ref = _reference_forward(x, params, k=K)

    # 1) f32 MXU path: tight check against the PyTorch-mirror reference. A tiny
    #    fraction of mismatched columns is tolerated: an accumulation-order
    #    difference in the layer-1 output can flip an exactly-near-tied layer-2
    #    neighbour ranking for isolated queries.
    out_f32 = jax.block_until_ready(
        conv1d_resnet_block_knnGraph_forward(x, params, k=K, mxu_dtype=jnp.float32))
    assert out_f32.shape == (B, C, N)
    abs_err = jnp.abs(out_f32 - ref)
    tol = 2e-3 + 2e-3 * jnp.abs(ref)
    frac_bad = float(jnp.mean((abs_err > tol).astype(jnp.float32)))
    mean_err = float(jnp.mean(abs_err))
    if not (frac_bad <= 0.02 and mean_err < 1e-3):
        raise AssertionError(
            f"f32 path mismatch vs reference: frac_bad={frac_bad:.4f} "
            f"mean_err={mean_err:.3e} max_err={float(jnp.max(abs_err)):.3e}")

    # 2) multi-element batch block (batch_block=2) path must agree with batch_block=1.
    x4 = jnp.concatenate([x, x], axis=0)
    out_bb2 = jax.block_until_ready(
        conv1d_resnet_block_knnGraph_forward(
            x4, params, k=K, mxu_dtype=jnp.float32, batch_block=2))
    if not bool(jnp.allclose(out_bb2, jnp.concatenate([out_f32, out_f32], axis=0),
                             atol=1e-5, rtol=1e-5)):
        raise AssertionError("batch_block=2 path disagrees with batch_block=1 path")

    # 3) default fast path (bf16 MXU operands, f32 accumulation): loose sanity
    #    check only — bf16 rounding of the layer-1 output can legitimately flip
    #    near-tied layer-2 neighbour rankings relative to the f32 reference.
    out_fast = jax.block_until_ready(
        conv1d_resnet_block_knnGraph_forward(x, params, k=K))
    fast_err = float(jnp.mean(jnp.abs(out_fast - ref)))
    if not (bool(jnp.all(jnp.isfinite(out_fast))) and fast_err < 0.15):
        raise AssertionError(f"bf16 fast path sanity check failed: mean abs err = {fast_err}")

    print("KERNEL_OK")
</pallas_src>

<mosaic_0001>
module attributes {stable_mosaic.version = 11 : i64} {
  func.func @_fused_resnet_kernel(%arg0: i32, %arg1: memref<1x32x128xf32, #tpu.memory_space<vmem>>, %arg2: memref<32x32xf32, #tpu.memory_space<vmem>>, %arg3: memref<32x32xf32, #tpu.memory_space<vmem>>, %arg4: memref<32x1xf32, #tpu.memory_space<vmem>>, %arg5: memref<32x32xf32, #tpu.memory_space<vmem>>, %arg6: memref<32x32xf32, #tpu.memory_space<vmem>>, %arg7: memref<32x1xf32, #tpu.memory_space<vmem>>, %arg8: memref<1x32x128xf32, #tpu.memory_space<vmem>>) attributes {dimension_semantics = [#tpu.dimension_semantics<parallel>], iteration_bounds = array<i64: 2>, scalar_prefetch = 0 : i64, scratch_operands = 0 : i64, tpu.core_type = #tpu.core_type<tc>, window_params = [{transform_indices = @transform_0, window_bounds = array<i64: 1, 32, 128>}, {pipeline_mode = #tpu.pipeline_mode<synchronous>, transform_indices = @transform_1, window_bounds = array<i64: 32, 32>}, {pipeline_mode = #tpu.pipeline_mode<synchronous>, transform_indices = @transform_2, window_bounds = array<i64: 32, 32>}, {pipeline_mode = #tpu.pipeline_mode<synchronous>, transform_indices = @transform_3, window_bounds = array<i64: 32, 1>}, {pipeline_mode = #tpu.pipeline_mode<synchronous>, transform_indices = @transform_4, window_bounds = array<i64: 32, 32>}, {pipeline_mode = #tpu.pipeline_mode<synchronous>, transform_indices = @transform_5, window_bounds = array<i64: 32, 32>}, {pipeline_mode = #tpu.pipeline_mode<synchronous>, transform_indices = @transform_6, window_bounds = array<i64: 32, 1>}, {transform_indices = @transform_7, window_bounds = array<i64: 1, 32, 128>}]} {
    %0 = tpu.iota {dimensions = array<i32: 1>} : vector<128x128xi32>
    %1 = arith.sitofp %0 : vector<128x128xi32> to vector<128x128xf32>
    %c0 = arith.constant 0 : index
    %c0_0 = arith.constant 0 : index
    %2 = vector.load %arg2[%c0, %c0_0] : memref<32x32xf32, #tpu.memory_space<vmem>>, vector<32x32xf32>
    %c0_1 = arith.constant 0 : index
    %c0_2 = arith.constant 0 : index
    %3 = vector.load %arg3[%c0_1, %c0_2] : memref<32x32xf32, #tpu.memory_space<vmem>>, vector<32x32xf32>
    %c0_3 = arith.constant 0 : index
    %c0_4 = arith.constant 0 : index
    %4 = vector.load %arg4[%c0_3, %c0_4] : memref<32x1xf32, #tpu.memory_space<vmem>>, vector<32x1xf32>
    %c0_5 = arith.constant 0 : index
    %c0_6 = arith.constant 0 : index
    %5 = vector.load %arg5[%c0_5, %c0_6] : memref<32x32xf32, #tpu.memory_space<vmem>>, vector<32x32xf32>
    %c0_7 = arith.constant 0 : index
    %c0_8 = arith.constant 0 : index
    %6 = vector.load %arg6[%c0_7, %c0_8] : memref<32x32xf32, #tpu.memory_space<vmem>>, vector<32x32xf32>
    %c0_9 = arith.constant 0 : index
    %c0_10 = arith.constant 0 : index
    %7 = vector.load %arg7[%c0_9, %c0_10] : memref<32x1xf32, #tpu.memory_space<vmem>>, vector<32x1xf32>
    %c0_11 = arith.constant 0 : index
    %c0_12 = arith.constant 0 : index
    %c0_13 = arith.constant 0 : index
    %8 = vector.load %arg1[%c0_11, %c0_12, %c0_13] : memref<1x32x128xf32, #tpu.memory_space<vmem>>, vector<1x32x128xf32>
    %9 = vector.shape_cast %8 : vector<1x32x128xf32> to vector<32x128xf32>
    %10 = tpu.transpose %9, [1, 0] : vector<32x128xf32> -> vector<128x32xf32>
    %cst = arith.constant dense<0.000000e+00> : vector<128x128xf32>
    %11 = tpu.matmul %10, %9, %cst {dimension_numbers = #tpu.dot_dimension_numbers<[1], [0], [0], [1], [0, 0, 1, 1], [], []>} : vector<128x32xf32>, vector<32x128xf32>, vector<128x128xf32> -> vector<128x128xf32>
    %12 = arith.mulf %9, %9 : vector<32x128xf32>
    %cst_14 = arith.constant dense<0.000000e+00> : vector<128xf32>
    %13 = vector.multi_reduction <add>, %12, %cst_14 [0] : vector<32x128xf32> to vector<128xf32>
    %14 = vector.shape_cast %13 : vector<128xf32> to vector<1x128xf32>
    %cst_15 = arith.constant 2.000000e+00 : f32
    %15 = vector.broadcast %cst_15 : f32 to vector<128x128xf32>
    %16 = arith.mulf %15, %11 : vector<128x128xf32>
    %17 = vector.broadcast %14 : vector<1x128xf32> to vector<128x128xf32>
    %18 = arith.subf %16, %17 : vector<128x128xf32>
    %cst_16 = arith.constant 0.000000e+00 : f32
    %19 = vector.broadcast %cst_16 : f32 to vector<128x128xf32>
    %cst_17 = arith.constant 1.280000e+02 : f32
    %c0_i32 = arith.constant 0 : i32
    %cst_18 = arith.constant dense<0xFF800000> : vector<128xf32>
    %20 = vector.multi_reduction <maximumf>, %18, %cst_18 [1] : vector<128x128xf32> to vector<128xf32>
    %21 = vector.shape_cast %20 : vector<128xf32> to vector<128x1xf32>
    %22 = vector.broadcast %21 : vector<128x1xf32> to vector<128x128xf32>
    %23 = arith.cmpf oge, %18, %22 : vector<128x128xf32>
    %24 = vector.broadcast %cst_17 : f32 to vector<128x128xf32>
    %25 = arith.select %23, %1, %24 : vector<128x128xi1>, vector<128x128xf32>
    %cst_19 = arith.constant dense<0x7F800000> : vector<128xf32>
    %26 = vector.multi_reduction <minimumf>, %25, %cst_19 [1] : vector<128x128xf32> to vector<128xf32>
    %27 = vector.shape_cast %26 : vector<128xf32> to vector<128x1xf32>
    %28 = vector.broadcast %27 : vector<128x1xf32> to vector<128x128xf32>
    %29 = arith.cmpf oeq, %1, %28 : vector<128x128xf32>
    %30 = arith.extui %29 : vector<128x128xi1> to vector<128x128xi32>
    %31 = arith.sitofp %30 : vector<128x128xi32> to vector<128x128xf32>
    %32 = arith.addf %19, %31 : vector<128x128xf32>
    %cst_20 = arith.constant -3.40282347E+38 : f32
    %33 = vector.broadcast %cst_20 : f32 to vector<128x128xf32>
    %34 = arith.select %29, %33, %18 : vector<128x128xi1>, vector<128x128xf32>
    %c1_i32 = arith.constant 1 : i32
    %cst_21 = arith.constant dense<0xFF800000> : vector<128xf32>
    %35 = vector.multi_reduction <maximumf>, %34, %cst_21 [1] : vector<128x128xf32> to vector<128xf32>
    %36 = vector.shape_cast %35 : vector<128xf32> to vector<128x1xf32>
    %37 = vector.broadcast %36 : vector<128x1xf32> to vector<128x128xf32>
    %38 = arith.cmpf oge, %34, %37 : vector<128x128xf32>
    %39 = vector.broadcast %cst_17 : f32 to vector<128x128xf32>
    %40 = arith.select %38, %1, %39 : vector<128x128xi1>, vector<128x128xf32>
    %cst_22 = arith.constant dense<0x7F800000> : vector<128xf32>
    %41 = vector.multi_reduction <minimumf>, %40, %cst_22 [1] : vector<128x128xf32> to vector<128xf32>
    %42 = vector.shape_cast %41 : vector<128xf32> to vector<128x1xf32>
    %43 = vector.broadcast %42 : vector<128x1xf32> to vector<128x128xf32>
    %44 = arith.cmpf oeq, %1, %43 : vector<128x128xf32>
    %45 = arith.extui %44 : vector<128x128xi1> to vector<128x128xi32>
    %46 = arith.sitofp %45 : vector<128x128xi32> to vector<128x128xf32>
    %47 = arith.addf %32, %46 : vector<128x128xf32>
    %cst_23 = arith.constant -3.40282347E+38 : f32
    %48 = vector.broadcast %cst_23 : f32 to vector<128x128xf32>
    %49 = arith.select %44, %48, %34 : vector<128x128xi1>, vector<128x128xf32>
    %c2_i32 = arith.constant 2 : i32
    %cst_24 = arith.constant dense<0xFF800000> : vector<128xf32>
    %50 = vector.multi_reduction <maximumf>, %49, %cst_24 [1] : vector<128x128xf32> to vector<128xf32>
    %51 = vector.shape_cast %50 : vector<128xf32> to vector<128x1xf32>
    %52 = vector.broadcast %51 : vector<128x1xf32> to vector<128x128xf32>
    %53 = arith.cmpf oge, %49, %52 : vector<128x128xf32>
    %54 = vector.broadcast %cst_17 : f32 to vector<128x128xf32>
    %55 = arith.select %53, %1, %54 : vector<128x128xi1>, vector<128x128xf32>
    %cst_25 = arith.constant dense<0x7F800000> : vector<128xf32>
    %56 = vector.multi_reduction <minimumf>, %55, %cst_25 [1] : vector<128x128xf32> to vector<128xf32>
    %57 = vector.shape_cast %56 : vector<128xf32> to vector<128x1xf32>
    %58 = vector.broadcast %57 : vector<128x1xf32> to vector<128x128xf32>
    %59 = arith.cmpf oeq, %1, %58 : vector<128x128xf32>
    %60 = arith.extui %59 : vector<128x128xi1> to vector<128x128xi32>
    %61 = arith.sitofp %60 : vector<128x128xi32> to vector<128x128xf32>
    %62 = arith.addf %47, %61 : vector<128x128xf32>
    %cst_26 = arith.constant -3.40282347E+38 : f32
    %63 = vector.broadcast %cst_26 : f32 to vector<128x128xf32>
    %64 = arith.select %59, %63, %49 : vector<128x128xi1>, vector<128x128xf32>
    %c3_i32 = arith.constant 3 : i32
    %cst_27 = arith.constant dense<0xFF800000> : vector<128xf32>
    %65 = vector.multi_reduction <maximumf>, %64, %cst_27 [1] : vector<128x128xf32> to vector<128xf32>
    %66 = vector.shape_cast %65 : vector<128xf32> to vector<128x1xf32>
    %67 = vector.broadcast %66 : vector<128x1xf32> to vector<128x128xf32>
    %68 = arith.cmpf oge, %64, %67 : vector<128x128xf32>
    %69 = vector.broadcast %cst_17 : f32 to vector<128x128xf32>
    %70 = arith.select %68, %1, %69 : vector<128x128xi1>, vector<128x128xf32>
    %cst_28 = arith.constant dense<0x7F800000> : vector<128xf32>
    %71 = vector.multi_reduction <minimumf>, %70, %cst_28 [1] : vector<128x128xf32> to vector<128xf32>
    %72 = vector.shape_cast %71 : vector<128xf32> to vector<128x1xf32>
    %73 = vector.broadcast %72 : vector<128x1xf32> to vector<128x128xf32>
    %74 = arith.cmpf oeq, %1, %73 : vector<128x128xf32>
    %75 = arith.extui %74 : vector<128x128xi1> to vector<128x128xi32>
    %76 = arith.sitofp %75 : vector<128x128xi32> to vector<128x128xf32>
    %77 = arith.addf %62, %76 : vector<128x128xf32>
    %cst_29 = arith.constant -3.40282347E+38 : f32
    %78 = vector.broadcast %cst_29 : f32 to vector<128x128xf32>
    %79 = arith.select %74, %78, %64 : vector<128x128xi1>, vector<128x128xf32>
    %c4_i32 = arith.constant 4 : i32
    %cst_30 = arith.constant dense<0xFF800000> : vector<128xf32>
    %80 = vector.multi_reduction <maximumf>, %79, %cst_30 [1] : vector<128x128xf32> to vector<128xf32>
    %81 = vector.shape_cast %80 : vector<128xf32> to vector<128x1xf32>
    %82 = vector.broadcast %81 : vector<128x1xf32> to vector<128x128xf32>
    %83 = arith.cmpf oge, %79, %82 : vector<128x128xf32>
    %84 = vector.broadcast %cst_17 : f32 to vector<128x128xf32>
    %85 = arith.select %83, %1, %84 : vector<128x128xi1>, vector<128x128xf32>
    %cst_31 = arith.constant dense<0x7F800000> : vector<128xf32>
    %86 = vector.multi_reduction <minimumf>, %85, %cst_31 [1] : vector<128x128xf32> to vector<128xf32>
    %87 = vector.shape_cast %86 : vector<128xf32> to vector<128x1xf32>
    %88 = vector.broadcast %87 : vector<128x1xf32> to vector<128x128xf32>
    %89 = arith.cmpf oeq, %1, %88 : vector<128x128xf32>
    %90 = arith.extui %89 : vector<128x128xi1> to vector<128x128xi32>
    %91 = arith.sitofp %90 : vector<128x128xi32> to vector<128x128xf32>
    %92 = arith.addf %77, %91 : vector<128x128xf32>
    %cst_32 = arith.constant -3.40282347E+38 : f32
    %93 = vector.broadcast %cst_32 : f32 to vector<128x128xf32>
    %94 = arith.select %89, %93, %79 : vector<128x128xi1>, vector<128x128xf32>
    %c5_i32 = arith.constant 5 : i32
    %cst_33 = arith.constant dense<0xFF800000> : vector<128xf32>
    %95 = vector.multi_reduction <maximumf>, %94, %cst_33 [1] : vector<128x128xf32> to vector<128xf32>
    %96 = vector.shape_cast %95 : vector<128xf32> to vector<128x1xf32>
    %97 = vector.broadcast %96 : vector<128x1xf32> to vector<128x128xf32>
    %98 = arith.cmpf oge, %94, %97 : vector<128x128xf32>
    %99 = vector.broadcast %cst_17 : f32 to vector<128x128xf32>
    %100 = arith.select %98, %1, %99 : vector<128x128xi1>, vector<128x128xf32>
    %cst_34 = arith.constant dense<0x7F800000> : vector<128xf32>
    %101 = vector.multi_reduction <minimumf>, %100, %cst_34 [1] : vector<128x128xf32> to vector<128xf32>
    %102 = vector.shape_cast %101 : vector<128xf32> to vector<128x1xf32>
    %103 = vector.broadcast %102 : vector<128x1xf32> to vector<128x128xf32>
    %104 = arith.cmpf oeq, %1, %103 : vector<128x128xf32>
    %105 = arith.extui %104 : vector<128x128xi1> to vector<128x128xi32>
    %106 = arith.sitofp %105 : vector<128x128xi32> to vector<128x128xf32>
    %107 = arith.addf %92, %106 : vector<128x128xf32>
    %cst_35 = arith.constant -3.40282347E+38 : f32
    %108 = vector.broadcast %cst_35 : f32 to vector<128x128xf32>
    %109 = arith.select %104, %108, %94 : vector<128x128xi1>, vector<128x128xf32>
    %c6_i32 = arith.constant 6 : i32
    %cst_36 = arith.constant dense<0xFF800000> : vector<128xf32>
    %110 = vector.multi_reduction <maximumf>, %109, %cst_36 [1] : vector<128x128xf32> to vector<128xf32>
    %111 = vector.shape_cast %110 : vector<128xf32> to vector<128x1xf32>
    %112 = vector.broadcast %111 : vector<128x1xf32> to vector<128x128xf32>
    %113 = arith.cmpf oge, %109, %112 : vector<128x128xf32>
    %114 = vector.broadcast %cst_17 : f32 to vector<128x128xf32>
    %115 = arith.select %113, %1, %114 : vector<128x128xi1>, vector<128x128xf32>
    %cst_37 = arith.constant dense<0x7F800000> : vector<128xf32>
    %116 = vector.multi_reduction <minimumf>, %115, %cst_37 [1] : vector<128x128xf32> to vector<128xf32>
    %117 = vector.shape_cast %116 : vector<128xf32> to vector<128x1xf32>
    %118 = vector.broadcast %117 : vector<128x1xf32> to vector<128x128xf32>
    %119 = arith.cmpf oeq, %1, %118 : vector<128x128xf32>
    %120 = arith.extui %119 : vector<128x128xi1> to vector<128x128xi32>
    %121 = arith.sitofp %120 : vector<128x128xi32> to vector<128x128xf32>
    %122 = arith.addf %107, %121 : vector<128x128xf32>
    %cst_38 = arith.constant -3.40282347E+38 : f32
    %123 = vector.broadcast %cst_38 : f32 to vector<128x128xf32>
    %124 = arith.select %119, %123, %109 : vector<128x128xi1>, vector<128x128xf32>
    %c7_i32 = arith.constant 7 : i32
    %cst_39 = arith.constant dense<0xFF800000> : vector<128xf32>
    %125 = vector.multi_reduction <maximumf>, %124, %cst_39 [1] : vector<128x128xf32> to vector<128xf32>
    %126 = vector.shape_cast %125 : vector<128xf32> to vector<128x1xf32>
    %127 = vector.broadcast %126 : vector<128x1xf32> to vector<128x128xf32>
    %128 = arith.cmpf oge, %124, %127 : vector<128x128xf32>
    %129 = vector.broadcast %cst_17 : f32 to vector<128x128xf32>
    %130 = arith.select %128, %1, %129 : vector<128x128xi1>, vector<128x128xf32>
    %cst_40 = arith.constant dense<0x7F800000> : vector<128xf32>
    %131 = vector.multi_reduction <minimumf>, %130, %cst_40 [1] : vector<128x128xf32> to vector<128xf32>
    %132 = vector.shape_cast %131 : vector<128xf32> to vector<128x1xf32>
    %133 = vector.broadcast %132 : vector<128x1xf32> to vector<128x128xf32>
    %134 = arith.cmpf oeq, %1, %133 : vector<128x128xf32>
    %135 = arith.extui %134 : vector<128x128xi1> to vector<128x128xi32>
    %136 = arith.sitofp %135 : vector<128x128xi32> to vector<128x128xf32>
    %137 = arith.addf %122, %136 : vector<128x128xf32>
    %cst_41 = arith.constant -3.40282347E+38 : f32
    %138 = vector.broadcast %cst_41 : f32 to vector<128x128xf32>
    %139 = arith.select %134, %138, %124 : vector<128x128xi1>, vector<128x128xf32>
    %cst_42 = arith.constant dense<0.000000e+00> : vector<32x128xf32>
    %140 = tpu.matmul %9, %137, %cst_42 {dimension_numbers = #tpu.dot_dimension_numbers<[1], [1], [0], [0], [0, 0, 1, 0], [], []>} : vector<32x128xf32>, vector<128x128xf32>, vector<32x128xf32> -> vector<32x128xf32>
    %cst_43 = arith.constant 1.250000e-01 : f32
    %141 = vector.broadcast %cst_43 : f32 to vector<32x128xf32>
    %142 = arith.mulf %140, %141 : vector<32x128xf32>
    %143 = arith.subf %142, %9 : vector<32x128xf32>
    %cst_44 = arith.constant dense<0.000000e+00> : vector<32x128xf32>
    %144 = tpu.matmul %2, %143, %cst_44 {dimension_numbers = #tpu.dot_dimension_numbers<[1], [0], [0], [1], [0, 0, 1, 1], [], []>} : vector<32x32xf32>, vector<32x128xf32>, vector<32x128xf32> -> vector<32x128xf32>
    %cst_45 = arith.constant dense<0.000000e+00> : vector<32x128xf32>
    %145 = tpu.matmul %3, %9, %cst_45 {dimension_numbers = #tpu.dot_dimension_numbers<[1], [0], [0], [1], [0, 0, 1, 1], [], []>} : vector<32x32xf32>, vector<32x128xf32>, vector<32x128xf32> -> vector<32x128xf32>
    %146 = arith.addf %144, %145 : vector<32x128xf32>
    %147 = vector.broadcast %4 : vector<32x1xf32> to vector<32x128xf32>
    %148 = arith.addf %146, %147 : vector<32x128xf32>
    %cst_46 = arith.constant 0.000000e+00 : f32
    %149 = vector.broadcast %cst_46 : f32 to vector<32x128xf32>
    %150 = arith.maximumf %148, %149 : vector<32x128xf32>
    %151 = tpu.transpose %150, [1, 0] : vector<32x128xf32> -> vector<128x32xf32>
    %cst_47 = arith.constant dense<0.000000e+00> : vector<128x128xf32>
    %152 = tpu.matmul %151, %150, %cst_47 {dimension_numbers = #tpu.dot_dimension_numbers<[1], [0], [0], [1], [0, 0, 1, 1], [], []>} : vector<128x32xf32>, vector<32x128xf32>, vector<128x128xf32> -> vector<128x128xf32>
    %153 = arith.mulf %150, %150 : vector<32x128xf32>
    %cst_48 = arith.constant dense<0.000000e+00> : vector<128xf32>
    %154 = vector.multi_reduction <add>, %153, %cst_48 [0] : vector<32x128xf32> to vector<128xf32>
    %155 = vector.shape_cast %154 : vector<128xf32> to vector<1x128xf32>
    %cst_49 = arith.constant 2.000000e+00 : f32
    %156 = vector.broadcast %cst_49 : f32 to vector<128x128xf32>
    %157 = arith.mulf %156, %152 : vector<128x128xf32>
    %158 = vector.broadcast %155 : vector<1x128xf32> to vector<128x128xf32>
    %159 = arith.subf %157, %158 : vector<128x128xf32>
    %cst_50 = arith.constant 0.000000e+00 : f32
    %160 = vector.broadcast %cst_50 : f32 to vector<128x128xf32>
    %cst_51 = arith.constant 1.280000e+02 : f32
    %c0_i32_52 = arith.constant 0 : i32
    %cst_53 = arith.constant dense<0xFF800000> : vector<128xf32>
    %161 = vector.multi_reduction <maximumf>, %159, %cst_53 [1] : vector<128x128xf32> to vector<128xf32>
    %162 = vector.shape_cast %161 : vector<128xf32> to vector<128x1xf32>
    %163 = vector.broadcast %162 : vector<128x1xf32> to vector<128x128xf32>
    %164 = arith.cmpf oge, %159, %163 : vector<128x128xf32>
    %165 = vector.broadcast %cst_51 : f32 to vector<128x128xf32>
    %166 = arith.select %164, %1, %165 : vector<128x128xi1>, vector<128x128xf32>
    %cst_54 = arith.constant dense<0x7F800000> : vector<128xf32>
    %167 = vector.multi_reduction <minimumf>, %166, %cst_54 [1] : vector<128x128xf32> to vector<128xf32>
    %168 = vector.shape_cast %167 : vector<128xf32> to vector<128x1xf32>
    %169 = vector.broadcast %168 : vector<128x1xf32> to vector<128x128xf32>
    %170 = arith.cmpf oeq, %1, %169 : vector<128x128xf32>
    %171 = arith.extui %170 : vector<128x128xi1> to vector<128x128xi32>
    %172 = arith.sitofp %171 : vector<128x128xi32> to vector<128x128xf32>
    %173 = arith.addf %160, %172 : vector<128x128xf32>
    %cst_55 = arith.constant -3.40282347E+38 : f32
    %174 = vector.broadcast %cst_55 : f32 to vector<128x128xf32>
    %175 = arith.select %170, %174, %159 : vector<128x128xi1>, vector<128x128xf32>
    %c1_i32_56 = arith.constant 1 : i32
    %cst_57 = arith.constant dense<0xFF800000> : vector<128xf32>
    %176 = vector.multi_reduction <maximumf>, %175, %cst_57 [1] : vector<128x128xf32> to vector<128xf32>
    %177 = vector.shape_cast %176 : vector<128xf32> to vector<128x1xf32>
    %178 = vector.broadcast %177 : vector<128x1xf32> to vector<128x128xf32>
    %179 = arith.cmpf oge, %175, %178 : vector<128x128xf32>
    %180 = vector.broadcast %cst_51 : f32 to vector<128x128xf32>
    %181 = arith.select %179, %1, %180 : vector<128x128xi1>, vector<128x128xf32>
    %cst_58 = arith.constant dense<0x7F800000> : vector<128xf32>
    %182 = vector.multi_reduction <minimumf>, %181, %cst_58 [1] : vector<128x128xf32> to vector<128xf32>
    %183 = vector.shape_cast %182 : vector<128xf32> to vector<128x1xf32>
    %184 = vector.broadcast %183 : vector<128x1xf32> to vector<128x128xf32>
    %185 = arith.cmpf oeq, %1, %184 : vector<128x128xf32>
    %186 = arith.extui %185 : vector<128x128xi1> to vector<128x128xi32>
    %187 = arith.sitofp %186 : vector<128x128xi32> to vector<128x128xf32>
    %188 = arith.addf %173, %187 : vector<128x128xf32>
    %cst_59 = arith.constant -3.40282347E+38 : f32
    %189 = vector.broadcast %cst_59 : f32 to vector<128x128xf32>
    %190 = arith.select %185, %189, %175 : vector<128x128xi1>, vector<128x128xf32>
    %c2_i32_60 = arith.constant 2 : i32
    %cst_61 = arith.constant dense<0xFF800000> : vector<128xf32>
    %191 = vector.multi_reduction <maximumf>, %190, %cst_61 [1] : vector<128x128xf32> to vector<128xf32>
    %192 = vector.shape_cast %191 : vector<128xf32> to vector<128x1xf32>
    %193 = vector.broadcast %192 : vector<128x1xf32> to vector<128x128xf32>
    %194 = arith.cmpf oge, %190, %193 : vector<128x128xf32>
    %195 = vector.broadcast %cst_51 : f32 to vector<128x128xf32>
    %196 = arith.select %194, %1, %195 : vector<128x128xi1>, vector<128x128xf32>
    %cst_62 = arith.constant dense<0x7F800000> : vector<128xf32>
    %197 = vector.multi_reduction <minimumf>, %196, %cst_62 [1] : vector<128x128xf32> to vector<128xf32>
    %198 = vector.shape_cast %197 : vector<128xf32> to vector<128x1xf32>
    %199 = vector.broadcast %198 : vector<128x1xf32> to vector<128x128xf32>
    %200 = arith.cmpf oeq, %1, %199 : vector<128x128xf32>
    %201 = arith.extui %200 : vector<128x128xi1> to vector<128x128xi32>
    %202 = arith.sitofp %201 : vector<128x128xi32> to vector<128x128xf32>
    %203 = arith.addf %188, %202 : vector<128x128xf32>
    %cst_63 = arith.constant -3.40282347E+38 : f32
    %204 = vector.broadcast %cst_63 : f32 to vector<128x128xf32>
    %205 = arith.select %200, %204, %190 : vector<128x128xi1>, vector<128x128xf32>
    %c3_i32_64 = arith.constant 3 : i32
    %cst_65 = arith.constant dense<0xFF800000> : vector<128xf32>
    %206 = vector.multi_reduction <maximumf>, %205, %cst_65 [1] : vector<128x128xf32> to vector<128xf32>
    %207 = vector.shape_cast %206 : vector<128xf32> to vector<128x1xf32>
    %208 = vector.broadcast %207 : vector<128x1xf32> to vector<128x128xf32>
    %209 = arith.cmpf oge, %205, %208 : vector<128x128xf32>
    %210 = vector.broadcast %cst_51 : f32 to vector<128x128xf32>
    %211 = arith.select %209, %1, %210 : vector<128x128xi1>, vector<128x128xf32>
    %cst_66 = arith.constant dense<0x7F800000> : vector<128xf32>
    %212 = vector.multi_reduction <minimumf>, %211, %cst_66 [1] : vector<128x128xf32> to vector<128xf32>
    %213 = vector.shape_cast %212 : vector<128xf32> to vector<128x1xf32>
    %214 = vector.broadcast %213 : vector<128x1xf32> to vector<128x128xf32>
    %215 = arith.cmpf oeq, %1, %214 : vector<128x128xf32>
    %216 = arith.extui %215 : vector<128x128xi1> to vector<128x128xi32>
    %217 = arith.sitofp %216 : vector<128x128xi32> to vector<128x128xf32>
    %218 = arith.addf %203, %217 : vector<128x128xf32>
    %cst_67 = arith.constant -3.40282347E+38 : f32
    %219 = vector.broadcast %cst_67 : f32 to vector<128x128xf32>
    %220 = arith.select %215, %219, %205 : vector<128x128xi1>, vector<128x128xf32>
    %c4_i32_68 = arith.constant 4 : i32
    %cst_69 = arith.constant dense<0xFF800000> : vector<128xf32>
    %221 = vector.multi_reduction <maximumf>, %220, %cst_69 [1] : vector<128x128xf32> to vector<128xf32>
    %222 = vector.shape_cast %221 : vector<128xf32> to vector<128x1xf32>
    %223 = vector.broadcast %222 : vector<128x1xf32> to vector<128x128xf32>
    %224 = arith.cmpf oge, %220, %223 : vector<128x128xf32>
    %225 = vector.broadcast %cst_51 : f32 to vector<128x128xf32>
    %226 = arith.select %224, %1, %225 : vector<128x128xi1>, vector<128x128xf32>
    %cst_70 = arith.constant dense<0x7F800000> : vector<128xf32>
    %227 = vector.multi_reduction <minimumf>, %226, %cst_70 [1] : vector<128x128xf32> to vector<128xf32>
    %228 = vector.shape_cast %227 : vector<128xf32> to vector<128x1xf32>
    %229 = vector.broadcast %228 : vector<128x1xf32> to vector<128x128xf32>
    %230 = arith.cmpf oeq, %1, %229 : vector<128x128xf32>
    %231 = arith.extui %230 : vector<128x128xi1> to vector<128x128xi32>
    %232 = arith.sitofp %231 : vector<128x128xi32> to vector<128x128xf32>
    %233 = arith.addf %218, %232 : vector<128x128xf32>
    %cst_71 = arith.constant -3.40282347E+38 : f32
    %234 = vector.broadcast %cst_71 : f32 to vector<128x128xf32>
    %235 = arith.select %230, %234, %220 : vector<128x128xi1>, vector<128x128xf32>
    %c5_i32_72 = arith.constant 5 : i32
    %cst_73 = arith.constant dense<0xFF800000> : vector<128xf32>
    %236 = vector.multi_reduction <maximumf>, %235, %cst_73 [1] : vector<128x128xf32> to vector<128xf32>
    %237 = vector.shape_cast %236 : vector<128xf32> to vector<128x1xf32>
    %238 = vector.broadcast %237 : vector<128x1xf32> to vector<128x128xf32>
    %239 = arith.cmpf oge, %235, %238 : vector<128x128xf32>
    %240 = vector.broadcast %cst_51 : f32 to vector<128x128xf32>
    %241 = arith.select %239, %1, %240 : vector<128x128xi1>, vector<128x128xf32>
    %cst_74 = arith.constant dense<0x7F800000> : vector<128xf32>
    %242 = vector.multi_reduction <minimumf>, %241, %cst_74 [1] : vector<128x128xf32> to vector<128xf32>
    %243 = vector.shape_cast %242 : vector<128xf32> to vector<128x1xf32>
    %244 = vector.broadcast %243 : vector<128x1xf32> to vector<128x128xf32>
    %245 = arith.cmpf oeq, %1, %244 : vector<128x128xf32>
    %246 = arith.extui %245 : vector<128x128xi1> to vector<128x128xi32>
    %247 = arith.sitofp %246 : vector<128x128xi32> to vector<128x128xf32>
    %248 = arith.addf %233, %247 : vector<128x128xf32>
    %cst_75 = arith.constant -3.40282347E+38 : f32
    %249 = vector.broadcast %cst_75 : f32 to vector<128x128xf32>
    %250 = arith.select %245, %249, %235 : vector<128x128xi1>, vector<128x128xf32>
    %c6_i32_76 = arith.constant 6 : i32
    %cst_77 = arith.constant dense<0xFF800000> : vector<128xf32>
    %251 = vector.multi_reduction <maximumf>, %250, %cst_77 [1] : vector<128x128xf32> to vector<128xf32>
    %252 = vector.shape_cast %251 : vector<128xf32> to vector<128x1xf32>
    %253 = vector.broadcast %252 : vector<128x1xf32> to vector<128x128xf32>
    %254 = arith.cmpf oge, %250, %253 : vector<128x128xf32>
    %255 = vector.broadcast %cst_51 : f32 to vector<128x128xf32>
    %256 = arith.select %254, %1, %255 : vector<128x128xi1>, vector<128x128xf32>
    %cst_78 = arith.constant dense<0x7F800000> : vector<128xf32>
    %257 = vector.multi_reduction <minimumf>, %256, %cst_78 [1] : vector<128x128xf32> to vector<128xf32>
    %258 = vector.shape_cast %257 : vector<128xf32> to vector<128x1xf32>
    %259 = vector.broadcast %258 : vector<128x1xf32> to vector<128x128xf32>
    %260 = arith.cmpf oeq, %1, %259 : vector<128x128xf32>
    %261 = arith.extui %260 : vector<128x128xi1> to vector<128x128xi32>
    %262 = arith.sitofp %261 : vector<128x128xi32> to vector<128x128xf32>
    %263 = arith.addf %248, %262 : vector<128x128xf32>
    %cst_79 = arith.constant -3.40282347E+38 : f32
    %264 = vector.broadcast %cst_79 : f32 to vector<128x128xf32>
    %265 = arith.select %260, %264, %250 : vector<128x128xi1>, vector<128x128xf32>
    %c7_i32_80 = arith.constant 7 : i32
    %cst_81 = arith.constant dense<0xFF800000> : vector<128xf32>
    %266 = vector.multi_reduction <maximumf>, %265, %cst_81 [1] : vector<128x128xf32> to vector<128xf32>
    %267 = vector.shape_cast %266 : vector<128xf32> to vector<128x1xf32>
    %268 = vector.broadcast %267 : vector<128x1xf32> to vector<128x128xf32>
    %269 = arith.cmpf oge, %265, %268 : vector<128x128xf32>
    %270 = vector.broadcast %cst_51 : f32 to vector<128x128xf32>
    %271 = arith.select %269, %1, %270 : vector<128x128xi1>, vector<128x128xf32>
    %cst_82 = arith.constant dense<0x7F800000> : vector<128xf32>
    %272 = vector.multi_reduction <minimumf>, %271, %cst_82 [1] : vector<128x128xf32> to vector<128xf32>
    %273 = vector.shape_cast %272 : vector<128xf32> to vector<128x1xf32>
    %274 = vector.broadcast %273 : vector<128x1xf32> to vector<128x128xf32>
    %275 = arith.cmpf oeq, %1, %274 : vector<128x128xf32>
    %276 = arith.extui %275 : vector<128x128xi1> to vector<128x128xi32>
    %277 = arith.sitofp %276 : vector<128x128xi32> to vector<128x128xf32>
    %278 = arith.addf %263, %277 : vector<128x128xf32>
    %cst_83 = arith.constant -3.40282347E+38 : f32
    %279 = vector.broadcast %cst_83 : f32 to vector<128x128xf32>
    %280 = arith.select %275, %279, %265 : vector<128x128xi1>, vector<128x128xf32>
    %cst_84 = arith.constant dense<0.000000e+00> : vector<32x128xf32>
    %281 = tpu.matmul %150, %278, %cst_84 {dimension_numbers = #tpu.dot_dimension_numbers<[1], [1], [0], [0], [0, 0, 1, 0], [], []>} : vector<32x128xf32>, vector<128x128xf32>, vector<32x128xf32> -> vector<32x128xf32>
    %cst_85 = arith.constant 1.250000e-01 : f32
    %282 = vector.broadcast %cst_85 : f32 to vector<32x128xf32>
    %283 = arith.mulf %281, %282 : vector<32x128xf32>
    %284 = arith.subf %283, %150 : vector<32x128xf32>
    %cst_86 = arith.constant dense<0.000000e+00> : vector<32x128xf32>
    %285 = tpu.matmul %5, %284, %cst_86 {dimension_numbers = #tpu.dot_dimension_numbers<[1], [0], [0], [1], [0, 0, 1, 1], [], []>} : vector<32x32xf32>, vector<32x128xf32>, vector<32x128xf32> -> vector<32x128xf32>
    %cst_87 = arith.constant dense<0.000000e+00> : vector<32x128xf32>
    %286 = tpu.matmul %6, %150, %cst_87 {dimension_numbers = #tpu.dot_dimension_numbers<[1], [0], [0], [1], [0, 0, 1, 1], [], []>} : vector<32x32xf32>, vector<32x128xf32>, vector<32x128xf32> -> vector<32x128xf32>
    %287 = arith.addf %285, %286 : vector<32x128xf32>
    %288 = vector.broadcast %7 : vector<32x1xf32> to vector<32x128xf32>
    %289 = arith.addf %287, %288 : vector<32x128xf32>
    %cst_88 = arith.constant 0.000000e+00 : f32
    %290 = vector.broadcast %cst_88 : f32 to vector<32x128xf32>
    %291 = arith.maximumf %289, %290 : vector<32x128xf32>
    %292 = arith.addf %291, %9 : vector<32x128xf32>
    %c0_89 = arith.constant 0 : index
    %c0_90 = arith.constant 0 : index
    %c0_91 = arith.constant 0 : index
    %293 = vector.load %arg8[%c0_89, %c0_90, %c0_91] : memref<1x32x128xf32, #tpu.memory_space<vmem>>, vector<1x32x128xf32>
    %294 = vector.shape_cast %293 : vector<1x32x128xf32> to vector<32x128xf32>
    %295 = vector.shape_cast %292 : vector<32x128xf32> to vector<1x32x128xf32>
    tpu.vector_store %arg8[%c0_89, %c0_90, %c0_91], %295 {strides = array<i32>} : memref<1x32x128xf32, #tpu.memory_space<vmem>>, vector<1x32x128xf32>,
    return
  }
  func.func @transform_0(%arg0: i32) -> (i32, i32, i32) {
    %c0_i32 = arith.constant 0 : i32
    %c0_i32_0 = arith.constant 0 : i32
    %c0_i32_1 = arith.constant 0 : i32
    return %arg0, %c0_i32, %c0_i32_0 : i32, i32, i32
  }
  func.func @transform_1(%arg0: i32) -> (i32, i32) {
    %c0_i32 = arith.constant 0 : i32
    %c0_i32_0 = arith.constant 0 : i32
    %c0_i32_1 = arith.constant 0 : i32
    return %c0_i32, %c0_i32_0 : i32, i32
  }
  func.func @transform_2(%arg0: i32) -> (i32, i32) {
    %c0_i32 = arith.constant 0 : i32
    %c0_i32_0 = arith.constant 0 : i32
    %c0_i32_1 = arith.constant 0 : i32
    return %c0_i32, %c0_i32_0 : i32, i32
  }
  func.func @transform_3(%arg0: i32) -> (i32, i32) {
    %c0_i32 = arith.constant 0 : i32
    %c0_i32_0 = arith.constant 0 : i32
    %c0_i32_1 = arith.constant 0 : i32
    return %c0_i32, %c0_i32_0 : i32, i32
  }
  func.func @transform_4(%arg0: i32) -> (i32, i32) {
    %c0_i32 = arith.constant 0 : i32
    %c0_i32_0 = arith.constant 0 : i32
    %c0_i32_1 = arith.constant 0 : i32
    return %c0_i32, %c0_i32_0 : i32, i32
  }
  func.func @transform_5(%arg0: i32) -> (i32, i32) {
    %c0_i32 = arith.constant 0 : i32
    %c0_i32_0 = arith.constant 0 : i32
    %c0_i32_1 = arith.constant 0 : i32
    return %c0_i32, %c0_i32_0 : i32, i32
  }
  func.func @transform_6(%arg0: i32) -> (i32, i32) {
    %c0_i32 = arith.constant 0 : i32
    %c0_i32_0 = arith.constant 0 : i32
    %c0_i32_1 = arith.constant 0 : i32
    return %c0_i32, %c0_i32_0 : i32, i32
  }
  func.func @transform_7(%arg0: i32) -> (i32, i32, i32) {
    %c0_i32 = arith.constant 0 : i32
    %c0_i32_0 = arith.constant 0 : i32
    %c0_i32_1 = arith.constant 0 : i32
    return %arg0, %c0_i32, %c0_i32_0 : i32, i32, i32
  }
}

</mosaic_0001>

<llo_original>
// kernel: tpu_custom_call.1
$region0: #{tpu_custom_call.1}
  #allocation0 [shape = 'u32[]', space=smem, size = 0x4, offset = 0x4, fixed_abs, tag = 'smem constant byte address 0x4 - core index']
  #allocation1 [shape = 'u32[72,128]{1,0:T(1,128)}', space=vmem, size = 0x9000, scoped, tag = 'internal scratch']
  %s0 = inlined_call_operand.vmem [shape: f32[2,32,128], index: 0, kind: input, shape index: {}]
  %s1 = inlined_call_operand.hbm [shape: f32[32,32], index: 1, kind: input, shape index: {}]
  %s2 = inlined_call_operand.hbm [shape: f32[32,32], index: 2, kind: input, shape index: {}]
  %s3 = inlined_call_operand.vmem [shape: f32[32,1], index: 3, kind: input, shape index: {}]
  %s4 = inlined_call_operand.hbm [shape: f32[32,32], index: 4, kind: input, shape index: {}]
  %s5 = inlined_call_operand.hbm [shape: f32[32,32], index: 5, kind: input, shape index: {}]
  %s6 = inlined_call_operand.vmem [shape: f32[32,1], index: 6, kind: input, shape index: {}]
  %s7 = inlined_call_operand.hbm [shape: f32[2,32,128], index: 7, kind: output, shape index: {}]
  %s8 = sld [smem:[#allocation0]]
  $region77: #{tpu_custom_call.1} parent=0
    _
  %s10 = ssub.s32 1, %s8
  %s11 = scalar_select 0, %s10, %s8
  $region1: #{tpu_custom_call.1} parent=0
    #allocation2 [shape = 'u8[16384]{0}', space=vmem, size = 0x4000, scoped, tag = 'input window, operand 1, single buffered']
    #allocation3 [shape = 's32[2]{0}', space=sflag, size = 0x8, scoped, tag = 'scoped memory for tpu_custom_call.1']
    #allocation4 [shape = 's32[2]{0}', space=sflag, size = 0x8, scoped, tag = 'scoped memory for tpu_custom_call.1']
    #allocation5 [shape = 'u8[16384]{0}', space=vmem, size = 0x4000, scoped, tag = 'input window, operand 2, single buffered']
    #allocation6 [shape = 's32[1]{0}', space=sflag, size = 0x4, scoped, tag = 'scoped memory for tpu_custom_call.1']
    #allocation7 [shape = 'u8[16384]{0}', space=vmem, size = 0x4000, scoped, tag = 'input window, operand 4, single buffered']
    #allocation8 [shape = 'u8[16384]{0}', space=vmem, size = 0x4000, scoped, tag = 'input window, operand 5, single buffered']
    #allocation9 [shape = 's32[1]{0}', space=sflag, size = 0x4, scoped, tag = 'scoped memory for tpu_custom_call.1']
    #allocation10 [shape = 'u8[32768]{0}', space=vmem, size = 0x8000, scoped, tag = 'output window, operand 0']
    %12 = vsyncpa [#allocation3], 0
    %13 = vsyncpa [#allocation6], 0
    %14 = vsyncpa [#allocation9], 0
    %15 = vsyncpa [#allocation4], 0
    %s16 = scalar_lea.sflag [#allocation4], 1
    %17 = vsyncpa %s16, 0
    loop: start=0, step=1, limit=4
    $region2: #{tpu_custom_call.1} parent=1 // loop_pre_header
      _
    $region3: #{tpu_custom_call.1} parent=1 // loop_header
      %s19 = sphi 0, %s23
      %p20 = scmp.ge.s32.totalorder %s19, 4
      %s29 = sphi 0, %s31
      %s32 = sphi 0, %s29
      %s33 = sphi 0, %s32
      %s49 = sphi 0, %s33
      %s53 = sphi 0, %s53
      %s55 = sphi 0, %s53
      %s56 = sphi 0, %s55
      %s70 = sphi 0, %s56
      %s74 = sphi 0, %s74
      %s76 = sphi 0, %s74
      %s77 = sphi 0, %s76
      %s91 = sphi 0, %s77
      %s95 = sphi 0, %s95
      %s97 = sphi 0, %s95
      %s98 = sphi 0, %s97
      %s112 = sphi 0, %s98
      %s116 = sphi 0, %s116
      %s118 = sphi 0, %s116
      %s119 = sphi 0, %s118
      %s133 = sphi 0, %s119
      %s137 = sphi 0, %s137
      %s139 = sphi 0, %s137
      %s140 = sphi 0, %s139
      %s154 = sphi 0, %s140
      %s158 = sphi 0, %s158
      %s160 = sphi 0, %s158
      %s161 = sphi 0, %s160
      %s175 = sphi 0, %s161
      %s181 = sphi 0, %s183
      %s184 = sphi 0, %s181
      %s185 = sphi 0, %s184
      %s201 = sphi 0, %s185
    $region4: #{tpu_custom_call.1} parent=1 // loop_header_branch
      %22 = sbr.rel (%p20) target = $region8
    $region5: #{tpu_custom_call.1} parent=1 // loop_body
      %s24 = ssub.s32 %s19, 1
      %s25 = ssub.s32 %s19, 2
      %s26 = sadd.s32 %s19, 1
      %s27 = ssub.s32 %s19, %s26
      %p28 = scmp.eq.s32.totalorder %s27, 0
      %s30 = sadd.s32 %s29, 1
      %s31 = scalar_select %p28, %s29, %s30
      %p34 = pneg %p28
      %p35 = scmp.eq.s32.totalorder %s19, 1
      %p36 = por %p34, %p35
      %p37 = scmp.ne.s32.totalorder %s29, %s32
      %p38 = scmp.eq.s32.totalorder %s19, 0
      %p39 = por %p37, %p38
      %p40 = scmp.ne.s32.totalorder %s29, %s32
      %p41 = scmp.eq.s32.totalorder %s24, 1
      %p42 = por %p40, %p41
      %p43 = scmp.ne.s32.totalorder %s32, %s33
      %p44 = scmp.eq.s32.totalorder %s24, 0
      %p45 = por %p43, %p44
      %p46 = scmp.ne.s32.totalorder %s32, %s33
      %p47 = scmp.eq.s32.totalorder %s25, 1
      %p48 = por %p46, %p47
      %p50 = scmp.ne.s32.totalorder %s33, %s49
      %p51 = scmp.eq.s32.totalorder %s25, 0
      %p52 = por %p50, %p51
      %s54 = sadd.s32 %s53, 1
      %p57 = scmp.eq.s32.totalorder %s19, 1
      %p58 = scmp.ne.s32.totalorder %s53, %s55
      %p59 = scmp.eq.s32.totalorder %s19, 0
      %p60 = por %p58, %p59
      %p61 = scmp.ne.s32.totalorder %s53, %s55
      %p62 = scmp.eq.s32.totalorder %s24, 1
      %p63 = por %p61, %p62
      %p64 = scmp.ne.s32.totalorder %s55, %s56
      %p65 = scmp.eq.s32.totalorder %s24, 0
      %p66 = por %p64, %p65
      %p67 = scmp.ne.s32.totalorder %s55, %s56
      %p68 = scmp.eq.s32.totalorder %s25, 1
      %p69 = por %p67, %p68
      %p71 = scmp.ne.s32.totalorder %s56, %s70
      %p72 = scmp.eq.s32.totalorder %s25, 0
      %p73 = por %p71, %p72
      %s75 = sadd.s32 %s74, 1
      %p78 = scmp.eq.s32.totalorder %s19, 1
      %p79 = scmp.ne.s32.totalorder %s74, %s76
      %p80 = scmp.eq.s32.totalorder %s19, 0
      %p81 = por %p79, %p80
      %p82 = scmp.ne.s32.totalorder %s74, %s76
      %p83 = scmp.eq.s32.totalorder %s24, 1
      %p84 = por %p82, %p83
      %p85 = scmp.ne.s32.totalorder %s76, %s77
      %p86 = scmp.eq.s32.totalorder %s24, 0
      %p87 = por %p85, %p86
      %p88 = scmp.ne.s32.totalorder %s76, %s77
      %p89 = scmp.eq.s32.totalorder %s25, 1
      %p90 = por %p88, %p89
      %p92 = scmp.ne.s32.totalorder %s77, %s91
      %p93 = scmp.eq.s32.totalorder %s25, 0
      %p94 = por %p92, %p93
      %s96 = sadd.s32 %s95, 1
      %p99 = scmp.eq.s32.totalorder %s19, 1
      %p100 = scmp.ne.s32.totalorder %s95, %s97
      %p101 = scmp.eq.s32.totalorder %s19, 0
      %p102 = por %p100, %p101
      %p103 = scmp.ne.s32.totalorder %s95, %s97
      %p104 = scmp.eq.s32.totalorder %s24, 1
      %p105 = por %p103, %p104
      %p106 = scmp.ne.s32.totalorder %s97, %s98
      %p107 = scmp.eq.s32.totalorder %s24, 0
      %p108 = por %p106, %p107
      %p109 = scmp.ne.s32.totalorder %s97, %s98
      %p110 = scmp.eq.s32.totalorder %s25, 1
      %p111 = por %p109, %p110
      %p113 = scmp.ne.s32.totalorder %s98, %s112
      %p114 = scmp.eq.s32.totalorder %s25, 0
      %p115 = por %p113, %p114
      %s117 = sadd.s32 %s116, 1
      %p120 = scmp.eq.s32.totalorder %s19, 1
      %p121 = scmp.ne.s32.totalorder %s116, %s118
      %p122 = scmp.eq.s32.totalorder %s19, 0
      %p123 = por %p121, %p122
      %p124 = scmp.ne.s32.totalorder %s116, %s118
      %p125 = scmp.eq.s32.totalorder %s24, 1
      %p126 = por %p124, %p125
      %p127 = scmp.ne.s32.totalorder %s118, %s119
      %p128 = scmp.eq.s32.totalorder %s24, 0
      %p129 = por %p127, %p128
      %p130 = scmp.ne.s32.totalorder %s118, %s119
      %p131 = scmp.eq.s32.totalorder %s25, 1
      %p132 = por %p130, %p131
      %p134 = scmp.ne.s32.totalorder %s119, %s133
      %p135 = scmp.eq.s32.totalorder %s25, 0
      %p136 = por %p134, %p135
      %s138 = sadd.s32 %s137, 1
      %p141 = scmp.eq.s32.totalorder %s19, 1
      %p142 = scmp.ne.s32.totalorder %s137, %s139
      %p143 = scmp.eq.s32.totalorder %s19, 0
      %p144 = por %p142, %p143
      %p145 = scmp.ne.s32.totalorder %s137, %s139
      %p146 = scmp.eq.s32.totalorder %s24, 1
      %p147 = por %p145, %p146
      %p148 = scmp.ne.s32.totalorder %s139, %s140
      %p149 = scmp.eq.s32.totalorder %s24, 0
      %p150 = por %p148, %p149
      %p151 = scmp.ne.s32.totalorder %s139, %s140
      %p152 = scmp.eq.s32.totalorder %s25, 1
      %p153 = por %p151, %p152
      %p155 = scmp.ne.s32.totalorder %s140, %s154
      %p156 = scmp.eq.s32.totalorder %s25, 0
      %p157 = por %p155, %p156
      %s159 = sadd.s32 %s158, 1
      %p162 = scmp.eq.s32.totalorder %s19, 1
      %p163 = scmp.ne.s32.totalorder %s158, %s160
      %p164 = scmp.eq.s32.totalorder %s19, 0
      %p165 = por %p163, %p164
      %p166 = scmp.ne.s32.totalorder %s158, %s160
      %p167 = scmp.eq.s32.totalorder %s24, 1
      %p168 = por %p166, %p167
      %p169 = scmp.ne.s32.totalorder %s160, %s161
      %p170 = scmp.eq.s32.totalorder %s24, 0
      %p171 = por %p169, %p170
      %p172 = scmp.ne.s32.totalorder %s160, %s161
      %p173 = scmp.eq.s32.totalorder %s25, 1
      %p174 = por %p172, %p173
      %p176 = scmp.ne.s32.totalorder %s161, %s175
      %p177 = scmp.eq.s32.totalorder %s25, 0
      %p178 = por %p176, %p177
      %s179 = ssub.s32 %s19, %s26
      %p180 = scmp.eq.s32.totalorder %s179, 0
      %s182 = sadd.s32 %s181, 1
      %s183 = scalar_select %p180, %s181, %s182
      %p186 = pneg %p180
      %p187 = scmp.eq.s32.totalorder %s19, 1
      %p188 = por %p186, %p187
      %p189 = scmp.ne.s32.totalorder %s181, %s184
      %p190 = scmp.eq.s32.totalorder %s19, 0
      %p191 = por %p189, %p190
      %p192 = scmp.ne.s32.totalorder %s181, %s184
      %p193 = scmp.eq.s32.totalorder %s24, 1
      %p194 = por %p192, %p193
      %p195 = scmp.ne.s32.totalorder %s184, %s185
      %p196 = scmp.eq.s32.totalorder %s24, 0
      %p197 = por %p195, %p196
      %p198 = scmp.ne.s32.totalorder %s184, %s185
      %p199 = scmp.eq.s32.totalorder %s25, 1
      %p200 = por %p198, %p199
      %p202 = scmp.ne.s32.totalorder %s185, %s201
      %p203 = scmp.eq.s32.totalorder %s25, 0
      %p204 = por %p202, %p203
      %p205 = scmp.le.s32.totalorder 1, %s19
      %p206 = scmp.lt.s32.totalorder %s19, 3
      %p207 = pnand %p205, %p206
      %p208 = pneg %p207
      // Predicated region
      $region9: #{tpu_custom_call.1} parent=5 // pred_check
        _
      $region10: #{tpu_custom_call.1} parent=5 // pred_check_branch
        %210 = sbr.rel (%p207) target = $region12
      $region11: #{tpu_custom_call.1} parent=5 // pred_region
        %s211 = ssub.s32 %s19, 1
        // Predicated region
        $region13: #{tpu_custom_call.1} parent=11 // pred_check
          %p212 = pneg %p66
        $region14: #{tpu_custom_call.1} parent=11 // pred_check_branch
          %214 = sbr.rel (%p212) target = $region16
        $region15: #{tpu_custom_call.1} parent=11 // pred_region
          %216 = vsyncadd [#allocation3], 0
          %s217 = sshll.u32 %s1, 4
          %s218 = int_to_ptr.hbm [resolvable:$true] %s217
          %s219 = sshll.u32 [#allocation2], 4
          %s220 = int_to_ptr.vmem [resolvable:$true] %s219
          %225 = dma.hbm_to_vmem [thread:$0]  %s218, 512, %s220, [#allocation3], 128, 128, 8
        $region16: #{tpu_custom_call.1} parent=11 // pred_fallthru
          _
        // Predicated region
        $region17: #{tpu_custom_call.1} parent=11 // pred_check
          %p226 = pneg %p87
        $region18: #{tpu_custom_call.1} parent=11 // pred_check_branch
          %228 = sbr.rel (%p226) target = $region20
        $region19: #{tpu_custom_call.1} parent=11 // pred_region
          %230 = vsyncadd [#allocation6], 0
          %s231 = sshll.u32 %s2, 4
          %s232 = int_to_ptr.hbm [resolvable:$true] %s231
          %s233 = sshll.u32 [#allocation5], 4
          %s234 = int_to_ptr.vmem [resolvable:$true] %s233
          %239 = dma.hbm_to_vmem [thread:$0]  %s232, 512, %s234, [#allocation6], 128, 128, 8
        $region20: #{tpu_custom_call.1} parent=11 // pred_fallthru
          _
        // Predicated region
        $region21: #{tpu_custom_call.1} parent=11 // pred_check
          %p240 = pneg %p108
        $region22: #{tpu_custom_call.1} parent=11 // pred_check_branch
          %242 = sbr.rel (%p240) target = $region24
        $region23: #{tpu_custom_call.1} parent=11 // pred_region
          _
        $region24: #{tpu_custom_call.1} parent=11 // pred_fallthru
          _
        // Predicated region
        $region25: #{tpu_custom_call.1} parent=11 // pred_check
          %p243 = pneg %p129
        $region26: #{tpu_custom_call.1} parent=11 // pred_check_branch
          %245 = sbr.rel (%p243) target = $region28
        $region27: #{tpu_custom_call.1} parent=11 // pred_region
          %247 = vsyncadd [#allocation6], 0
          %s248 = sshll.u32 %s4, 4
          %s249 = int_to_ptr.hbm [resolvable:$true] %s248
          %s250 = sshll.u32 [#allocation7], 4
          %s251 = int_to_ptr.vmem [resolvable:$true] %s250
          %256 = dma.hbm_to_vmem [thread:$0]  %s249, 512, %s251, [#allocation6], 128, 128, 8
        $region28: #{tpu_custom_call.1} parent=11 // pred_fallthru
          _
        // Predicated region
        $region29: #{tpu_custom_call.1} parent=11 // pred_check
          %p257 = pneg %p150
        $region30: #{tpu_custom_call.1} parent=11 // pred_check_branch
          %259 = sbr.rel (%p257) target = $region32
        $region31: #{tpu_custom_call.1} parent=11 // pred_region
          %261 = vsyncadd [#allocation9], 0
          %s262 = sshll.u32 %s5, 4
          %s263 = int_to_ptr.hbm [resolvable:$true] %s262
          %s264 = sshll.u32 [#allocation8], 4
          %s265 = int_to_ptr.vmem [resolvable:$true] %s264
          %270 = dma.hbm_to_vmem [thread:$0]  %s263, 512, %s265, [#allocation9], 128, 128, 8
        $region32: #{tpu_custom_call.1} parent=11 // pred_fallthru
          _
        // Predicated region
        $region33: #{tpu_custom_call.1} parent=11 // pred_check
          %p271 = pneg %p171
        $region34: #{tpu_custom_call.1} parent=11 // pred_check_branch
          %273 = sbr.rel (%p271) target = $region36
        $region35: #{tpu_custom_call.1} parent=11 // pred_region
          _
        $region36: #{tpu_custom_call.1} parent=11 // pred_fallthru
          _
      $region12: #{tpu_custom_call.1} parent=5 // pred_fallthru
        _
      %p274 = scmp.lt.s32.totalorder %s19, 2
      // Predicated region
      $region37: #{tpu_custom_call.1} parent=5 // pred_check
        %p275 = pneg %p274
      $region38: #{tpu_custom_call.1} parent=5 // pred_check_branch
        %277 = sbr.rel (%p275) target = $region40
      $region39: #{tpu_custom_call.1} parent=5 // pred_region
        // Predicated region
        $region41: #{tpu_custom_call.1} parent=39 // pred_check
          %p278 = pneg %p39
        $region42: #{tpu_custom_call.1} parent=39 // pred_check_branch
          %280 = sbr.rel (%p278) target = $region44
        $region43: #{tpu_custom_call.1} parent=39 // pred_region
          %p281 = scmp.lt.s32.totalorder %s19, 1
          %s282 = scalar_select %p281, %s19, 1
          %s283 = smul.addr %s282, 4
          %s284 = smul.addr %s283, 8
          %s285 = scalar_lea.vmem %s0, %s284
        $region44: #{tpu_custom_call.1} parent=39 // pred_fallthru
          _
      $region40: #{tpu_custom_call.1} parent=5 // pred_fallthru
        _
      %p286 = scmp.le.s32.totalorder 1, %s19
      %p287 = scmp.lt.s32.totalorder %s19, 3
      %p288 = pnand %p286, %p287
      %p289 = pneg %p288
      // Predicated region
      $region45: #{tpu_custom_call.1} parent=5 // pred_check
        _
      $region46: #{tpu_custom_call.1} parent=5 // pred_check_branch
        %291 = sbr.rel (%p288) target = $region48
      $region47: #{tpu_custom_call.1} parent=5 // pred_region
        %s292 = ssub.s32 %s19, 1
        // Predicated region
        $region49: #{tpu_custom_call.1} parent=47 // pred_check
          %p293 = pneg %p66
        $region50: #{tpu_custom_call.1} parent=47 // pred_check_branch
          %295 = sbr.rel (%p293) target = $region52
        $region51: #{tpu_custom_call.1} parent=47 // pred_region
          %297 = dma.done [#allocation3], 512
        $region52: #{tpu_custom_call.1} parent=47 // pred_fallthru
          _
        // Predicated region
        $region53: #{tpu_custom_call.1} parent=47 // pred_check
          %p298 = pneg %p87
        $region54: #{tpu_custom_call.1} parent=47 // pred_check_branch
          %300 = sbr.rel (%p298) target = $region56
        $region55: #{tpu_custom_call.1} parent=47 // pred_region
          %302 = dma.done [#allocation6], 512
        $region56: #{tpu_custom_call.1} parent=47 // pred_fallthru
          _
        // Predicated region
        $region57: #{tpu_custom_call.1} parent=47 // pred_check
          %p303 = pneg %p129
        $region58: #{tpu_custom_call.1} parent=47 // pred_check_branch
          %305 = sbr.rel (%p303) target = $region60
        $region59: #{tpu_custom_call.1} parent=47 // pred_region
          %307 = dma.done [#allocation6], 512
        $region60: #{tpu_custom_call.1} parent=47 // pred_fallthru
          _
        // Predicated region
        $region61: #{tpu_custom_call.1} parent=47 // pred_check
          %p308 = pneg %p150
        $region62: #{tpu_custom_call.1} parent=47 // pred_check_branch
          %310 = sbr.rel (%p308) target = $region64
        $region63: #{tpu_custom_call.1} parent=47 // pred_region
          %312 = dma.done [#allocation9], 512
        $region64: #{tpu_custom_call.1} parent=47 // pred_fallthru
          _
        %p313 = scmp.lt.s32.totalorder %s24, 1
        %s314 = scalar_select %p313, %s24, 1
        %s315 = smul.addr %s314, 4
        %s316 = smul.addr %s315, 8
        %s317 = scalar_lea.vmem %s0, %s316
        %p318 = pneg %p45
        %p319 = pneg %p42
        %p320 = pneg %p66
        %p321 = pneg %p63
        %p322 = pneg %p87
        %p323 = pneg %p84
        %p324 = pneg %p108
        %p325 = pneg %p105
        %p326 = pneg %p129
        %p327 = pneg %p126
        %p328 = pneg %p150
        %p329 = pneg %p147
        %p330 = pneg %p171
        %p331 = pneg %p168
        %p332 = pneg %p197
        %p333 = pneg %p194
        %s334 = sand.u32 %s184, 1
        %s335 = scalar_lea.sflag [#allocation4], %s334
        %s336 = sand.u32 %s184, 1
        %s337 = smul.addr %s336, 32
        %s338 = scalar_lea.vmem [#allocation10], %s337
        %p339 = scmp.lt.s32.totalorder %s24, 1
        %s340 = scalar_select %p339, %s24, 1
        %s341 = smul.addr %s340, 4
        %s342 = smul.addr %s341, 8
        %s343 = scalar_lea.vmem %s0, %s342
        %v344 = vlaneseq
        %v345 = vand.u32 %v344, 127
        %v346 = vcvt.s32.f32 %v345
        %v347 = vld [vmem:[#allocation2] sm:$0xff]
        %v348 = vld [vmem:[#allocation2 + $0x8] sm:$0xff]
        %v349 = vld [vmem:[#allocation2 + $0x10] sm:$0xff]
        %v350 = vld [vmem:[#allocation2 + $0x18] sm:$0xff]
        %v351 = vld [vmem:[#allocation5] sm:$0xff]
        %v352 = vld [vmem:[#allocation5 + $0x8] sm:$0xff]
        %v353 = vld [vmem:[#allocation5 + $0x10] sm:$0xff]
        %v354 = vld [vmem:[#allocation5 + $0x18] sm:$0xff]
        %v355 = vld [vmem:[%s3] sm:$0xff]
        %v356 = vld [vmem:[%s3 + $0x8] sm:$0xff]
        %v357 = vld [vmem:[%s3 + $0x10] sm:$0xff]
        %v358 = vld [vmem:[%s3 + $0x18] sm:$0xff]
        %v359 = vld [vmem:[#allocation7] sm:$0xff]
        %v360 = vld [vmem:[#allocation7 + $0x8] sm:$0xff]
        %v361 = vld [vmem:[#allocation7 + $0x10] sm:$0xff]
        %v362 = vld [vmem:[#allocation7 + $0x18] sm:$0xff]
        %v363 = vld [vmem:[#allocation8] sm:$0xff]
        %v364 = vld [vmem:[#allocation8 + $0x8] sm:$0xff]
        %v365 = vld [vmem:[#allocation8 + $0x10] sm:$0xff]
        %v366 = vld [vmem:[#allocation8 + $0x18] sm:$0xff]
        %v367 = vld [vmem:[%s6] sm:$0xff]
        %v368 = vld [vmem:[%s6 + $0x8] sm:$0xff]
        %v369 = vld [vmem:[%s6 + $0x10] sm:$0xff]
        %v370 = vld [vmem:[%s6 + $0x18] sm:$0xff]
        %v371 = vld [vmem:[%s343] sm:$0xff]
        %v372 = vld [vmem:[%s343 + $0x8] sm:$0xff]
        %v373 = vld [vmem:[%s343 + $0x10] sm:$0xff]
        %v374 = vld [vmem:[%s343 + $0x18] sm:$0xff]
        %375 = vxpose.xlu0.b32.start [1/16] %v371, 128
        %376 = vxpose.xlu0.b32.cont [2/16] %v372, 128
        %377 = vxpose.xlu0.b32.cont [3/16] %v373, 128
        %378 = vxpose.xlu0.b32.cont [4/16] %v374, 128
        %379 = vxpose.xlu0.b32.cont [5/16] 0.0, 128
        %380 = vxpose.xlu0.b32.cont [6/16] 0.0, 128
        %381 = vxpose.xlu0.b32.cont [7/16] 0.0, 128
        %382 = vxpose.xlu0.b32.cont [8/16] 0.0, 128
        %383 = vxpose.xlu0.b32.cont [9/16] 0.0, 128
        %384 = vxpose.xlu0.b32.cont [10/16] 0.0, 128
        %385 = vxpose.xlu0.b32.cont [11/16] 0.0, 128
        %386 = vxpose.xlu0.b32.cont [12/16] 0.0, 128
        %387 = vxpose.xlu0.b32.cont [13/16] 0.0, 128
        %388 = vxpose.xlu0.b32.cont [14/16] 0.0, 128
        %389 = vxpose.xlu0.b32.cont [15/16] 0.0, 128
        %390 = vxpose.xlu0.b32.end [16/16] 0.0, 128
        %v391 = vpop.trf.xlu0
        %v392 = vpop.trf.xlu0
        %v393 = vpop.trf.xlu0
        %v394 = vpop.trf.xlu0
        %v395 = vpop.trf.xlu0
        %v396 = vpop.trf.xlu0
        %v397 = vpop.trf.xlu0
        %v398 = vpop.trf.xlu0
        %v399 = vpop.trf.xlu0
        %v400 = vpop.trf.xlu0
        %v401 = vpop.trf.xlu0
        %v402 = vpop.trf.xlu0
        %v403 = vpop.trf.xlu0
        %v404 = vpop.trf.xlu0
        %v405 = vpop.trf.xlu0
        %v406 = vpop.trf.xlu0
        %vm407 = vcmask 261120
        %v409 = vsel %vm407, %v391, 0
        %v412 = vsel %vm407, %v392, 0
        %v415 = vsel %vm407, %v393, 0
        %v418 = vsel %vm407, %v394, 0
        %v421 = vsel %vm407, %v395, 0
        %v424 = vsel %vm407, %v396, 0
        %v427 = vsel %vm407, %v397, 0
        %v430 = vsel %vm407, %v398, 0
        %v433 = vsel %vm407, %v399, 0
        %v436 = vsel %vm407, %v400, 0
        %v439 = vsel %vm407, %v401, 0
        %v442 = vsel %vm407, %v402, 0
        %v445 = vsel %vm407, %v403, 0
        %v448 = vsel %vm407, %v404, 0
        %v451 = vsel %vm407, %v405, 0
        %v454 = vsel %vm407, %v406, 0
        %456 = vmatpush.msra.mxu0 0.0
        %457 = vmatpush.msra.mxu0 0.0
        %458 = vmatpush.msra.mxu0 0.0
        %459 = vmatpush.msra.mxu0 0.0
        %460 = vmatpush.msra.mxu0 0.0
        %461 = vmatpush.msra.mxu0 0.0
        %462 = vmatpush.msra.mxu0 0.0
        %463 = vmatpush.msra.mxu0 0.0
        %464 = vmatpush.msra.mxu0 0.0
        %465 = vmatpush.msra.mxu0 0.0
        %466 = vmatpush.msra.mxu0 0.0
        %467 = vmatpush.msra.mxu0 0.0
        %468 = vmatpush.msra.mxu0 %v374
        %469 = vmatpush.msra.mxu0 %v373
        %470 = vmatpush.msra.mxu0 %v372
        %471 = vmatpush.msra.mxu0 %v371
        %472 = vmatmul.f32.gmra.mxu0 %v409
        %v473 = vpop.f32.mrf.mxu0
        %v474 = vadd.f32 0.0, %v473
        %475 = vmatmul.f32.gmra.mxu0 %v412
        %v476 = vpop.f32.mrf.mxu0
        %v477 = vadd.f32 0.0, %v476
        %478 = vmatmul.f32.gmra.mxu0 %v415
        %v479 = vpop.f32.mrf.mxu0
        %v480 = vadd.f32 0.0, %v479
        %481 = vmatmul.f32.gmra.mxu0 %v418
        %v482 = vpop.f32.mrf.mxu0
        %v483 = vadd.f32 0.0, %v482
        %484 = vmatmul.f32.gmra.mxu0 %v421
        %v485 = vpop.f32.mrf.mxu0
        %v486 = vadd.f32 0.0, %v485
        %487 = vmatmul.f32.gmra.mxu0 %v424
        %v488 = vpop.f32.mrf.mxu0
        %v489 = vadd.f32 0.0, %v488
        %490 = vmatmul.f32.gmra.mxu0 %v427
        %v491 = vpop.f32.mrf.mxu0
        %v492 = vadd.f32 0.0, %v491
        %493 = vmatmul.f32.gmra.mxu0 %v430
        %v494 = vpop.f32.mrf.mxu0
        %v495 = vadd.f32 0.0, %v494
        %496 = vmatmul.f32.gmra.mxu0 %v433
        %v497 = vpop.f32.mrf.mxu0
        %v498 = vadd.f32 0.0, %v497
        %499 = vmatmul.f32.gmra.mxu0 %v436
        %v500 = vpop.f32.mrf.mxu0
        %v501 = vadd.f32 0.0, %v500
        %502 = vmatmul.f32.gmra.mxu0 %v439
        %v503 = vpop.f32.mrf.mxu0
        %v504 = vadd.f32 0.0, %v503
        %505 = vmatmul.f32.gmra.mxu0 %v442
        %v506 = vpop.f32.mrf.mxu0
        %v507 = vadd.f32 0.0, %v506
        %508 = vmatmul.f32.gmra.mxu0 %v445
        %v509 = vpop.f32.mrf.mxu0
        %v510 = vadd.f32 0.0, %v509
        %511 = vmatmul.f32.gmra.mxu0 %v448
        %v512 = vpop.f32.mrf.mxu0
        %v513 = vadd.f32 0.0, %v512
        %514 = vmatmul.f32.gmra.mxu0 %v451
        %v515 = vpop.f32.mrf.mxu0
        %v516 = vadd.f32 0.0, %v515
        %517 = vmatmul.f32.gmra.mxu0 %v454
        %v518 = vpop.f32.mrf.mxu0
        %v519 = vadd.f32 0.0, %v518
        %520 = vdwg.mxu0
        %v521 = vmul.f32 %v371, %v371
        %v522 = vmul.f32 %v372, %v372
        %v523 = vmul.f32 %v373, %v373
        %v524 = vmul.f32 %v374, %v374
        %v525 = vadd.f32 %v521, %v522
        %v526 = vadd.f32 %v525, %v523
        %v527 = vadd.f32 %v526, %v524
        %v528 = vrot.slane %v527, 4
        %v529 = vadd.f32 %v527, %v528
        %v530 = vrot.slane %v529, 2
        %v531 = vadd.f32 %v529, %v530
        %v532 = vrot.slane %v531, 1
        %v533 = vadd.f32 %v531, %v532
        %v534 = vmul.f32 %v474, 2.0
        %v535 = vmul.f32 %v477, 2.0
        %v536 = vmul.f32 %v480, 2.0
        %v537 = vmul.f32 %v483, 2.0
        %v538 = vmul.f32 %v486, 2.0
        %v539 = vmul.f32 %v489, 2.0
        %v540 = vmul.f32 %v492, 2.0
        %v541 = vmul.f32 %v495, 2.0
        %v542 = vmul.f32 %v498, 2.0
        %v543 = vmul.f32 %v501, 2.0
        %v544 = vmul.f32 %v504, 2.0
        %v545 = vmul.f32 %v507, 2.0
        %v546 = vmul.f32 %v510, 2.0
        %v547 = vmul.f32 %v513, 2.0
        %v548 = vmul.f32 %v516, 2.0
        %v549 = vmul.f32 %v519, 2.0
        %v550 = vsub.f32 %v534, %v533
        %v551 = vsub.f32 %v535, %v533
        %v552 = vsub.f32 %v536, %v533
        %v553 = vsub.f32 %v537, %v533
        %v554 = vsub.f32 %v538, %v533
        %v555 = vsub.f32 %v539, %v533
        %v556 = vsub.f32 %v540, %v533
        %v557 = vsub.f32 %v541, %v533
        %v558 = vsub.f32 %v542, %v533
        %v559 = vsub.f32 %v543, %v533
        %v560 = vsub.f32 %v544, %v533
        %v561 = vsub.f32 %v545, %v533
        %v562 = vsub.f32 %v546, %v533
        %v563 = vsub.f32 %v547, %v533
        %v564 = vsub.f32 %v548, %v533
        %v565 = vsub.f32 %v549, %v533
        %566 = vmax.xlane.f32.xlu0 %v550
        %v567 = vpop.xlane.xlu0 %566
        %568 = vmax.xlane.f32.xlu0 %v551
        %v569 = vpop.xlane.xlu0 %568
        %570 = vmax.xlane.f32.xlu0 %v552
        %v571 = vpop.xlane.xlu0 %570
        %572 = vmax.xlane.f32.xlu0 %v553
        %v573 = vpop.xlane.xlu0 %572
        %574 = vmax.xlane.f32.xlu0 %v554
        %v575 = vpop.xlane.xlu0 %574
        %576 = vmax.xlane.f32.xlu0 %v555
        %v577 = vpop.xlane.xlu0 %576
        %578 = vmax.xlane.f32.xlu0 %v556
        %v579 = vpop.xlane.xlu0 %578
        %580 = vmax.xlane.f32.xlu0 %v557
        %v581 = vpop.xlane.xlu0 %580
        %582 = vmax.xlane.f32.xlu0 %v558
        %v583 = vpop.xlane.xlu0 %582
        %584 = vmax.xlane.f32.xlu0 %v559
        %v585 = vpop.xlane.xlu0 %584
        %586 = vmax.xlane.f32.xlu0 %v560
        %v587 = vpop.xlane.xlu0 %586
        %588 = vmax.xlane.f32.xlu0 %v561
        %v589 = vpop.xlane.xlu0 %588
        %590 = vmax.xlane.f32.xlu0 %v562
        %v591 = vpop.xlane.xlu0 %590
        %592 = vmax.xlane.f32.xlu0 %v563
        %v593 = vpop.xlane.xlu0 %592
        %594 = vmax.xlane.f32.xlu0 %v564
        %v595 = vpop.xlane.xlu0 %594
        %596 = vmax.xlane.f32.xlu0 %v565
        %v597 = vpop.xlane.xlu0 %596
        %vm598 = vcmp.ge.f32.partialorder %v550, %v567
        %vm599 = vcmp.ge.f32.partialorder %v551, %v569
        %vm600 = vcmp.ge.f32.partialorder %v552, %v571
        %vm601 = vcmp.ge.f32.partialorder %v553, %v573
        %vm602 = vcmp.ge.f32.partialorder %v554, %v575
        %vm603 = vcmp.ge.f32.partialorder %v555, %v577
        %vm604 = vcmp.ge.f32.partialorder %v556, %v579
        %vm605 = vcmp.ge.f32.partialorder %v557, %v581
        %vm606 = vcmp.ge.f32.partialorder %v558, %v583
        %vm607 = vcmp.ge.f32.partialorder %v559, %v585
        %vm608 = vcmp.ge.f32.partialorder %v560, %v587
        %vm609 = vcmp.ge.f32.partialorder %v561, %v589
        %vm610 = vcmp.ge.f32.partialorder %v562, %v591
        %vm611 = vcmp.ge.f32.partialorder %v563, %v593
        %vm612 = vcmp.ge.f32.partialorder %v564, %v595
        %vm613 = vcmp.ge.f32.partialorder %v565, %v597
        %v614 = vsel %vm598, %v346, 128.0
        %v615 = vsel %vm599, %v346, 128.0
        %v616 = vsel %vm600, %v346, 128.0
        %v617 = vsel %vm601, %v346, 128.0
        %v618 = vsel %vm602, %v346, 128.0
        %v619 = vsel %vm603, %v346, 128.0
        %v620 = vsel %vm604, %v346, 128.0
        %v621 = vsel %vm605, %v346, 128.0
        %v622 = vsel %vm606, %v346, 128.0
        %v623 = vsel %vm607, %v346, 128.0
        %v624 = vsel %vm608, %v346, 128.0
        %v625 = vsel %vm609, %v346, 128.0
        %v626 = vsel %vm610, %v346, 128.0
        %v627 = vsel %vm611, %v346, 128.0
        %v628 = vsel %vm612, %v346, 128.0
        %v629 = vsel %vm613, %v346, 128.0
        %630 = vmin.xlane.f32.xlu0 %v614
        %v631 = vpop.xlane.xlu0 %630
        %632 = vmin.xlane.f32.xlu0 %v615
        %v633 = vpop.xlane.xlu0 %632
        %634 = vmin.xlane.f32.xlu0 %v616
        %v635 = vpop.xlane.xlu0 %634
        %636 = vmin.xlane.f32.xlu0 %v617
        %v637 = vpop.xlane.xlu0 %636
        %638 = vmin.xlane.f32.xlu0 %v618
        %v639 = vpop.xlane.xlu0 %638
        %640 = vmin.xlane.f32.xlu0 %v619
        %v641 = vpop.xlane.xlu0 %640
        %642 = vmin.xlane.f32.xlu0 %v620
        %v643 = vpop.xlane.xlu0 %642
        %644 = vmin.xlane.f32.xlu0 %v621
        %v645 = vpop.xlane.xlu0 %644
        %646 = vmin.xlane.f32.xlu0 %v622
        %v647 = vpop.xlane.xlu0 %646
        %648 = vmin.xlane.f32.xlu0 %v623
        %v649 = vpop.xlane.xlu0 %648
        %650 = vmin.xlane.f32.xlu0 %v624
        %v651 = vpop.xlane.xlu0 %650
        %652 = vmin.xlane.f32.xlu0 %v625
        %v653 = vpop.xlane.xlu0 %652
        %654 = vmin.xlane.f32.xlu0 %v626
        %v655 = vpop.xlane.xlu0 %654
        %656 = vmin.xlane.f32.xlu0 %v627
        %v657 = vpop.xlane.xlu0 %656
        %658 = vmin.xlane.f32.xlu0 %v628
        %v659 = vpop.xlane.xlu0 %658
        %660 = vmin.xlane.f32.xlu0 %v629
        %v661 = vpop.xlane.xlu0 %660
        %vm662 = vcmp.eq.f32.partialorder %v346, %v631
        %vm663 = vcmp.eq.f32.partialorder %v346, %v633
        %vm664 = vcmp.eq.f32.partialorder %v346, %v635
        %vm665 = vcmp.eq.f32.partialorder %v346, %v637
        %vm666 = vcmp.eq.f32.partialorder %v346, %v639
        %vm667 = vcmp.eq.f32.partialorder %v346, %v641
        %vm668 = vcmp.eq.f32.partialorder %v346, %v643
        %vm669 = vcmp.eq.f32.partialorder %v346, %v645
        %vm670 = vcmp.eq.f32.partialorder %v346, %v647
        %vm671 = vcmp.eq.f32.partialorder %v346, %v649
        %vm672 = vcmp.eq.f32.partialorder %v346, %v651
        %vm673 = vcmp.eq.f32.partialorder %v346, %v653
        %vm674 = vcmp.eq.f32.partialorder %v346, %v655
        %vm675 = vcmp.eq.f32.partialorder %v346, %v657
        %vm676 = vcmp.eq.f32.partialorder %v346, %v659
        %vm677 = vcmp.eq.f32.partialorder %v346, %v661
        %v678 = vsel %vm662, 1, 0
        %v679 = vsel %vm663, 1, 0
        %v680 = vsel %vm664, 1, 0
        %v681 = vsel %vm665, 1, 0
        %v682 = vsel %vm666, 1, 0
        %v683 = vsel %vm667, 1, 0
        %v684 = vsel %vm668, 1, 0
        %v685 = vsel %vm669, 1, 0
        %v686 = vsel %vm670, 1, 0
        %v687 = vsel %vm671, 1, 0
        %v688 = vsel %vm672, 1, 0
        %v689 = vsel %vm673, 1, 0
        %v690 = vsel %vm674, 1, 0
        %v691 = vsel %vm675, 1, 0
        %v692 = vsel %vm676, 1, 0
        %v693 = vsel %vm677, 1, 0
        %v694 = vcvt.s32.f32 %v678
        %v695 = vcvt.s32.f32 %v679
        %v696 = vcvt.s32.f32 %v680
        %v697 = vcvt.s32.f32 %v681
        %v698 = vcvt.s32.f32 %v682
        %v699 = vcvt.s32.f32 %v683
        %v700 = vcvt.s32.f32 %v684
        %v701 = vcvt.s32.f32 %v685
        %v702 = vcvt.s32.f32 %v686
        %v703 = vcvt.s32.f32 %v687
        %v704 = vcvt.s32.f32 %v688
        %v705 = vcvt.s32.f32 %v689
        %v706 = vcvt.s32.f32 %v690
        %v707 = vcvt.s32.f32 %v691
        %v708 = vcvt.s32.f32 %v692
        %v709 = vcvt.s32.f32 %v693
        %v710 = vadd.f32 %v694, 0.0
        %v711 = vadd.f32 %v695, 0.0
        %v712 = vadd.f32 %v696, 0.0
        %v713 = vadd.f32 %v697, 0.0
        %v714 = vadd.f32 %v698, 0.0
        %v715 = vadd.f32 %v699, 0.0
        %v716 = vadd.f32 %v700, 0.0
        %v717 = vadd.f32 %v701, 0.0
        %v718 = vadd.f32 %v702, 0.0
        %v719 = vadd.f32 %v703, 0.0
        %v720 = vadd.f32 %v704, 0.0
        %v721 = vadd.f32 %v705, 0.0
        %v722 = vadd.f32 %v706, 0.0
        %v723 = vadd.f32 %v707, 0.0
        %v724 = vadd.f32 %v708, 0.0
        %v725 = vadd.f32 %v709, 0.0
        %v726 = vsel %vm662, -3.4028235e+38, %v550
        %v727 = vsel %vm663, -3.4028235e+38, %v551
        %v728 = vsel %vm664, -3.4028235e+38, %v552
        %v729 = vsel %vm665, -3.4028235e+38, %v553
        %v730 = vsel %vm666, -3.4028235e+38, %v554
        %v731 = vsel %vm667, -3.4028235e+38, %v555
        %v732 = vsel %vm668, -3.4028235e+38, %v556
        %v733 = vsel %vm669, -3.4028235e+38, %v557
        %v734 = vsel %vm670, -3.4028235e+38, %v558
        %v735 = vsel %vm671, -3.4028235e+38, %v559
        %v736 = vsel %vm672, -3.4028235e+38, %v560
        %v737 = vsel %vm673, -3.4028235e+38, %v561
        %v738 = vsel %vm674, -3.4028235e+38, %v562
        %v739 = vsel %vm675, -3.4028235e+38, %v563
        %v740 = vsel %vm676, -3.4028235e+38, %v564
        %v741 = vsel %vm677, -3.4028235e+38, %v565
        %742 = vmax.xlane.f32.xlu0 %v726
        %v743 = vpop.xlane.xlu0 %742
        %744 = vmax.xlane.f32.xlu0 %v727
        %v745 = vpop.xlane.xlu0 %744
        %746 = vmax.xlane.f32.xlu0 %v728
        %v747 = vpop.xlane.xlu0 %746
        %748 = vmax.xlane.f32.xlu0 %v729
        %v749 = vpop.xlane.xlu0 %748
        %750 = vmax.xlane.f32.xlu0 %v730
        %v751 = vpop.xlane.xlu0 %750
        %752 = vmax.xlane.f32.xlu0 %v731
        %v753 = vpop.xlane.xlu0 %752
        %754 = vmax.xlane.f32.xlu0 %v732
        %v755 = vpop.xlane.xlu0 %754
        %756 = vmax.xlane.f32.xlu0 %v733
        %v757 = vpop.xlane.xlu0 %756
        %758 = vmax.xlane.f32.xlu0 %v734
        %v759 = vpop.xlane.xlu0 %758
        %760 = vmax.xlane.f32.xlu0 %v735
        %v761 = vpop.xlane.xlu0 %760
        %762 = vmax.xlane.f32.xlu0 %v736
        %v763 = vpop.xlane.xlu0 %762
        %764 = vmax.xlane.f32.xlu0 %v737
        %v765 = vpop.xlane.xlu0 %764
        %766 = vmax.xlane.f32.xlu0 %v738
        %v767 = vpop.xlane.xlu0 %766
        %768 = vmax.xlane.f32.xlu0 %v739
        %v769 = vpop.xlane.xlu0 %768
        %770 = vmax.xlane.f32.xlu0 %v740
        %v771 = vpop.xlane.xlu0 %770
        %772 = vmax.xlane.f32.xlu0 %v741
        %v773 = vpop.xlane.xlu0 %772
        %vm774 = vcmp.ge.f32.partialorder %v726, %v743
        %vm775 = vcmp.ge.f32.partialorder %v727, %v745
        %vm776 = vcmp.ge.f32.partialorder %v728, %v747
        %vm777 = vcmp.ge.f32.partialorder %v729, %v749
        %vm778 = vcmp.ge.f32.partialorder %v730, %v751
        %vm779 = vcmp.ge.f32.partialorder %v731, %v753
        %vm780 = vcmp.ge.f32.partialorder %v732, %v755
        %vm781 = vcmp.ge.f32.partialorder %v733, %v757
        %vm782 = vcmp.ge.f32.partialorder %v734, %v759
        %vm783 = vcmp.ge.f32.partialorder %v735, %v761
        %vm784 = vcmp.ge.f32.partialorder %v736, %v763
        %vm785 = vcmp.ge.f32.partialorder %v737, %v765
        %vm786 = vcmp.ge.f32.partialorder %v738, %v767
        %vm787 = vcmp.ge.f32.partialorder %v739, %v769
        %vm788 = vcmp.ge.f32.partialorder %v740, %v771
        %vm789 = vcmp.ge.f32.partialorder %v741, %v773
        %v790 = vsel %vm774, %v346, 128.0
        %v791 = vsel %vm775, %v346, 128.0
        %v792 = vsel %vm776, %v346, 128.0
        %v793 = vsel %vm777, %v346, 128.0
        %v794 = vsel %vm778, %v346, 128.0
        %v795 = vsel %vm779, %v346, 128.0
        %v796 = vsel %vm780, %v346, 128.0
        %v797 = vsel %vm781, %v346, 128.0
        %v798 = vsel %vm782, %v346, 128.0
        %v799 = vsel %vm783, %v346, 128.0
        %v800 = vsel %vm784, %v346, 128.0
        %v801 = vsel %vm785, %v346, 128.0
        %v802 = vsel %vm786, %v346, 128.0
        %v803 = vsel %vm787, %v346, 128.0
        %v804 = vsel %vm788, %v346, 128.0
        %v805 = vsel %vm789, %v346, 128.0
        %806 = vmin.xlane.f32.xlu0 %v790
        %v807 = vpop.xlane.xlu0 %806
        %808 = vmin.xlane.f32.xlu0 %v791
        %v809 = vpop.xlane.xlu0 %808
        %810 = vmin.xlane.f32.xlu0 %v792
        %v811 = vpop.xlane.xlu0 %810
        %812 = vmin.xlane.f32.xlu0 %v793
        %v813 = vpop.xlane.xlu0 %812
        %814 = vmin.xlane.f32.xlu0 %v794
        %v815 = vpop.xlane.xlu0 %814
        %816 = vmin.xlane.f32.xlu0 %v795
        %v817 = vpop.xlane.xlu0 %816
        %818 = vmin.xlane.f32.xlu0 %v796
        %v819 = vpop.xlane.xlu0 %818
        %820 = vmin.xlane.f32.xlu0 %v797
        %v821 = vpop.xlane.xlu0 %820
        %822 = vmin.xlane.f32.xlu0 %v798
        %v823 = vpop.xlane.xlu0 %822
        %824 = vmin.xlane.f32.xlu0 %v799
        %v825 = vpop.xlane.xlu0 %824
        %826 = vmin.xlane.f32.xlu0 %v800
        %v827 = vpop.xlane.xlu0 %826
        %828 = vmin.xlane.f32.xlu0 %v801
        %v829 = vpop.xlane.xlu0 %828
        %830 = vmin.xlane.f32.xlu0 %v802
        %v831 = vpop.xlane.xlu0 %830
        %832 = vmin.xlane.f32.xlu0 %v803
        %v833 = vpop.xlane.xlu0 %832
        %834 = vmin.xlane.f32.xlu0 %v804
        %v835 = vpop.xlane.xlu0 %834
        %836 = vmin.xlane.f32.xlu0 %v805
        %v837 = vpop.xlane.xlu0 %836
        %vm838 = vcmp.eq.f32.partialorder %v346, %v807
        %vm839 = vcmp.eq.f32.partialorder %v346, %v809
        %vm840 = vcmp.eq.f32.partialorder %v346, %v811
        %vm841 = vcmp.eq.f32.partialorder %v346, %v813
        %vm842 = vcmp.eq.f32.partialorder %v346, %v815
        %vm843 = vcmp.eq.f32.partialorder %v346, %v817
        %vm844 = vcmp.eq.f32.partialorder %v346, %v819
        %vm845 = vcmp.eq.f32.partialorder %v346, %v821
        %vm846 = vcmp.eq.f32.partialorder %v346, %v823
        %vm847 = vcmp.eq.f32.partialorder %v346, %v825
        %vm848 = vcmp.eq.f32.partialorder %v346, %v827
        %vm849 = vcmp.eq.f32.partialorder %v346, %v829
        %vm850 = vcmp.eq.f32.partialorder %v346, %v831
        %vm851 = vcmp.eq.f32.partialorder %v346, %v833
        %vm852 = vcmp.eq.f32.partialorder %v346, %v835
        %vm853 = vcmp.eq.f32.partialorder %v346, %v837
        %v854 = vsel %vm838, 1, 0
        %v855 = vsel %vm839, 1, 0
        %v856 = vsel %vm840, 1, 0
        %v857 = vsel %vm841, 1, 0
        %v858 = vsel %vm842, 1, 0
        %v859 = vsel %vm843, 1, 0
        %v860 = vsel %vm844, 1, 0
        %v861 = vsel %vm845, 1, 0
        %v862 = vsel %vm846, 1, 0
        %v863 = vsel %vm847, 1, 0
        %v864 = vsel %vm848, 1, 0
        %v865 = vsel %vm849, 1, 0
        %v866 = vsel %vm850, 1, 0
        %v867 = vsel %vm851, 1, 0
        %v868 = vsel %vm852, 1, 0
        %v869 = vsel %vm853, 1, 0
        %v870 = vcvt.s32.f32 %v854
        %v871 = vcvt.s32.f32 %v855
        %v872 = vcvt.s32.f32 %v856
        %v873 = vcvt.s32.f32 %v857
        %v874 = vcvt.s32.f32 %v858
        %v875 = vcvt.s32.f32 %v859
        %v876 = vcvt.s32.f32 %v860
        %v877 = vcvt.s32.f32 %v861
        %v878 = vcvt.s32.f32 %v862
        %v879 = vcvt.s32.f32 %v863
        %v880 = vcvt.s32.f32 %v864
        %v881 = vcvt.s32.f32 %v865
        %v882 = vcvt.s32.f32 %v866
        %v883 = vcvt.s32.f32 %v867
        %v884 = vcvt.s32.f32 %v868
        %v885 = vcvt.s32.f32 %v869
        %v886 = vadd.f32 %v710, %v870
        %v887 = vadd.f32 %v711, %v871
        %v888 = vadd.f32 %v712, %v872
        %v889 = vadd.f32 %v713, %v873
        %v890 = vadd.f32 %v714, %v874
        %v891 = vadd.f32 %v715, %v875
        %v892 = vadd.f32 %v716, %v876
        %v893 = vadd.f32 %v717, %v877
        %v894 = vadd.f32 %v718, %v878
        %v895 = vadd.f32 %v719, %v879
        %v896 = vadd.f32 %v720, %v880
        %v897 = vadd.f32 %v721, %v881
        %v898 = vadd.f32 %v722, %v882
        %v899 = vadd.f32 %v723, %v883
        %v900 = vadd.f32 %v724, %v884
        %v901 = vadd.f32 %v725, %v885
        %v902 = vsel %vm838, -3.4028235e+38, %v726
        %v903 = vsel %vm839, -3.4028235e+38, %v727
        %v904 = vsel %vm840, -3.4028235e+38, %v728
        %v905 = vsel %vm841, -3.4028235e+38, %v729
        %v906 = vsel %vm842, -3.4028235e+38, %v730
        %v907 = vsel %vm843, -3.4028235e+38, %v731
        %v908 = vsel %vm844, -3.4028235e+38, %v732
        %v909 = vsel %vm845, -3.4028235e+38, %v733
        %v910 = vsel %vm846, -3.4028235e+38, %v734
        %v911 = vsel %vm847, -3.4028235e+38, %v735
        %v912 = vsel %vm848, -3.4028235e+38, %v736
        %v913 = vsel %vm849, -3.4028235e+38, %v737
        %v914 = vsel %vm850, -3.4028235e+38, %v738
        %v915 = vsel %vm851, -3.4028235e+38, %v739
        %v916 = vsel %vm852, -3.4028235e+38, %v740
        %v917 = vsel %vm853, -3.4028235e+38, %v741
        %918 = vmax.xlane.f32.xlu0 %v902
        %v919 = vpop.xlane.xlu0 %918
        %920 = vmax.xlane.f32.xlu0 %v903
        %v921 = vpop.xlane.xlu0 %920
        %922 = vmax.xlane.f32.xlu0 %v904
        %v923 = vpop.xlane.xlu0 %922
        %924 = vmax.xlane.f32.xlu0 %v905
        %v925 = vpop.xlane.xlu0 %924
        %926 = vmax.xlane.f32.xlu0 %v906
        %v927 = vpop.xlane.xlu0 %926
        %928 = vmax.xlane.f32.xlu0 %v907
        %v929 = vpop.xlane.xlu0 %928
        %930 = vmax.xlane.f32.xlu0 %v908
        %v931 = vpop.xlane.xlu0 %930
        %932 = vmax.xlane.f32.xlu0 %v909
        %v933 = vpop.xlane.xlu0 %932
        %934 = vmax.xlane.f32.xlu0 %v910
        %v935 = vpop.xlane.xlu0 %934
        %936 = vmax.xlane.f32.xlu0 %v911
        %v937 = vpop.xlane.xlu0 %936
        %938 = vmax.xlane.f32.xlu0 %v912
        %v939 = vpop.xlane.xlu0 %938
        %940 = vmax.xlane.f32.xlu0 %v913
        %v941 = vpop.xlane.xlu0 %940
        %942 = vmax.xlane.f32.xlu0 %v914
        %v943 = vpop.xlane.xlu0 %942
        %944 = vmax.xlane.f32.xlu0 %v915
        %v945 = vpop.xlane.xlu0 %944
        %946 = vmax.xlane.f32.xlu0 %v916
        %v947 = vpop.xlane.xlu0 %946
        %948 = vmax.xlane.f32.xlu0 %v917
        %v949 = vpop.xlane.xlu0 %948
        %vm950 = vcmp.ge.f32.partialorder %v902, %v919
        %vm951 = vcmp.ge.f32.partialorder %v903, %v921
        %vm952 = vcmp.ge.f32.partialorder %v904, %v923
        %vm953 = vcmp.ge.f32.partialorder %v905, %v925
        %vm954 = vcmp.ge.f32.partialorder %v906, %v927
        %vm955 = vcmp.ge.f32.partialorder %v907, %v929
        %vm956 = vcmp.ge.f32.partialorder %v908, %v931
        %vm957 = vcmp.ge.f32.partialorder %v909, %v933
        %vm958 = vcmp.ge.f32.partialorder %v910, %v935
        %vm959 = vcmp.ge.f32.partialorder %v911, %v937
        %vm960 = vcmp.ge.f32.partialorder %v912, %v939
        %vm961 = vcmp.ge.f32.partialorder %v913, %v941
        %vm962 = vcmp.ge.f32.partialorder %v914, %v943
        %vm963 = vcmp.ge.f32.partialorder %v915, %v945
        %vm964 = vcmp.ge.f32.partialorder %v916, %v947
        %vm965 = vcmp.ge.f32.partialorder %v917, %v949
        %v966 = vsel %vm950, %v346, 128.0
        %v967 = vsel %vm951, %v346, 128.0
        %v968 = vsel %vm952, %v346, 128.0
        %v969 = vsel %vm953, %v346, 128.0
        %v970 = vsel %vm954, %v346, 128.0
        %v971 = vsel %vm955, %v346, 128.0
        %v972 = vsel %vm956, %v346, 128.0
        %v973 = vsel %vm957, %v346, 128.0
        %v974 = vsel %vm958, %v346, 128.0
        %v975 = vsel %vm959, %v346, 128.0
        %v976 = vsel %vm960, %v346, 128.0
        %v977 = vsel %vm961, %v346, 128.0
        %v978 = vsel %vm962, %v346, 128.0
        %v979 = vsel %vm963, %v346, 128.0
        %v980 = vsel %vm964, %v346, 128.0
        %v981 = vsel %vm965, %v346, 128.0
        %982 = vmin.xlane.f32.xlu0 %v966
        %v983 = vpop.xlane.xlu0 %982
        %984 = vmin.xlane.f32.xlu0 %v967
        %v985 = vpop.xlane.xlu0 %984
        %986 = vmin.xlane.f32.xlu0 %v968
        %v987 = vpop.xlane.xlu0 %986
        %988 = vmin.xlane.f32.xlu0 %v969
        %v989 = vpop.xlane.xlu0 %988
        %990 = vmin.xlane.f32.xlu0 %v970
        %v991 = vpop.xlane.xlu0 %990
        %992 = vmin.xlane.f32.xlu0 %v971
        %v993 = vpop.xlane.xlu0 %992
        %994 = vmin.xlane.f32.xlu0 %v972
        %v995 = vpop.xlane.xlu0 %994
        %996 = vmin.xlane.f32.xlu0 %v973
        %v997 = vpop.xlane.xlu0 %996
        %998 = vmin.xlane.f32.xlu0 %v974
        %v999 = vpop.xlane.xlu0 %998
        %1000 = vmin.xlane.f32.xlu0 %v975
        %v1001 = vpop.xlane.xlu0 %1000
        %1002 = vmin.xlane.f32.xlu0 %v976
        %v1003 = vpop.xlane.xlu0 %1002
        %1004 = vmin.xlane.f32.xlu0 %v977
        %v1005 = vpop.xlane.xlu0 %1004
        %1006 = vmin.xlane.f32.xlu0 %v978
        %v1007 = vpop.xlane.xlu0 %1006
        %1008 = vmin.xlane.f32.xlu0 %v979
        %v1009 = vpop.xlane.xlu0 %1008
        %1010 = vmin.xlane.f32.xlu0 %v980
        %v1011 = vpop.xlane.xlu0 %1010
        %1012 = vmin.xlane.f32.xlu0 %v981
        %v1013 = vpop.xlane.xlu0 %1012
        %vm1014 = vcmp.eq.f32.partialorder %v346, %v983
        %vm1015 = vcmp.eq.f32.partialorder %v346, %v985
        %vm1016 = vcmp.eq.f32.partialorder %v346, %v987
        %vm1017 = vcmp.eq.f32.partialorder %v346, %v989
        %vm1018 = vcmp.eq.f32.partialorder %v346, %v991
        %vm1019 = vcmp.eq.f32.partialorder %v346, %v993
        %vm1020 = vcmp.eq.f32.partialorder %v346, %v995
        %vm1021 = vcmp.eq.f32.partialorder %v346, %v997
        %vm1022 = vcmp.eq.f32.partialorder %v346, %v999
        %vm1023 = vcmp.eq.f32.partialorder %v346, %v1001
        %vm1024 = vcmp.eq.f32.partialorder %v346, %v1003
        %vm1025 = vcmp.eq.f32.partialorder %v346, %v1005
        %vm1026 = vcmp.eq.f32.partialorder %v346, %v1007
        %vm1027 = vcmp.eq.f32.partialorder %v346, %v1009
        %vm1028 = vcmp.eq.f32.partialorder %v346, %v1011
        %vm1029 = vcmp.eq.f32.partialorder %v346, %v1013
        %v1030 = vsel %vm1014, 1, 0
        %v1031 = vsel %vm1015, 1, 0
        %v1032 = vsel %vm1016, 1, 0
        %v1033 = vsel %vm1017, 1, 0
        %v1034 = vsel %vm1018, 1, 0
        %v1035 = vsel %vm1019, 1, 0
        %v1036 = vsel %vm1020, 1, 0
        %v1037 = vsel %vm1021, 1, 0
        %v1038 = vsel %vm1022, 1, 0
        %v1039 = vsel %vm1023, 1, 0
        %v1040 = vsel %vm1024, 1, 0
        %v1041 = vsel %vm1025, 1, 0
        %v1042 = vsel %vm1026, 1, 0
        %v1043 = vsel %vm1027, 1, 0
        %v1044 = vsel %vm1028, 1, 0
        %v1045 = vsel %vm1029, 1, 0
        %v1046 = vcvt.s32.f32 %v1030
        %v1047 = vcvt.s32.f32 %v1031
        %v1048 = vcvt.s32.f32 %v1032
        %v1049 = vcvt.s32.f32 %v1033
        %v1050 = vcvt.s32.f32 %v1034
        %v1051 = vcvt.s32.f32 %v1035
        %v1052 = vcvt.s32.f32 %v1036
        %v1053 = vcvt.s32.f32 %v1037
        %v1054 = vcvt.s32.f32 %v1038
        %v1055 = vcvt.s32.f32 %v1039
        %v1056 = vcvt.s32.f32 %v1040
        %v1057 = vcvt.s32.f32 %v1041
        %v1058 = vcvt.s32.f32 %v1042
        %v1059 = vcvt.s32.f32 %v1043
        %v1060 = vcvt.s32.f32 %v1044
        %v1061 = vcvt.s32.f32 %v1045
        %v1062 = vadd.f32 %v886, %v1046
        %v1063 = vadd.f32 %v887, %v1047
        %v1064 = vadd.f32 %v888, %v1048
        %v1065 = vadd.f32 %v889, %v1049
        %v1066 = vadd.f32 %v890, %v1050
        %v1067 = vadd.f32 %v891, %v1051
        %v1068 = vadd.f32 %v892, %v1052
        %v1069 = vadd.f32 %v893, %v1053
        %v1070 = vadd.f32 %v894, %v1054
        %v1071 = vadd.f32 %v895, %v1055
        %v1072 = vadd.f32 %v896, %v1056
        %v1073 = vadd.f32 %v897, %v1057
        %v1074 = vadd.f32 %v898, %v1058
        %v1075 = vadd.f32 %v899, %v1059
        %v1076 = vadd.f32 %v900, %v1060
        %v1077 = vadd.f32 %v901, %v1061
        %v1078 = vsel %vm1014, -3.4028235e+38, %v902
        %v1079 = vsel %vm1015, -3.4028235e+38, %v903
        %v1080 = vsel %vm1016, -3.4028235e+38, %v904
        %v1081 = vsel %vm1017, -3.4028235e+38, %v905
        %v1082 = vsel %vm1018, -3.4028235e+38, %v906
        %v1083 = vsel %vm1019, -3.4028235e+38, %v907
        %v1084 = vsel %vm1020, -3.4028235e+38, %v908
        %v1085 = vsel %vm1021, -3.4028235e+38, %v909
        %v1086 = vsel %vm1022, -3.4028235e+38, %v910
        %v1087 = vsel %vm1023, -3.4028235e+38, %v911
        %v1088 = vsel %vm1024, -3.4028235e+38, %v912
        %v1089 = vsel %vm1025, -3.4028235e+38, %v913
        %v1090 = vsel %vm1026, -3.4028235e+38, %v914
        %v1091 = vsel %vm1027, -3.4028235e+38, %v915
        %v1092 = vsel %vm1028, -3.4028235e+38, %v916
        %v1093 = vsel %vm1029, -3.4028235e+38, %v917
        %1094 = vmax.xlane.f32.xlu0 %v1078
        %v1095 = vpop.xlane.xlu0 %1094
        %1096 = vmax.xlane.f32.xlu0 %v1079
        %v1097 = vpop.xlane.xlu0 %1096
        %1098 = vmax.xlane.f32.xlu0 %v1080
        %v1099 = vpop.xlane.xlu0 %1098
        %1100 = vmax.xlane.f32.xlu0 %v1081
        %v1101 = vpop.xlane.xlu0 %1100
        %1102 = vmax.xlane.f32.xlu0 %v1082
        %v1103 = vpop.xlane.xlu0 %1102
        %1104 = vmax.xlane.f32.xlu0 %v1083
        %v1105 = vpop.xlane.xlu0 %1104
        %1106 = vmax.xlane.f32.xlu0 %v1084
        %v1107 = vpop.xlane.xlu0 %1106
        %1108 = vmax.xlane.f32.xlu0 %v1085
        %v1109 = vpop.xlane.xlu0 %1108
        %1110 = vmax.xlane.f32.xlu0 %v1086
        %v1111 = vpop.xlane.xlu0 %1110
        %1112 = vmax.xlane.f32.xlu0 %v1087
        %v1113 = vpop.xlane.xlu0 %1112
        %1114 = vmax.xlane.f32.xlu0 %v1088
        %v1115 = vpop.xlane.xlu0 %1114
        %1116 = vmax.xlane.f32.xlu0 %v1089
        %v1117 = vpop.xlane.xlu0 %1116
        %1118 = vmax.xlane.f32.xlu0 %v1090
        %v1119 = vpop.xlane.xlu0 %1118
        %1120 = vmax.xlane.f32.xlu0 %v1091
        %v1121 = vpop.xlane.xlu0 %1120
        %1122 = vmax.xlane.f32.xlu0 %v1092
        %v1123 = vpop.xlane.xlu0 %1122
        %1124 = vmax.xlane.f32.xlu0 %v1093
        %v1125 = vpop.xlane.xlu0 %1124
        %vm1126 = vcmp.ge.f32.partialorder %v1078, %v1095
        %vm1127 = vcmp.ge.f32.partialorder %v1079, %v1097
        %vm1128 = vcmp.ge.f32.partialorder %v1080, %v1099
        %vm1129 = vcmp.ge.f32.partialorder %v1081, %v1101
        %vm1130 = vcmp.ge.f32.partialorder %v1082, %v1103
        %vm1131 = vcmp.ge.f32.partialorder %v1083, %v1105
        %vm1132 = vcmp.ge.f32.partialorder %v1084, %v1107
        %vm1133 = vcmp.ge.f32.partialorder %v1085, %v1109
        %vm1134 = vcmp.ge.f32.partialorder %v1086, %v1111
        %vm1135 = vcmp.ge.f32.partialorder %v1087, %v1113
        %vm1136 = vcmp.ge.f32.partialorder %v1088, %v1115
        %vm1137 = vcmp.ge.f32.partialorder %v1089, %v1117
        %vm1138 = vcmp.ge.f32.partialorder %v1090, %v1119
        %vm1139 = vcmp.ge.f32.partialorder %v1091, %v1121
        %vm1140 = vcmp.ge.f32.partialorder %v1092, %v1123
        %vm1141 = vcmp.ge.f32.partialorder %v1093, %v1125
        %v1142 = vsel %vm1126, %v346, 128.0
        %v1143 = vsel %vm1127, %v346, 128.0
        %v1144 = vsel %vm1128, %v346, 128.0
        %v1145 = vsel %vm1129, %v346, 128.0
        %v1146 = vsel %vm1130, %v346, 128.0
        %v1147 = vsel %vm1131, %v346, 128.0
        %v1148 = vsel %vm1132, %v346, 128.0
        %v1149 = vsel %vm1133, %v346, 128.0
        %v1150 = vsel %vm1134, %v346, 128.0
        %v1151 = vsel %vm1135, %v346, 128.0
        %v1152 = vsel %vm1136, %v346, 128.0
        %v1153 = vsel %vm1137, %v346, 128.0
        %v1154 = vsel %vm1138, %v346, 128.0
        %v1155 = vsel %vm1139, %v346, 128.0
        %v1156 = vsel %vm1140, %v346, 128.0
        %v1157 = vsel %vm1141, %v346, 128.0
        %1158 = vmin.xlane.f32.xlu0 %v1142
        %v1159 = vpop.xlane.xlu0 %1158
        %1160 = vmin.xlane.f32.xlu0 %v1143
        %v1161 = vpop.xlane.xlu0 %1160
        %1162 = vmin.xlane.f32.xlu0 %v1144
        %v1163 = vpop.xlane.xlu0 %1162
        %1164 = vmin.xlane.f32.xlu0 %v1145
        %v1165 = vpop.xlane.xlu0 %1164
        %1166 = vmin.xlane.f32.xlu0 %v1146
        %v1167 = vpop.xlane.xlu0 %1166
        %1168 = vmin.xlane.f32.xlu0 %v1147
        %v1169 = vpop.xlane.xlu0 %1168
        %1170 = vmin.xlane.f32.xlu0 %v1148
        %v1171 = vpop.xlane.xlu0 %1170
        %1172 = vmin.xlane.f32.xlu0 %v1149
        %v1173 = vpop.xlane.xlu0 %1172
        %1174 = vmin.xlane.f32.xlu0 %v1150
        %v1175 = vpop.xlane.xlu0 %1174
        %1176 = vmin.xlane.f32.xlu0 %v1151
        %v1177 = vpop.xlane.xlu0 %1176
        %1178 = vmin.xlane.f32.xlu0 %v1152
        %v1179 = vpop.xlane.xlu0 %1178
        %1180 = vmin.xlane.f32.xlu0 %v1153
        %v1181 = vpop.xlane.xlu0 %1180
        %1182 = vmin.xlane.f32.xlu0 %v1154
        %v1183 = vpop.xlane.xlu0 %1182
        %1184 = vmin.xlane.f32.xlu0 %v1155
        %v1185 = vpop.xlane.xlu0 %1184
        %1186 = vmin.xlane.f32.xlu0 %v1156
        %v1187 = vpop.xlane.xlu0 %1186
        %1188 = vmin.xlane.f32.xlu0 %v1157
        %v1189 = vpop.xlane.xlu0 %1188
        %vm1190 = vcmp.eq.f32.partialorder %v346, %v1159
        %vm1191 = vcmp.eq.f32.partialorder %v346, %v1161
        %vm1192 = vcmp.eq.f32.partialorder %v346, %v1163
        %vm1193 = vcmp.eq.f32.partialorder %v346, %v1165
        %vm1194 = vcmp.eq.f32.partialorder %v346, %v1167
        %vm1195 = vcmp.eq.f32.partialorder %v346, %v1169
        %vm1196 = vcmp.eq.f32.partialorder %v346, %v1171
        %vm1197 = vcmp.eq.f32.partialorder %v346, %v1173
        %vm1198 = vcmp.eq.f32.partialorder %v346, %v1175
        %vm1199 = vcmp.eq.f32.partialorder %v346, %v1177
        %vm1200 = vcmp.eq.f32.partialorder %v346, %v1179
        %vm1201 = vcmp.eq.f32.partialorder %v346, %v1181
        %vm1202 = vcmp.eq.f32.partialorder %v346, %v1183
        %vm1203 = vcmp.eq.f32.partialorder %v346, %v1185
        %vm1204 = vcmp.eq.f32.partialorder %v346, %v1187
        %vm1205 = vcmp.eq.f32.partialorder %v346, %v1189
        %v1206 = vsel %vm1190, 1, 0
        %v1207 = vsel %vm1191, 1, 0
        %v1208 = vsel %vm1192, 1, 0
        %v1209 = vsel %vm1193, 1, 0
        %v1210 = vsel %vm1194, 1, 0
        %v1211 = vsel %vm1195, 1, 0
        %v1212 = vsel %vm1196, 1, 0
        %v1213 = vsel %vm1197, 1, 0
        %v1214 = vsel %vm1198, 1, 0
        %v1215 = vsel %vm1199, 1, 0
        %v1216 = vsel %vm1200, 1, 0
        %v1217 = vsel %vm1201, 1, 0
        %v1218 = vsel %vm1202, 1, 0
        %v1219 = vsel %vm1203, 1, 0
        %v1220 = vsel %vm1204, 1, 0
        %v1221 = vsel %vm1205, 1, 0
        %v1222 = vcvt.s32.f32 %v1206
        %v1223 = vcvt.s32.f32 %v1207
        %v1224 = vcvt.s32.f32 %v1208
        %v1225 = vcvt.s32.f32 %v1209
        %v1226 = vcvt.s32.f32 %v1210
        %v1227 = vcvt.s32.f32 %v1211
        %v1228 = vcvt.s32.f32 %v1212
        %v1229 = vcvt.s32.f32 %v1213
        %v1230 = vcvt.s32.f32 %v1214
        %v1231 = vcvt.s32.f32 %v1215
        %v1232 = vcvt.s32.f32 %v1216
        %v1233 = vcvt.s32.f32 %v1217
        %v1234 = vcvt.s32.f32 %v1218
        %v1235 = vcvt.s32.f32 %v1219
        %v1236 = vcvt.s32.f32 %v1220
        %v1237 = vcvt.s32.f32 %v1221
        %v1238 = vadd.f32 %v1062, %v1222
        %v1239 = vadd.f32 %v1063, %v1223
        %v1240 = vadd.f32 %v1064, %v1224
        %v1241 = vadd.f32 %v1065, %v1225
        %v1242 = vadd.f32 %v1066, %v1226
        %v1243 = vadd.f32 %v1067, %v1227
        %v1244 = vadd.f32 %v1068, %v1228
        %v1245 = vadd.f32 %v1069, %v1229
        %v1246 = vadd.f32 %v1070, %v1230
        %v1247 = vadd.f32 %v1071, %v1231
        %v1248 = vadd.f32 %v1072, %v1232
        %v1249 = vadd.f32 %v1073, %v1233
        %v1250 = vadd.f32 %v1074, %v1234
        %v1251 = vadd.f32 %v1075, %v1235
        %v1252 = vadd.f32 %v1076, %v1236
        %v1253 = vadd.f32 %v1077, %v1237
        %v1254 = vsel %vm1190, -3.4028235e+38, %v1078
        %v1255 = vsel %vm1191, -3.4028235e+38, %v1079
        %v1256 = vsel %vm1192, -3.4028235e+38, %v1080
        %v1257 = vsel %vm1193, -3.4028235e+38, %v1081
        %v1258 = vsel %vm1194, -3.4028235e+38, %v1082
        %v1259 = vsel %vm1195, -3.4028235e+38, %v1083
        %v1260 = vsel %vm1196, -3.4028235e+38, %v1084
        %v1261 = vsel %vm1197, -3.4028235e+38, %v1085
        %v1262 = vsel %vm1198, -3.4028235e+38, %v1086
        %v1263 = vsel %vm1199, -3.4028235e+38, %v1087
        %v1264 = vsel %vm1200, -3.4028235e+38, %v1088
        %v1265 = vsel %vm1201, -3.4028235e+38, %v1089
        %v1266 = vsel %vm1202, -3.4028235e+38, %v1090
        %v1267 = vsel %vm1203, -3.4028235e+38, %v1091
        %v1268 = vsel %vm1204, -3.4028235e+38, %v1092
        %v1269 = vsel %vm1205, -3.4028235e+38, %v1093
        %1270 = vmax.xlane.f32.xlu0 %v1254
        %v1271 = vpop.xlane.xlu0 %1270
        %1272 = vmax.xlane.f32.xlu0 %v1255
        %v1273 = vpop.xlane.xlu0 %1272
        %1274 = vmax.xlane.f32.xlu0 %v1256
        %v1275 = vpop.xlane.xlu0 %1274
        %1276 = vmax.xlane.f32.xlu0 %v1257
        %v1277 = vpop.xlane.xlu0 %1276
        %1278 = vmax.xlane.f32.xlu0 %v1258
        %v1279 = vpop.xlane.xlu0 %1278
        %1280 = vmax.xlane.f32.xlu0 %v1259
        %v1281 = vpop.xlane.xlu0 %1280
        %1282 = vmax.xlane.f32.xlu0 %v1260
        %v1283 = vpop.xlane.xlu0 %1282
        %1284 = vmax.xlane.f32.xlu0 %v1261
        %v1285 = vpop.xlane.xlu0 %1284
        %1286 = vmax.xlane.f32.xlu0 %v1262
        %v1287 = vpop.xlane.xlu0 %1286
        %1288 = vmax.xlane.f32.xlu0 %v1263
        %v1289 = vpop.xlane.xlu0 %1288
        %1290 = vmax.xlane.f32.xlu0 %v1264
        %v1291 = vpop.xlane.xlu0 %1290
        %1292 = vmax.xlane.f32.xlu0 %v1265
        %v1293 = vpop.xlane.xlu0 %1292
        %1294 = vmax.xlane.f32.xlu0 %v1266
        %v1295 = vpop.xlane.xlu0 %1294
        %1296 = vmax.xlane.f32.xlu0 %v1267
        %v1297 = vpop.xlane.xlu0 %1296
        %1298 = vmax.xlane.f32.xlu0 %v1268
        %v1299 = vpop.xlane.xlu0 %1298
        %1300 = vmax.xlane.f32.xlu0 %v1269
        %v1301 = vpop.xlane.xlu0 %1300
        %vm1302 = vcmp.ge.f32.partialorder %v1254, %v1271
        %vm1303 = vcmp.ge.f32.partialorder %v1255, %v1273
        %vm1304 = vcmp.ge.f32.partialorder %v1256, %v1275
        %vm1305 = vcmp.ge.f32.partialorder %v1257, %v1277
        %vm1306 = vcmp.ge.f32.partialorder %v1258, %v1279
        %vm1307 = vcmp.ge.f32.partialorder %v1259, %v1281
        %vm1308 = vcmp.ge.f32.partialorder %v1260, %v1283
        %vm1309 = vcmp.ge.f32.partialorder %v1261, %v1285
        %vm1310 = vcmp.ge.f32.partialorder %v1262, %v1287
        %vm1311 = vcmp.ge.f32.partialorder %v1263, %v1289
        %vm1312 = vcmp.ge.f32.partialorder %v1264, %v1291
        %vm1313 = vcmp.ge.f32.partialorder %v1265, %v1293
        %vm1314 = vcmp.ge.f32.partialorder %v1266, %v1295
        %vm1315 = vcmp.ge.f32.partialorder %v1267, %v1297
        %vm1316 = vcmp.ge.f32.partialorder %v1268, %v1299
        %vm1317 = vcmp.ge.f32.partialorder %v1269, %v1301
        %v1318 = vsel %vm1302, %v346, 128.0
        %v1319 = vsel %vm1303, %v346, 128.0
        %v1320 = vsel %vm1304, %v346, 128.0
        %v1321 = vsel %vm1305, %v346, 128.0
        %v1322 = vsel %vm1306, %v346, 128.0
        %v1323 = vsel %vm1307, %v346, 128.0
        %v1324 = vsel %vm1308, %v346, 128.0
        %v1325 = vsel %vm1309, %v346, 128.0
        %v1326 = vsel %vm1310, %v346, 128.0
        %v1327 = vsel %vm1311, %v346, 128.0
        %v1328 = vsel %vm1312, %v346, 128.0
        %v1329 = vsel %vm1313, %v346, 128.0
        %v1330 = vsel %vm1314, %v346, 128.0
        %v1331 = vsel %vm1315, %v346, 128.0
        %v1332 = vsel %vm1316, %v346, 128.0
        %v1333 = vsel %vm1317, %v346, 128.0
        %1334 = vmin.xlane.f32.xlu0 %v1318
        %v1335 = vpop.xlane.xlu0 %1334
        %1336 = vmin.xlane.f32.xlu0 %v1319
        %v1337 = vpop.xlane.xlu0 %1336
        %1338 = vmin.xlane.f32.xlu0 %v1320
        %v1339 = vpop.xlane.xlu0 %1338
        %1340 = vmin.xlane.f32.xlu0 %v1321
        %v1341 = vpop.xlane.xlu0 %1340
        %1342 = vmin.xlane.f32.xlu0 %v1322
        %v1343 = vpop.xlane.xlu0 %1342
        %1344 = vmin.xlane.f32.xlu0 %v1323
        %v1345 = vpop.xlane.xlu0 %1344
        %1346 = vmin.xlane.f32.xlu0 %v1324
        %v1347 = vpop.xlane.xlu0 %1346
        %1348 = vmin.xlane.f32.xlu0 %v1325
        %v1349 = vpop.xlane.xlu0 %1348
        %1350 = vmin.xlane.f32.xlu0 %v1326
        %v1351 = vpop.xlane.xlu0 %1350
        %1352 = vmin.xlane.f32.xlu0 %v1327
        %v1353 = vpop.xlane.xlu0 %1352
        %1354 = vmin.xlane.f32.xlu0 %v1328
        %v1355 = vpop.xlane.xlu0 %1354
        %1356 = vmin.xlane.f32.xlu0 %v1329
        %v1357 = vpop.xlane.xlu0 %1356
        %1358 = vmin.xlane.f32.xlu0 %v1330
        %v1359 = vpop.xlane.xlu0 %1358
        %1360 = vmin.xlane.f32.xlu0 %v1331
        %v1361 = vpop.xlane.xlu0 %1360
        %1362 = vmin.xlane.f32.xlu0 %v1332
        %v1363 = vpop.xlane.xlu0 %1362
        %1364 = vmin.xlane.f32.xlu0 %v1333
        %v1365 = vpop.xlane.xlu0 %1364
        %vm1366 = vcmp.eq.f32.partialorder %v346, %v1335
        %vm1367 = vcmp.eq.f32.partialorder %v346, %v1337
        %vm1368 = vcmp.eq.f32.partialorder %v346, %v1339
        %vm1369 = vcmp.eq.f32.partialorder %v346, %v1341
        %vm1370 = vcmp.eq.f32.partialorder %v346, %v1343
        %vm1371 = vcmp.eq.f32.partialorder %v346, %v1345
        %vm1372 = vcmp.eq.f32.partialorder %v346, %v1347
        %vm1373 = vcmp.eq.f32.partialorder %v346, %v1349
        %vm1374 = vcmp.eq.f32.partialorder %v346, %v1351
        %vm1375 = vcmp.eq.f32.partialorder %v346, %v1353
        %vm1376 = vcmp.eq.f32.partialorder %v346, %v1355
        %vm1377 = vcmp.eq.f32.partialorder %v346, %v1357
        %vm1378 = vcmp.eq.f32.partialorder %v346, %v1359
        %vm1379 = vcmp.eq.f32.partialorder %v346, %v1361
        %vm1380 = vcmp.eq.f32.partialorder %v346, %v1363
        %vm1381 = vcmp.eq.f32.partialorder %v346, %v1365
        %v1382 = vsel %vm1366, 1, 0
        %v1383 = vsel %vm1367, 1, 0
        %v1384 = vsel %vm1368, 1, 0
        %v1385 = vsel %vm1369, 1, 0
        %v1386 = vsel %vm1370, 1, 0
        %v1387 = vsel %vm1371, 1, 0
        %v1388 = vsel %vm1372, 1, 0
        %v1389 = vsel %vm1373, 1, 0
        %v1390 = vsel %vm1374, 1, 0
        %v1391 = vsel %vm1375, 1, 0
        %v1392 = vsel %vm1376, 1, 0
        %v1393 = vsel %vm1377, 1, 0
        %v1394 = vsel %vm1378, 1, 0
        %v1395 = vsel %vm1379, 1, 0
        %v1396 = vsel %vm1380, 1, 0
        %v1397 = vsel %vm1381, 1, 0
        %v1398 = vcvt.s32.f32 %v1382
        %v1399 = vcvt.s32.f32 %v1383
        %v1400 = vcvt.s32.f32 %v1384
        %v1401 = vcvt.s32.f32 %v1385
        %v1402 = vcvt.s32.f32 %v1386
        %v1403 = vcvt.s32.f32 %v1387
        %v1404 = vcvt.s32.f32 %v1388
        %v1405 = vcvt.s32.f32 %v1389
        %v1406 = vcvt.s32.f32 %v1390
        %v1407 = vcvt.s32.f32 %v1391
        %v1408 = vcvt.s32.f32 %v1392
        %v1409 = vcvt.s32.f32 %v1393
        %v1410 = vcvt.s32.f32 %v1394
        %v1411 = vcvt.s32.f32 %v1395
        %v1412 = vcvt.s32.f32 %v1396
        %v1413 = vcvt.s32.f32 %v1397
        %v1414 = vadd.f32 %v1238, %v1398
        %v1415 = vadd.f32 %v1239, %v1399
        %v1416 = vadd.f32 %v1240, %v1400
        %v1417 = vadd.f32 %v1241, %v1401
        %v1418 = vadd.f32 %v1242, %v1402
        %v1419 = vadd.f32 %v1243, %v1403
        %v1420 = vadd.f32 %v1244, %v1404
        %v1421 = vadd.f32 %v1245, %v1405
        %v1422 = vadd.f32 %v1246, %v1406
        %v1423 = vadd.f32 %v1247, %v1407
        %v1424 = vadd.f32 %v1248, %v1408
        %v1425 = vadd.f32 %v1249, %v1409
        %v1426 = vadd.f32 %v1250, %v1410
        %v1427 = vadd.f32 %v1251, %v1411
        %v1428 = vadd.f32 %v1252, %v1412
        %v1429 = vadd.f32 %v1253, %v1413
        %v1430 = vsel %vm1366, -3.4028235e+38, %v1254
        %v1431 = vsel %vm1367, -3.4028235e+38, %v1255
        %v1432 = vsel %vm1368, -3.4028235e+38, %v1256
        %v1433 = vsel %vm1369, -3.4028235e+38, %v1257
        %v1434 = vsel %vm1370, -3.4028235e+38, %v1258
        %v1435 = vsel %vm1371, -3.4028235e+38, %v1259
        %v1436 = vsel %vm1372, -3.4028235e+38, %v1260
        %v1437 = vsel %vm1373, -3.4028235e+38, %v1261
        %v1438 = vsel %vm1374, -3.4028235e+38, %v1262
        %v1439 = vsel %vm1375, -3.4028235e+38, %v1263
        %v1440 = vsel %vm1376, -3.4028235e+38, %v1264
        %v1441 = vsel %vm1377, -3.4028235e+38, %v1265
        %v1442 = vsel %vm1378, -3.4028235e+38, %v1266
        %v1443 = vsel %vm1379, -3.4028235e+38, %v1267
        %v1444 = vsel %vm1380, -3.4028235e+38, %v1268
        %v1445 = vsel %vm1381, -3.4028235e+38, %v1269
        %1446 = vmax.xlane.f32.xlu0 %v1430
        %v1447 = vpop.xlane.xlu0 %1446
        %1448 = vmax.xlane.f32.xlu0 %v1431
        %v1449 = vpop.xlane.xlu0 %1448
        %1450 = vmax.xlane.f32.xlu0 %v1432
        %v1451 = vpop.xlane.xlu0 %1450
        %1452 = vmax.xlane.f32.xlu0 %v1433
        %v1453 = vpop.xlane.xlu0 %1452
        %1454 = vmax.xlane.f32.xlu0 %v1434
        %v1455 = vpop.xlane.xlu0 %1454
        %1456 = vmax.xlane.f32.xlu0 %v1435
        %v1457 = vpop.xlane.xlu0 %1456
        %1458 = vmax.xlane.f32.xlu0 %v1436
        %v1459 = vpop.xlane.xlu0 %1458
        %1460 = vmax.xlane.f32.xlu0 %v1437
        %v1461 = vpop.xlane.xlu0 %1460
        %1462 = vmax.xlane.f32.xlu0 %v1438
        %v1463 = vpop.xlane.xlu0 %1462
        %1464 = vmax.xlane.f32.xlu0 %v1439
        %v1465 = vpop.xlane.xlu0 %1464
        %1466 = vmax.xlane.f32.xlu0 %v1440
        %v1467 = vpop.xlane.xlu0 %1466
        %1468 = vmax.xlane.f32.xlu0 %v1441
        %v1469 = vpop.xlane.xlu0 %1468
        %1470 = vmax.xlane.f32.xlu0 %v1442
        %v1471 = vpop.xlane.xlu0 %1470
        %1472 = vmax.xlane.f32.xlu0 %v1443
        %v1473 = vpop.xlane.xlu0 %1472
        %1474 = vmax.xlane.f32.xlu0 %v1444
        %v1475 = vpop.xlane.xlu0 %1474
        %1476 = vmax.xlane.f32.xlu0 %v1445
        %v1477 = vpop.xlane.xlu0 %1476
        %vm1478 = vcmp.ge.f32.partialorder %v1430, %v1447
        %vm1479 = vcmp.ge.f32.partialorder %v1431, %v1449
        %vm1480 = vcmp.ge.f32.partialorder %v1432, %v1451
        %vm1481 = vcmp.ge.f32.partialorder %v1433, %v1453
        %vm1482 = vcmp.ge.f32.partialorder %v1434, %v1455
        %vm1483 = vcmp.ge.f32.partialorder %v1435, %v1457
        %vm1484 = vcmp.ge.f32.partialorder %v1436, %v1459
        %vm1485 = vcmp.ge.f32.partialorder %v1437, %v1461
        %vm1486 = vcmp.ge.f32.partialorder %v1438, %v1463
        %vm1487 = vcmp.ge.f32.partialorder %v1439, %v1465
        %vm1488 = vcmp.ge.f32.partialorder %v1440, %v1467
        %vm1489 = vcmp.ge.f32.partialorder %v1441, %v1469
        %vm1490 = vcmp.ge.f32.partialorder %v1442, %v1471
        %vm1491 = vcmp.ge.f32.partialorder %v1443, %v1473
        %vm1492 = vcmp.ge.f32.partialorder %v1444, %v1475
        %vm1493 = vcmp.ge.f32.partialorder %v1445, %v1477
        %v1494 = vsel %vm1478, %v346, 128.0
        %v1495 = vsel %vm1479, %v346, 128.0
        %v1496 = vsel %vm1480, %v346, 128.0
        %v1497 = vsel %vm1481, %v346, 128.0
        %v1498 = vsel %vm1482, %v346, 128.0
        %v1499 = vsel %vm1483, %v346, 128.0
        %v1500 = vsel %vm1484, %v346, 128.0
        %v1501 = vsel %vm1485, %v346, 128.0
        %v1502 = vsel %vm1486, %v346, 128.0
        %v1503 = vsel %vm1487, %v346, 128.0
        %v1504 = vsel %vm1488, %v346, 128.0
        %v1505 = vsel %vm1489, %v346, 128.0
        %v1506 = vsel %vm1490, %v346, 128.0
        %v1507 = vsel %vm1491, %v346, 128.0
        %v1508 = vsel %vm1492, %v346, 128.0
        %v1509 = vsel %vm1493, %v346, 128.0
        %1510 = vmin.xlane.f32.xlu0 %v1494
        %v1511 = vpop.xlane.xlu0 %1510
        %1512 = vmin.xlane.f32.xlu0 %v1495
        %v1513 = vpop.xlane.xlu0 %1512
        %1514 = vmin.xlane.f32.xlu0 %v1496
        %v1515 = vpop.xlane.xlu0 %1514
        %1516 = vmin.xlane.f32.xlu0 %v1497
        %v1517 = vpop.xlane.xlu0 %1516
        %1518 = vmin.xlane.f32.xlu0 %v1498
        %v1519 = vpop.xlane.xlu0 %1518
        %1520 = vmin.xlane.f32.xlu0 %v1499
        %v1521 = vpop.xlane.xlu0 %1520
        %1522 = vmin.xlane.f32.xlu0 %v1500
        %v1523 = vpop.xlane.xlu0 %1522
        %1524 = vmin.xlane.f32.xlu0 %v1501
        %v1525 = vpop.xlane.xlu0 %1524
        %1526 = vmin.xlane.f32.xlu0 %v1502
        %v1527 = vpop.xlane.xlu0 %1526
        %1528 = vmin.xlane.f32.xlu0 %v1503
        %v1529 = vpop.xlane.xlu0 %1528
        %1530 = vmin.xlane.f32.xlu0 %v1504
        %v1531 = vpop.xlane.xlu0 %1530
        %1532 = vmin.xlane.f32.xlu0 %v1505
        %v1533 = vpop.xlane.xlu0 %1532
        %1534 = vmin.xlane.f32.xlu0 %v1506
        %v1535 = vpop.xlane.xlu0 %1534
        %1536 = vmin.xlane.f32.xlu0 %v1507
        %v1537 = vpop.xlane.xlu0 %1536
        %1538 = vmin.xlane.f32.xlu0 %v1508
        %v1539 = vpop.xlane.xlu0 %1538
        %1540 = vmin.xlane.f32.xlu0 %v1509
        %v1541 = vpop.xlane.xlu0 %1540
        %vm1542 = vcmp.eq.f32.partialorder %v346, %v1511
        %vm1543 = vcmp.eq.f32.partialorder %v346, %v1513
        %vm1544 = vcmp.eq.f32.partialorder %v346, %v1515
        %vm1545 = vcmp.eq.f32.partialorder %v346, %v1517
        %vm1546 = vcmp.eq.f32.partialorder %v346, %v1519
        %vm1547 = vcmp.eq.f32.partialorder %v346, %v1521
        %vm1548 = vcmp.eq.f32.partialorder %v346, %v1523
        %vm1549 = vcmp.eq.f32.partialorder %v346, %v1525
        %vm1550 = vcmp.eq.f32.partialorder %v346, %v1527
        %vm1551 = vcmp.eq.f32.partialorder %v346, %v1529
        %vm1552 = vcmp.eq.f32.partialorder %v346, %v1531
        %vm1553 = vcmp.eq.f32.partialorder %v346, %v1533
        %vm1554 = vcmp.eq.f32.partialorder %v346, %v1535
        %vm1555 = vcmp.eq.f32.partialorder %v346, %v1537
        %vm1556 = vcmp.eq.f32.partialorder %v346, %v1539
        %vm1557 = vcmp.eq.f32.partialorder %v346, %v1541
        %v1558 = vsel %vm1542, 1, 0
        %v1559 = vsel %vm1543, 1, 0
        %v1560 = vsel %vm1544, 1, 0
        %v1561 = vsel %vm1545, 1, 0
        %v1562 = vsel %vm1546, 1, 0
        %v1563 = vsel %vm1547, 1, 0
        %v1564 = vsel %vm1548, 1, 0
        %v1565 = vsel %vm1549, 1, 0
        %v1566 = vsel %vm1550, 1, 0
        %v1567 = vsel %vm1551, 1, 0
        %v1568 = vsel %vm1552, 1, 0
        %v1569 = vsel %vm1553, 1, 0
        %v1570 = vsel %vm1554, 1, 0
        %v1571 = vsel %vm1555, 1, 0
        %v1572 = vsel %vm1556, 1, 0
        %v1573 = vsel %vm1557, 1, 0
        %v1574 = vcvt.s32.f32 %v1558
        %v1575 = vcvt.s32.f32 %v1559
        %v1576 = vcvt.s32.f32 %v1560
        %v1577 = vcvt.s32.f32 %v1561
        %v1578 = vcvt.s32.f32 %v1562
        %v1579 = vcvt.s32.f32 %v1563
        %v1580 = vcvt.s32.f32 %v1564
        %v1581 = vcvt.s32.f32 %v1565
        %v1582 = vcvt.s32.f32 %v1566
        %v1583 = vcvt.s32.f32 %v1567
        %v1584 = vcvt.s32.f32 %v1568
        %v1585 = vcvt.s32.f32 %v1569
        %v1586 = vcvt.s32.f32 %v1570
        %v1587 = vcvt.s32.f32 %v1571
        %v1588 = vcvt.s32.f32 %v1572
        %v1589 = vcvt.s32.f32 %v1573
        %v1590 = vadd.f32 %v1414, %v1574
        %v1591 = vadd.f32 %v1415, %v1575
        %v1592 = vadd.f32 %v1416, %v1576
        %v1593 = vadd.f32 %v1417, %v1577
        %v1594 = vadd.f32 %v1418, %v1578
        %v1595 = vadd.f32 %v1419, %v1579
        %v1596 = vadd.f32 %v1420, %v1580
        %v1597 = vadd.f32 %v1421, %v1581
        %v1598 = vadd.f32 %v1422, %v1582
        %v1599 = vadd.f32 %v1423, %v1583
        %v1600 = vadd.f32 %v1424, %v1584
        %v1601 = vadd.f32 %v1425, %v1585
        %v1602 = vadd.f32 %v1426, %v1586
        %v1603 = vadd.f32 %v1427, %v1587
        %v1604 = vadd.f32 %v1428, %v1588
        %v1605 = vadd.f32 %v1429, %v1589
        %v1606 = vsel %vm1542, -3.4028235e+38, %v1430
        %v1607 = vsel %vm1543, -3.4028235e+38, %v1431
        %v1608 = vsel %vm1544, -3.4028235e+38, %v1432
        %v1609 = vsel %vm1545, -3.4028235e+38, %v1433
        %v1610 = vsel %vm1546, -3.4028235e+38, %v1434
        %v1611 = vsel %vm1547, -3.4028235e+38, %v1435
        %v1612 = vsel %vm1548, -3.4028235e+38, %v1436
        %v1613 = vsel %vm1549, -3.4028235e+38, %v1437
        %v1614 = vsel %vm1550, -3.4028235e+38, %v1438
        %v1615 = vsel %vm1551, -3.4028235e+38, %v1439
        %v1616 = vsel %vm1552, -3.4028235e+38, %v1440
        %v1617 = vsel %vm1553, -3.4028235e+38, %v1441
        %v1618 = vsel %vm1554, -3.4028235e+38, %v1442
        %v1619 = vsel %vm1555, -3.4028235e+38, %v1443
        %v1620 = vsel %vm1556, -3.4028235e+38, %v1444
        %v1621 = vsel %vm1557, -3.4028235e+38, %v1445
        %1622 = vmax.xlane.f32.xlu0 %v1606
        %v1623 = vpop.xlane.xlu0 %1622
        %1624 = vmax.xlane.f32.xlu0 %v1607
        %v1625 = vpop.xlane.xlu0 %1624
        %1626 = vmax.xlane.f32.xlu0 %v1608
        %v1627 = vpop.xlane.xlu0 %1626
        %1628 = vmax.xlane.f32.xlu0 %v1609
        %v1629 = vpop.xlane.xlu0 %1628
        %1630 = vmax.xlane.f32.xlu0 %v1610
        %v1631 = vpop.xlane.xlu0 %1630
        %1632 = vmax.xlane.f32.xlu0 %v1611
        %v1633 = vpop.xlane.xlu0 %1632
        %1634 = vmax.xlane.f32.xlu0 %v1612
        %v1635 = vpop.xlane.xlu0 %1634
        %1636 = vmax.xlane.f32.xlu0 %v1613
        %v1637 = vpop.xlane.xlu0 %1636
        %1638 = vmax.xlane.f32.xlu0 %v1614
        %v1639 = vpop.xlane.xlu0 %1638
        %1640 = vmax.xlane.f32.xlu0 %v1615
        %v1641 = vpop.xlane.xlu0 %1640
        %1642 = vmax.xlane.f32.xlu0 %v1616
        %v1643 = vpop.xlane.xlu0 %1642
        %1644 = vmax.xlane.f32.xlu0 %v1617
        %v1645 = vpop.xlane.xlu0 %1644
        %1646 = vmax.xlane.f32.xlu0 %v1618
        %v1647 = vpop.xlane.xlu0 %1646
        %1648 = vmax.xlane.f32.xlu0 %v1619
        %v1649 = vpop.xlane.xlu0 %1648
        %1650 = vmax.xlane.f32.xlu0 %v1620
        %v1651 = vpop.xlane.xlu0 %1650
        %1652 = vmax.xlane.f32.xlu0 %v1621
        %v1653 = vpop.xlane.xlu0 %1652
        %vm1654 = vcmp.ge.f32.partialorder %v1606, %v1623
        %vm1655 = vcmp.ge.f32.partialorder %v1607, %v1625
        %vm1656 = vcmp.ge.f32.partialorder %v1608, %v1627
        %vm1657 = vcmp.ge.f32.partialorder %v1609, %v1629
        %vm1658 = vcmp.ge.f32.partialorder %v1610, %v1631
        %vm1659 = vcmp.ge.f32.partialorder %v1611, %v1633
        %vm1660 = vcmp.ge.f32.partialorder %v1612, %v1635
        %vm1661 = vcmp.ge.f32.partialorder %v1613, %v1637
        %vm1662 = vcmp.ge.f32.partialorder %v1614, %v1639
        %vm1663 = vcmp.ge.f32.partialorder %v1615, %v1641
        %vm1664 = vcmp.ge.f32.partialorder %v1616, %v1643
        %vm1665 = vcmp.ge.f32.partialorder %v1617, %v1645
        %vm1666 = vcmp.ge.f32.partialorder %v1618, %v1647
        %vm1667 = vcmp.ge.f32.partialorder %v1619, %v1649
        %vm1668 = vcmp.ge.f32.partialorder %v1620, %v1651
        %vm1669 = vcmp.ge.f32.partialorder %v1621, %v1653
        %v1670 = vsel %vm1654, %v346, 128.0
        %v1671 = vsel %vm1655, %v346, 128.0
        %v1672 = vsel %vm1656, %v346, 128.0
        %v1673 = vsel %vm1657, %v346, 128.0
        %v1674 = vsel %vm1658, %v346, 128.0
        %v1675 = vsel %vm1659, %v346, 128.0
        %v1676 = vsel %vm1660, %v346, 128.0
        %v1677 = vsel %vm1661, %v346, 128.0
        %v1678 = vsel %vm1662, %v346, 128.0
        %v1679 = vsel %vm1663, %v346, 128.0
        %v1680 = vsel %vm1664, %v346, 128.0
        %v1681 = vsel %vm1665, %v346, 128.0
        %v1682 = vsel %vm1666, %v346, 128.0
        %v1683 = vsel %vm1667, %v346, 128.0
        %v1684 = vsel %vm1668, %v346, 128.0
        %v1685 = vsel %vm1669, %v346, 128.0
        %1686 = vmin.xlane.f32.xlu0 %v1670
        %v1687 = vpop.xlane.xlu0 %1686
        %1688 = vmin.xlane.f32.xlu0 %v1671
        %v1689 = vpop.xlane.xlu0 %1688
        %1690 = vmin.xlane.f32.xlu0 %v1672
        %v1691 = vpop.xlane.xlu0 %1690
        %1692 = vmin.xlane.f32.xlu0 %v1673
        %v1693 = vpop.xlane.xlu0 %1692
        %1694 = vmin.xlane.f32.xlu0 %v1674
        %v1695 = vpop.xlane.xlu0 %1694
        %1696 = vmin.xlane.f32.xlu0 %v1675
        %v1697 = vpop.xlane.xlu0 %1696
        %1698 = vmin.xlane.f32.xlu0 %v1676
        %v1699 = vpop.xlane.xlu0 %1698
        %1700 = vmin.xlane.f32.xlu0 %v1677
        %v1701 = vpop.xlane.xlu0 %1700
        %1702 = vmin.xlane.f32.xlu0 %v1678
        %v1703 = vpop.xlane.xlu0 %1702
        %1704 = vmin.xlane.f32.xlu0 %v1679
        %v1705 = vpop.xlane.xlu0 %1704
        %1706 = vmin.xlane.f32.xlu0 %v1680
        %v1707 = vpop.xlane.xlu0 %1706
        %1708 = vmin.xlane.f32.xlu0 %v1681
        %v1709 = vpop.xlane.xlu0 %1708
        %1710 = vmin.xlane.f32.xlu0 %v1682
        %v1711 = vpop.xlane.xlu0 %1710
        %1712 = vmin.xlane.f32.xlu0 %v1683
        %v1713 = vpop.xlane.xlu0 %1712
        %1714 = vmin.xlane.f32.xlu0 %v1684
        %v1715 = vpop.xlane.xlu0 %1714
        %1716 = vmin.xlane.f32.xlu0 %v1685
        %v1717 = vpop.xlane.xlu0 %1716
        %vm1718 = vcmp.eq.f32.partialorder %v346, %v1687
        %vm1719 = vcmp.eq.f32.partialorder %v346, %v1689
        %vm1720 = vcmp.eq.f32.partialorder %v346, %v1691
        %vm1721 = vcmp.eq.f32.partialorder %v346, %v1693
        %vm1722 = vcmp.eq.f32.partialorder %v346, %v1695
        %vm1723 = vcmp.eq.f32.partialorder %v346, %v1697
        %vm1724 = vcmp.eq.f32.partialorder %v346, %v1699
        %vm1725 = vcmp.eq.f32.partialorder %v346, %v1701
        %vm1726 = vcmp.eq.f32.partialorder %v346, %v1703
        %vm1727 = vcmp.eq.f32.partialorder %v346, %v1705
        %vm1728 = vcmp.eq.f32.partialorder %v346, %v1707
        %vm1729 = vcmp.eq.f32.partialorder %v346, %v1709
        %vm1730 = vcmp.eq.f32.partialorder %v346, %v1711
        %vm1731 = vcmp.eq.f32.partialorder %v346, %v1713
        %vm1732 = vcmp.eq.f32.partialorder %v346, %v1715
        %vm1733 = vcmp.eq.f32.partialorder %v346, %v1717
        %v1734 = vsel %vm1718, 1, 0
        %v1735 = vsel %vm1719, 1, 0
        %v1736 = vsel %vm1720, 1, 0
        %v1737 = vsel %vm1721, 1, 0
        %v1738 = vsel %vm1722, 1, 0
        %v1739 = vsel %vm1723, 1, 0
        %v1740 = vsel %vm1724, 1, 0
        %v1741 = vsel %vm1725, 1, 0
        %v1742 = vsel %vm1726, 1, 0
        %v1743 = vsel %vm1727, 1, 0
        %v1744 = vsel %vm1728, 1, 0
        %v1745 = vsel %vm1729, 1, 0
        %v1746 = vsel %vm1730, 1, 0
        %v1747 = vsel %vm1731, 1, 0
        %v1748 = vsel %vm1732, 1, 0
        %v1749 = vsel %vm1733, 1, 0
        %v1750 = vcvt.s32.f32 %v1734
        %v1751 = vcvt.s32.f32 %v1735
        %v1752 = vcvt.s32.f32 %v1736
        %v1753 = vcvt.s32.f32 %v1737
        %v1754 = vcvt.s32.f32 %v1738
        %v1755 = vcvt.s32.f32 %v1739
        %v1756 = vcvt.s32.f32 %v1740
        %v1757 = vcvt.s32.f32 %v1741
        %v1758 = vcvt.s32.f32 %v1742
        %v1759 = vcvt.s32.f32 %v1743
        %v1760 = vcvt.s32.f32 %v1744
        %v1761 = vcvt.s32.f32 %v1745
        %v1762 = vcvt.s32.f32 %v1746
        %v1763 = vcvt.s32.f32 %v1747
        %v1764 = vcvt.s32.f32 %v1748
        %v1765 = vcvt.s32.f32 %v1749
        %v1766 = vadd.f32 %v1590, %v1750
        %v1767 = vadd.f32 %v1591, %v1751
        %v1768 = vadd.f32 %v1592, %v1752
        %v1769 = vadd.f32 %v1593, %v1753
        %v1770 = vadd.f32 %v1594, %v1754
        %v1771 = vadd.f32 %v1595, %v1755
        %v1772 = vadd.f32 %v1596, %v1756
        %v1773 = vadd.f32 %v1597, %v1757
        %v1774 = vadd.f32 %v1598, %v1758
        %v1775 = vadd.f32 %v1599, %v1759
        %v1776 = vadd.f32 %v1600, %v1760
        %v1777 = vadd.f32 %v1601, %v1761
        %v1778 = vadd.f32 %v1602, %v1762
        %v1779 = vadd.f32 %v1603, %v1763
        %v1780 = vadd.f32 %v1604, %v1764
        %v1781 = vadd.f32 %v1605, %v1765
        %v1782 = vsel %vm1718, -3.4028235e+38, %v1606
        %v1783 = vsel %vm1719, -3.4028235e+38, %v1607
        %v1784 = vsel %vm1720, -3.4028235e+38, %v1608
        %v1785 = vsel %vm1721, -3.4028235e+38, %v1609
        %v1786 = vsel %vm1722, -3.4028235e+38, %v1610
        %v1787 = vsel %vm1723, -3.4028235e+38, %v1611
        %v1788 = vsel %vm1724, -3.4028235e+38, %v1612
        %v1789 = vsel %vm1725, -3.4028235e+38, %v1613
        %v1790 = vsel %vm1726, -3.4028235e+38, %v1614
        %v1791 = vsel %vm1727, -3.4028235e+38, %v1615
        %v1792 = vsel %vm1728, -3.4028235e+38, %v1616
        %v1793 = vsel %vm1729, -3.4028235e+38, %v1617
        %v1794 = vsel %vm1730, -3.4028235e+38, %v1618
        %v1795 = vsel %vm1731, -3.4028235e+38, %v1619
        %v1796 = vsel %vm1732, -3.4028235e+38, %v1620
        %v1797 = vsel %vm1733, -3.4028235e+38, %v1621
        %1798 = vmax.xlane.f32.xlu0 %v1782
        %v1799 = vpop.xlane.xlu0 %1798
        %1800 = vmax.xlane.f32.xlu0 %v1783
        %v1801 = vpop.xlane.xlu0 %1800
        %1802 = vmax.xlane.f32.xlu0 %v1784
        %v1803 = vpop.xlane.xlu0 %1802
        %1804 = vmax.xlane.f32.xlu0 %v1785
        %v1805 = vpop.xlane.xlu0 %1804
        %1806 = vmax.xlane.f32.xlu0 %v1786
        %v1807 = vpop.xlane.xlu0 %1806
        %1808 = vmax.xlane.f32.xlu0 %v1787
        %v1809 = vpop.xlane.xlu0 %1808
        %1810 = vmax.xlane.f32.xlu0 %v1788
        %v1811 = vpop.xlane.xlu0 %1810
        %1812 = vmax.xlane.f32.xlu0 %v1789
        %v1813 = vpop.xlane.xlu0 %1812
        %1814 = vmax.xlane.f32.xlu0 %v1790
        %v1815 = vpop.xlane.xlu0 %1814
        %1816 = vmax.xlane.f32.xlu0 %v1791
        %v1817 = vpop.xlane.xlu0 %1816
        %1818 = vmax.xlane.f32.xlu0 %v1792
        %v1819 = vpop.xlane.xlu0 %1818
        %1820 = vmax.xlane.f32.xlu0 %v1793
        %v1821 = vpop.xlane.xlu0 %1820
        %1822 = vmax.xlane.f32.xlu0 %v1794
        %v1823 = vpop.xlane.xlu0 %1822
        %1824 = vmax.xlane.f32.xlu0 %v1795
        %v1825 = vpop.xlane.xlu0 %1824
        %1826 = vmax.xlane.f32.xlu0 %v1796
        %v1827 = vpop.xlane.xlu0 %1826
        %1828 = vmax.xlane.f32.xlu0 %v1797
        %v1829 = vpop.xlane.xlu0 %1828
        %vm1830 = vcmp.ge.f32.partialorder %v1782, %v1799
        %vm1831 = vcmp.ge.f32.partialorder %v1783, %v1801
        %vm1832 = vcmp.ge.f32.partialorder %v1784, %v1803
        %vm1833 = vcmp.ge.f32.partialorder %v1785, %v1805
        %vm1834 = vcmp.ge.f32.partialorder %v1786, %v1807
        %vm1835 = vcmp.ge.f32.partialorder %v1787, %v1809
        %vm1836 = vcmp.ge.f32.partialorder %v1788, %v1811
        %vm1837 = vcmp.ge.f32.partialorder %v1789, %v1813
        %vm1838 = vcmp.ge.f32.partialorder %v1790, %v1815
        %vm1839 = vcmp.ge.f32.partialorder %v1791, %v1817
        %vm1840 = vcmp.ge.f32.partialorder %v1792, %v1819
        %vm1841 = vcmp.ge.f32.partialorder %v1793, %v1821
        %vm1842 = vcmp.ge.f32.partialorder %v1794, %v1823
        %vm1843 = vcmp.ge.f32.partialorder %v1795, %v1825
        %vm1844 = vcmp.ge.f32.partialorder %v1796, %v1827
        %vm1845 = vcmp.ge.f32.partialorder %v1797, %v1829
        %v1846 = vsel %vm1830, %v346, 128.0
        %v1847 = vsel %vm1831, %v346, 128.0
        %v1848 = vsel %vm1832, %v346, 128.0
        %v1849 = vsel %vm1833, %v346, 128.0
        %v1850 = vsel %vm1834, %v346, 128.0
        %v1851 = vsel %vm1835, %v346, 128.0
        %v1852 = vsel %vm1836, %v346, 128.0
        %v1853 = vsel %vm1837, %v346, 128.0
        %v1854 = vsel %vm1838, %v346, 128.0
        %v1855 = vsel %vm1839, %v346, 128.0
        %v1856 = vsel %vm1840, %v346, 128.0
        %v1857 = vsel %vm1841, %v346, 128.0
        %v1858 = vsel %vm1842, %v346, 128.0
        %v1859 = vsel %vm1843, %v346, 128.0
        %v1860 = vsel %vm1844, %v346, 128.0
        %v1861 = vsel %vm1845, %v346, 128.0
        %1862 = vmin.xlane.f32.xlu0 %v1846
        %v1863 = vpop.xlane.xlu0 %1862
        %1864 = vmin.xlane.f32.xlu0 %v1847
        %v1865 = vpop.xlane.xlu0 %1864
        %1866 = vmin.xlane.f32.xlu0 %v1848
        %v1867 = vpop.xlane.xlu0 %1866
        %1868 = vmin.xlane.f32.xlu0 %v1849
        %v1869 = vpop.xlane.xlu0 %1868
        %1870 = vmin.xlane.f32.xlu0 %v1850
        %v1871 = vpop.xlane.xlu0 %1870
        %1872 = vmin.xlane.f32.xlu0 %v1851
        %v1873 = vpop.xlane.xlu0 %1872
        %1874 = vmin.xlane.f32.xlu0 %v1852
        %v1875 = vpop.xlane.xlu0 %1874
        %1876 = vmin.xlane.f32.xlu0 %v1853
        %v1877 = vpop.xlane.xlu0 %1876
        %1878 = vmin.xlane.f32.xlu0 %v1854
        %v1879 = vpop.xlane.xlu0 %1878
        %1880 = vmin.xlane.f32.xlu0 %v1855
        %v1881 = vpop.xlane.xlu0 %1880
        %1882 = vmin.xlane.f32.xlu0 %v1856
        %v1883 = vpop.xlane.xlu0 %1882
        %1884 = vmin.xlane.f32.xlu0 %v1857
        %v1885 = vpop.xlane.xlu0 %1884
        %1886 = vmin.xlane.f32.xlu0 %v1858
        %v1887 = vpop.xlane.xlu0 %1886
        %1888 = vmin.xlane.f32.xlu0 %v1859
        %v1889 = vpop.xlane.xlu0 %1888
        %1890 = vmin.xlane.f32.xlu0 %v1860
        %v1891 = vpop.xlane.xlu0 %1890
        %1892 = vmin.xlane.f32.xlu0 %v1861
        %v1893 = vpop.xlane.xlu0 %1892
        %vm1894 = vcmp.eq.f32.partialorder %v346, %v1863
        %vm1895 = vcmp.eq.f32.partialorder %v346, %v1865
        %vm1896 = vcmp.eq.f32.partialorder %v346, %v1867
        %vm1897 = vcmp.eq.f32.partialorder %v346, %v1869
        %vm1898 = vcmp.eq.f32.partialorder %v346, %v1871
        %vm1899 = vcmp.eq.f32.partialorder %v346, %v1873
        %vm1900 = vcmp.eq.f32.partialorder %v346, %v1875
        %vm1901 = vcmp.eq.f32.partialorder %v346, %v1877
        %vm1902 = vcmp.eq.f32.partialorder %v346, %v1879
        %vm1903 = vcmp.eq.f32.partialorder %v346, %v1881
        %vm1904 = vcmp.eq.f32.partialorder %v346, %v1883
        %vm1905 = vcmp.eq.f32.partialorder %v346, %v1885
        %vm1906 = vcmp.eq.f32.partialorder %v346, %v1887
        %vm1907 = vcmp.eq.f32.partialorder %v346, %v1889
        %vm1908 = vcmp.eq.f32.partialorder %v346, %v1891
        %vm1909 = vcmp.eq.f32.partialorder %v346, %v1893
        %v1910 = vsel %vm1894, 1, 0
        %v1911 = vsel %vm1895, 1, 0
        %v1912 = vsel %vm1896, 1, 0
        %v1913 = vsel %vm1897, 1, 0
        %v1914 = vsel %vm1898, 1, 0
        %v1915 = vsel %vm1899, 1, 0
        %v1916 = vsel %vm1900, 1, 0
        %v1917 = vsel %vm1901, 1, 0
        %v1918 = vsel %vm1902, 1, 0
        %v1919 = vsel %vm1903, 1, 0
        %v1920 = vsel %vm1904, 1, 0
        %v1921 = vsel %vm1905, 1, 0
        %v1922 = vsel %vm1906, 1, 0
        %v1923 = vsel %vm1907, 1, 0
        %v1924 = vsel %vm1908, 1, 0
        %v1925 = vsel %vm1909, 1, 0
        %v1926 = vcvt.s32.f32 %v1910
        %v1927 = vcvt.s32.f32 %v1911
        %v1928 = vcvt.s32.f32 %v1912
        %v1929 = vcvt.s32.f32 %v1913
        %v1930 = vcvt.s32.f32 %v1914
        %v1931 = vcvt.s32.f32 %v1915
        %v1932 = vcvt.s32.f32 %v1916
        %v1933 = vcvt.s32.f32 %v1917
        %v1934 = vcvt.s32.f32 %v1918
        %v1935 = vcvt.s32.f32 %v1919
        %v1936 = vcvt.s32.f32 %v1920
        %v1937 = vcvt.s32.f32 %v1921
        %v1938 = vcvt.s32.f32 %v1922
        %v1939 = vcvt.s32.f32 %v1923
        %v1940 = vcvt.s32.f32 %v1924
        %v1941 = vcvt.s32.f32 %v1925
        %v1942 = vadd.f32 %v1766, %v1926
        %v1943 = vadd.f32 %v1767, %v1927
        %v1944 = vadd.f32 %v1768, %v1928
        %v1945 = vadd.f32 %v1769, %v1929
        %v1946 = vadd.f32 %v1770, %v1930
        %v1947 = vadd.f32 %v1771, %v1931
        %v1948 = vadd.f32 %v1772, %v1932
        %v1949 = vadd.f32 %v1773, %v1933
        %v1950 = vadd.f32 %v1774, %v1934
        %v1951 = vadd.f32 %v1775, %v1935
        %v1952 = vadd.f32 %v1776, %v1936
        %v1953 = vadd.f32 %v1777, %v1937
        %v1954 = vadd.f32 %v1778, %v1938
        %v1955 = vadd.f32 %v1779, %v1939
        %v1956 = vadd.f32 %v1780, %v1940
        %v1957 = vadd.f32 %v1781, %v1941
        %1958 = vmatpush.xpose.msra.mxu0 %v1957
        %1959 = vmatpush.xpose.msra.mxu0 %v1956
        %1960 = vmatpush.xpose.msra.mxu0 %v1955
        %1961 = vmatpush.xpose.msra.mxu0 %v1954
        %1962 = vmatpush.xpose.msra.mxu0 %v1953
        %1963 = vmatpush.xpose.msra.mxu0 %v1952
        %1964 = vmatpush.xpose.msra.mxu0 %v1951
        %1965 = vmatpush.xpose.msra.mxu0 %v1950
        %1966 = vmatpush.xpose.msra.mxu0 %v1949
        %1967 = vmatpush.xpose.msra.mxu0 %v1948
        %1968 = vmatpush.xpose.msra.mxu0 %v1947
        %1969 = vmatpush.xpose.msra.mxu0 %v1946
        %1970 = vmatpush.xpose.msra.mxu0 %v1945
        %1971 = vmatpush.xpose.msra.mxu0 %v1944
        %1972 = vmatpush.xpose.msra.mxu0 %v1943
        %1973 = vmatpush.xpose.msra.mxu0 %v1942
        %1974 = vmatmul.f32.gmra.mxu0 %v371
        %v1975 = vpop.f32.mrf.mxu0
        %v1976 = vadd.f32 0.0, %v1975
        %1977 = vmatmul.f32.gmra.mxu0 %v372
        %v1978 = vpop.f32.mrf.mxu0
        %v1979 = vadd.f32 0.0, %v1978
        %1980 = vmatmul.f32.gmra.mxu0 %v373
        %v1981 = vpop.f32.mrf.mxu0
        %v1982 = vadd.f32 0.0, %v1981
        %1983 = vmatmul.f32.gmra.mxu0 %v374
        %v1984 = vpop.f32.mrf.mxu0
        %v1985 = vadd.f32 0.0, %v1984
        %1986 = vdwg.mxu0
        %v1987 = vmul.f32 %v1976, 0.125
        %v1988 = vmul.f32 %v1979, 0.125
        %v1989 = vmul.f32 %v1982, 0.125
        %v1990 = vmul.f32 %v1985, 0.125
        %v1991 = vsub.f32 %v1987, %v371
        %v1992 = vsub.f32 %v1988, %v372
        %v1993 = vsub.f32 %v1989, %v373
        %v1994 = vsub.f32 %v1990, %v374
        %v1996 = vsel %vm407, %v351, 0
        %v1999 = vsel %vm407, %v352, 0
        %v2002 = vsel %vm407, %v353, 0
        %v2005 = vsel %vm407, %v354, 0
        %2007 = vmatpush.msra.mxu0 0.0
        %2008 = vmatpush.msra.mxu0 0.0
        %2009 = vmatpush.msra.mxu0 0.0
        %2010 = vmatpush.msra.mxu0 0.0
        %2011 = vmatpush.msra.mxu0 0.0
        %2012 = vmatpush.msra.mxu0 0.0
        %2013 = vmatpush.msra.mxu0 0.0
        %2014 = vmatpush.msra.mxu0 0.0
        %2015 = vmatpush.msra.mxu0 0.0
        %2016 = vmatpush.msra.mxu0 0.0
        %2017 = vmatpush.msra.mxu0 0.0
        %2018 = vmatpush.msra.mxu0 0.0
        %2019 = vmatpush.msra.mxu0 %v374
        %2020 = vmatpush.msra.mxu0 %v373
        %2021 = vmatpush.msra.mxu0 %v372
        %2022 = vmatpush.msra.mxu0 %v371
        %2023 = vmatmul.f32.gmra.mxu0 %v1996
        %v2024 = vpop.f32.mrf.mxu0
        %v2025 = vadd.f32 0.0, %v2024
        %2026 = vmatmul.f32.gmra.mxu0 %v1999
        %v2027 = vpop.f32.mrf.mxu0
        %v2028 = vadd.f32 0.0, %v2027
        %2029 = vmatmul.f32.gmra.mxu0 %v2002
        %v2030 = vpop.f32.mrf.mxu0
        %v2031 = vadd.f32 0.0, %v2030
        %2032 = vmatmul.f32.gmra.mxu0 %v2005
        %v2033 = vpop.f32.mrf.mxu0
        %v2034 = vadd.f32 0.0, %v2033
        %2035 = vdwg.mxu0
        %v2037 = vsel %vm407, %v347, 0
        %v2040 = vsel %vm407, %v348, 0
        %v2043 = vsel %vm407, %v349, 0
        %v2046 = vsel %vm407, %v350, 0
        %2048 = vmatpush.msra.mxu0 0.0
        %2049 = vmatpush.msra.mxu0 0.0
        %2050 = vmatpush.msra.mxu0 0.0
        %2051 = vmatpush.msra.mxu0 0.0
        %2052 = vmatpush.msra.mxu0 0.0
        %2053 = vmatpush.msra.mxu0 0.0
        %2054 = vmatpush.msra.mxu0 0.0
        %2055 = vmatpush.msra.mxu0 0.0
        %2056 = vmatpush.msra.mxu0 0.0
        %2057 = vmatpush.msra.mxu0 0.0
        %2058 = vmatpush.msra.mxu0 0.0
        %2059 = vmatpush.msra.mxu0 0.0
        %2060 = vmatpush.msra.mxu0 %v1994
        %2061 = vmatpush.msra.mxu0 %v1993
        %2062 = vmatpush.msra.mxu0 %v1992
        %2063 = vmatpush.msra.mxu0 %v1991
        %2064 = vmatmul.f32.gmra.mxu0 %v2037
        %v2065 = vpop.f32.mrf.mxu0
        %v2066 = vadd.f32 %v2025, %v2065
        %2067 = vmatmul.f32.gmra.mxu0 %v2040
        %v2068 = vpop.f32.mrf.mxu0
        %v2069 = vadd.f32 %v2028, %v2068
        %2070 = vmatmul.f32.gmra.mxu0 %v2043
        %v2071 = vpop.f32.mrf.mxu0
        %v2072 = vadd.f32 %v2031, %v2071
        %2073 = vmatmul.f32.gmra.mxu0 %v2046
        %v2074 = vpop.f32.mrf.mxu0
        %v2075 = vadd.f32 %v2034, %v2074
        %2076 = vdwg.mxu0
        %2078 = vset.pattern.permute.xlu0 0
        %2079 = vperm.xlu0 %2078, %v355
        %v2080 = vpop.permute.xlu0 %2079
        %2083 = vset.pattern.permute.xlu0 0
        %2084 = vperm.xlu0 %2083, %v356
        %v2085 = vpop.permute.xlu0 %2084
        %2088 = vset.pattern.permute.xlu0 0
        %2089 = vperm.xlu0 %2088, %v357
        %v2090 = vpop.permute.xlu0 %2089
        %2093 = vset.pattern.permute.xlu0 0
        %2094 = vperm.xlu0 %2093, %v358
        %v2095 = vpop.permute.xlu0 %2094
        %v2097 = vadd.f32 %v2066, %v2080
        %v2098 = vadd.f32 %v2069, %v2085
        %v2099 = vadd.f32 %v2072, %v2090
        %v2100 = vadd.f32 %v2075, %v2095
        %v2101 = vmax.f32 %v2097, 0.0
        %v2102 = vmax.f32 %v2098, 0.0
        %v2103 = vmax.f32 %v2099, 0.0
        %v2104 = vmax.f32 %v2100, 0.0
        %2105 = vxpose.xlu0.b32.start [1/16] %v2101, 128
        %2106 = vxpose.xlu0.b32.cont [2/16] %v2102, 128
        %2107 = vxpose.xlu0.b32.cont [3/16] %v2103, 128
        %2108 = vxpose.xlu0.b32.cont [4/16] %v2104, 128
        %2109 = vxpose.xlu0.b32.cont [5/16] 0.0, 128
        %2110 = vxpose.xlu0.b32.cont [6/16] 0.0, 128
        %2111 = vxpose.xlu0.b32.cont [7/16] 0.0, 128
        %2112 = vxpose.xlu0.b32.cont [8/16] 0.0, 128
        %2113 = vxpose.xlu0.b32.cont [9/16] 0.0, 128
        %2114 = vxpose.xlu0.b32.cont [10/16] 0.0, 128
        %2115 = vxpose.xlu0.b32.cont [11/16] 0.0, 128
        %2116 = vxpose.xlu0.b32.cont [12/16] 0.0, 128
        %2117 = vxpose.xlu0.b32.cont [13/16] 0.0, 128
        %2118 = vxpose.xlu0.b32.cont [14/16] 0.0, 128
        %2119 = vxpose.xlu0.b32.cont [15/16] 0.0, 128
        %2120 = vxpose.xlu0.b32.end [16/16] 0.0, 128
        %v2121 = vpop.trf.xlu0
        %v2122 = vpop.trf.xlu0
        %v2123 = vpop.trf.xlu0
        %v2124 = vpop.trf.xlu0
        %v2125 = vpop.trf.xlu0
        %v2126 = vpop.trf.xlu0
        %v2127 = vpop.trf.xlu0
        %v2128 = vpop.trf.xlu0
        %v2129 = vpop.trf.xlu0
        %v2130 = vpop.trf.xlu0
        %v2131 = vpop.trf.xlu0
        %v2132 = vpop.trf.xlu0
        %v2133 = vpop.trf.xlu0
        %v2134 = vpop.trf.xlu0
        %v2135 = vpop.trf.xlu0
        %v2136 = vpop.trf.xlu0
        %v2138 = vsel %vm407, %v2121, 0
        %v2141 = vsel %vm407, %v2122, 0
        %v2144 = vsel %vm407, %v2123, 0
        %v2147 = vsel %vm407, %v2124, 0
        %v2150 = vsel %vm407, %v2125, 0
        %v2153 = vsel %vm407, %v2126, 0
        %v2156 = vsel %vm407, %v2127, 0
        %v2159 = vsel %vm407, %v2128, 0
        %v2162 = vsel %vm407, %v2129, 0
        %v2165 = vsel %vm407, %v2130, 0
        %v2168 = vsel %vm407, %v2131, 0
        %v2171 = vsel %vm407, %v2132, 0
        %v2174 = vsel %vm407, %v2133, 0
        %v2177 = vsel %vm407, %v2134, 0
        %v2180 = vsel %vm407, %v2135, 0
        %v2183 = vsel %vm407, %v2136, 0
        %2185 = vmatpush.msra.mxu0 0.0
        %2186 = vmatpush.msra.mxu0 0.0
        %2187 = vmatpush.msra.mxu0 0.0
        %2188 = vmatpush.msra.mxu0 0.0
        %2189 = vmatpush.msra.mxu0 0.0
        %2190 = vmatpush.msra.mxu0 0.0
        %2191 = vmatpush.msra.mxu0 0.0
        %2192 = vmatpush.msra.mxu0 0.0
        %2193 = vmatpush.msra.mxu0 0.0
        %2194 = vmatpush.msra.mxu0 0.0
        %2195 = vmatpush.msra.mxu0 0.0
        %2196 = vmatpush.msra.mxu0 0.0
        %2197 = vmatpush.msra.mxu0 %v2104
        %2198 = vmatpush.msra.mxu0 %v2103
        %2199 = vmatpush.msra.mxu0 %v2102
        %2200 = vmatpush.msra.mxu0 %v2101
        %2201 = vmatmul.f32.gmra.mxu0 %v2138
        %v2202 = vpop.f32.mrf.mxu0
        %v2203 = vadd.f32 0.0, %v2202
        %2204 = vmatmul.f32.gmra.mxu0 %v2141
        %v2205 = vpop.f32.mrf.mxu0
        %v2206 = vadd.f32 0.0, %v2205
        %2207 = vmatmul.f32.gmra.mxu0 %v2144
        %v2208 = vpop.f32.mrf.mxu0
        %v2209 = vadd.f32 0.0, %v2208
        %2210 = vmatmul.f32.gmra.mxu0 %v2147
        %v2211 = vpop.f32.mrf.mxu0
        %v2212 = vadd.f32 0.0, %v2211
        %2213 = vmatmul.f32.gmra.mxu0 %v2150
        %v2214 = vpop.f32.mrf.mxu0
        %v2215 = vadd.f32 0.0, %v2214
        %2216 = vmatmul.f32.gmra.mxu0 %v2153
        %v2217 = vpop.f32.mrf.mxu0
        %v2218 = vadd.f32 0.0, %v2217
        %2219 = vmatmul.f32.gmra.mxu0 %v2156
        %v2220 = vpop.f32.mrf.mxu0
        %v2221 = vadd.f32 0.0, %v2220
        %2222 = vmatmul.f32.gmra.mxu0 %v2159
        %v2223 = vpop.f32.mrf.mxu0
        %v2224 = vadd.f32 0.0, %v2223
        %2225 = vmatmul.f32.gmra.mxu0 %v2162
        %v2226 = vpop.f32.mrf.mxu0
        %v2227 = vadd.f32 0.0, %v2226
        %2228 = vmatmul.f32.gmra.mxu0 %v2165
        %v2229 = vpop.f32.mrf.mxu0
        %v2230 = vadd.f32 0.0, %v2229
        %2231 = vmatmul.f32.gmra.mxu0 %v2168
        %v2232 = vpop.f32.mrf.mxu0
        %v2233 = vadd.f32 0.0, %v2232
        %2234 = vmatmul.f32.gmra.mxu0 %v2171
        %v2235 = vpop.f32.mrf.mxu0
        %v2236 = vadd.f32 0.0, %v2235
        %2237 = vmatmul.f32.gmra.mxu0 %v2174
        %v2238 = vpop.f32.mrf.mxu0
        %v2239 = vadd.f32 0.0, %v2238
        %2240 = vmatmul.f32.gmra.mxu0 %v2177
        %v2241 = vpop.f32.mrf.mxu0
        %v2242 = vadd.f32 0.0, %v2241
        %2243 = vmatmul.f32.gmra.mxu0 %v2180
        %v2244 = vpop.f32.mrf.mxu0
        %v2245 = vadd.f32 0.0, %v2244
        %2246 = vmatmul.f32.gmra.mxu0 %v2183
        %v2247 = vpop.f32.mrf.mxu0
        %v2248 = vadd.f32 0.0, %v2247
        %2249 = vdwg.mxu0
        %v2250 = vmul.f32 %v2101, %v2101
        %v2251 = vmul.f32 %v2102, %v2102
        %v2252 = vmul.f32 %v2103, %v2103
        %v2253 = vmul.f32 %v2104, %v2104
        %v2254 = vadd.f32 %v2250, %v2251
        %v2255 = vadd.f32 %v2254, %v2252
        %v2256 = vadd.f32 %v2255, %v2253
        %v2257 = vrot.slane %v2256, 4
        %v2258 = vadd.f32 %v2256, %v2257
        %v2259 = vrot.slane %v2258, 2
        %v2260 = vadd.f32 %v2258, %v2259
        %v2261 = vrot.slane %v2260, 1
        %v2262 = vadd.f32 %v2260, %v2261
        %v2263 = vmul.f32 %v2203, 2.0
        %v2264 = vmul.f32 %v2206, 2.0
        %v2265 = vmul.f32 %v2209, 2.0
        %v2266 = vmul.f32 %v2212, 2.0
        %v2267 = vmul.f32 %v2215, 2.0
        %v2268 = vmul.f32 %v2218, 2.0
        %v2269 = vmul.f32 %v2221, 2.0
        %v2270 = vmul.f32 %v2224, 2.0
        %v2271 = vmul.f32 %v2227, 2.0
        %v2272 = vmul.f32 %v2230, 2.0
        %v2273 = vmul.f32 %v2233, 2.0
        %v2274 = vmul.f32 %v2236, 2.0
        %v2275 = vmul.f32 %v2239, 2.0
        %v2276 = vmul.f32 %v2242, 2.0
        %v2277 = vmul.f32 %v2245, 2.0
        %v2278 = vmul.f32 %v2248, 2.0
        %v2279 = vsub.f32 %v2263, %v2262
        %v2280 = vsub.f32 %v2264, %v2262
        %v2281 = vsub.f32 %v2265, %v2262
        %v2282 = vsub.f32 %v2266, %v2262
        %v2283 = vsub.f32 %v2267, %v2262
        %v2284 = vsub.f32 %v2268, %v2262
        %v2285 = vsub.f32 %v2269, %v2262
        %v2286 = vsub.f32 %v2270, %v2262
        %v2287 = vsub.f32 %v2271, %v2262
        %v2288 = vsub.f32 %v2272, %v2262
        %v2289 = vsub.f32 %v2273, %v2262
        %v2290 = vsub.f32 %v2274, %v2262
        %v2291 = vsub.f32 %v2275, %v2262
        %v2292 = vsub.f32 %v2276, %v2262
        %v2293 = vsub.f32 %v2277, %v2262
        %v2294 = vsub.f32 %v2278, %v2262
        %2295 = vmax.xlane.f32.xlu0 %v2279
        %v2296 = vpop.xlane.xlu0 %2295
        %2297 = vmax.xlane.f32.xlu0 %v2280
        %v2298 = vpop.xlane.xlu0 %2297
        %2299 = vmax.xlane.f32.xlu0 %v2281
        %v2300 = vpop.xlane.xlu0 %2299
        %2301 = vmax.xlane.f32.xlu0 %v2282
        %v2302 = vpop.xlane.xlu0 %2301
        %2303 = vmax.xlane.f32.xlu0 %v2283
        %v2304 = vpop.xlane.xlu0 %2303
        %2305 = vmax.xlane.f32.xlu0 %v2284
        %v2306 = vpop.xlane.xlu0 %2305
        %2307 = vmax.xlane.f32.xlu0 %v2285
        %v2308 = vpop.xlane.xlu0 %2307
        %2309 = vmax.xlane.f32.xlu0 %v2286
        %v2310 = vpop.xlane.xlu0 %2309
        %2311 = vmax.xlane.f32.xlu0 %v2287
        %v2312 = vpop.xlane.xlu0 %2311
        %2313 = vmax.xlane.f32.xlu0 %v2288
        %v2314 = vpop.xlane.xlu0 %2313
        %2315 = vmax.xlane.f32.xlu0 %v2289
        %v2316 = vpop.xlane.xlu0 %2315
        %2317 = vmax.xlane.f32.xlu0 %v2290
        %v2318 = vpop.xlane.xlu0 %2317
        %2319 = vmax.xlane.f32.xlu0 %v2291
        %v2320 = vpop.xlane.xlu0 %2319
        %2321 = vmax.xlane.f32.xlu0 %v2292
        %v2322 = vpop.xlane.xlu0 %2321
        %2323 = vmax.xlane.f32.xlu0 %v2293
        %v2324 = vpop.xlane.xlu0 %2323
        %2325 = vmax.xlane.f32.xlu0 %v2294
        %v2326 = vpop.xlane.xlu0 %2325
        %vm2327 = vcmp.ge.f32.partialorder %v2279, %v2296
        %vm2328 = vcmp.ge.f32.partialorder %v2280, %v2298
        %vm2329 = vcmp.ge.f32.partialorder %v2281, %v2300
        %vm2330 = vcmp.ge.f32.partialorder %v2282, %v2302
        %vm2331 = vcmp.ge.f32.partialorder %v2283, %v2304
        %vm2332 = vcmp.ge.f32.partialorder %v2284, %v2306
        %vm2333 = vcmp.ge.f32.partialorder %v2285, %v2308
        %vm2334 = vcmp.ge.f32.partialorder %v2286, %v2310
        %vm2335 = vcmp.ge.f32.partialorder %v2287, %v2312
        %vm2336 = vcmp.ge.f32.partialorder %v2288, %v2314
        %vm2337 = vcmp.ge.f32.partialorder %v2289, %v2316
        %vm2338 = vcmp.ge.f32.partialorder %v2290, %v2318
        %vm2339 = vcmp.ge.f32.partialorder %v2291, %v2320
        %vm2340 = vcmp.ge.f32.partialorder %v2292, %v2322
        %vm2341 = vcmp.ge.f32.partialorder %v2293, %v2324
        %vm2342 = vcmp.ge.f32.partialorder %v2294, %v2326
        %v2343 = vsel %vm2327, %v346, 128.0
        %v2344 = vsel %vm2328, %v346, 128.0
        %v2345 = vsel %vm2329, %v346, 128.0
        %v2346 = vsel %vm2330, %v346, 128.0
        %v2347 = vsel %vm2331, %v346, 128.0
        %v2348 = vsel %vm2332, %v346, 128.0
        %v2349 = vsel %vm2333, %v346, 128.0
        %v2350 = vsel %vm2334, %v346, 128.0
        %v2351 = vsel %vm2335, %v346, 128.0
        %v2352 = vsel %vm2336, %v346, 128.0
        %v2353 = vsel %vm2337, %v346, 128.0
        %v2354 = vsel %vm2338, %v346, 128.0
        %v2355 = vsel %vm2339, %v346, 128.0
        %v2356 = vsel %vm2340, %v346, 128.0
        %v2357 = vsel %vm2341, %v346, 128.0
        %v2358 = vsel %vm2342, %v346, 128.0
        %2359 = vmin.xlane.f32.xlu0 %v2343
        %v2360 = vpop.xlane.xlu0 %2359
        %2361 = vmin.xlane.f32.xlu0 %v2344
        %v2362 = vpop.xlane.xlu0 %2361
        %2363 = vmin.xlane.f32.xlu0 %v2345
        %v2364 = vpop.xlane.xlu0 %2363
        %2365 = vmin.xlane.f32.xlu0 %v2346
        %v2366 = vpop.xlane.xlu0 %2365
        %2367 = vmin.xlane.f32.xlu0 %v2347
        %v2368 = vpop.xlane.xlu0 %2367
        %2369 = vmin.xlane.f32.xlu0 %v2348
        %v2370 = vpop.xlane.xlu0 %2369
        %2371 = vmin.xlane.f32.xlu0 %v2349
        %v2372 = vpop.xlane.xlu0 %2371
        %2373 = vmin.xlane.f32.xlu0 %v2350
        %v2374 = vpop.xlane.xlu0 %2373
        %2375 = vmin.xlane.f32.xlu0 %v2351
        %v2376 = vpop.xlane.xlu0 %2375
        %2377 = vmin.xlane.f32.xlu0 %v2352
        %v2378 = vpop.xlane.xlu0 %2377
        %2379 = vmin.xlane.f32.xlu0 %v2353
        %v2380 = vpop.xlane.xlu0 %2379
        %2381 = vmin.xlane.f32.xlu0 %v2354
        %v2382 = vpop.xlane.xlu0 %2381
        %2383 = vmin.xlane.f32.xlu0 %v2355
        %v2384 = vpop.xlane.xlu0 %2383
        %2385 = vmin.xlane.f32.xlu0 %v2356
        %v2386 = vpop.xlane.xlu0 %2385
        %2387 = vmin.xlane.f32.xlu0 %v2357
        %v2388 = vpop.xlane.xlu0 %2387
        %2389 = vmin.xlane.f32.xlu0 %v2358
        %v2390 = vpop.xlane.xlu0 %2389
        %vm2391 = vcmp.eq.f32.partialorder %v346, %v2360
        %vm2392 = vcmp.eq.f32.partialorder %v346, %v2362
        %vm2393 = vcmp.eq.f32.partialorder %v346, %v2364
        %vm2394 = vcmp.eq.f32.partialorder %v346, %v2366
        %vm2395 = vcmp.eq.f32.partialorder %v346, %v2368
        %vm2396 = vcmp.eq.f32.partialorder %v346, %v2370
        %vm2397 = vcmp.eq.f32.partialorder %v346, %v2372
        %vm2398 = vcmp.eq.f32.partialorder %v346, %v2374
        %vm2399 = vcmp.eq.f32.partialorder %v346, %v2376
        %vm2400 = vcmp.eq.f32.partialorder %v346, %v2378
        %vm2401 = vcmp.eq.f32.partialorder %v346, %v2380
        %vm2402 = vcmp.eq.f32.partialorder %v346, %v2382
        %vm2403 = vcmp.eq.f32.partialorder %v346, %v2384
        %vm2404 = vcmp.eq.f32.partialorder %v346, %v2386
        %vm2405 = vcmp.eq.f32.partialorder %v346, %v2388
        %vm2406 = vcmp.eq.f32.partialorder %v346, %v2390
        %v2407 = vsel %vm2391, 1, 0
        %v2408 = vsel %vm2392, 1, 0
        %v2409 = vsel %vm2393, 1, 0
        %v2410 = vsel %vm2394, 1, 0
        %v2411 = vsel %vm2395, 1, 0
        %v2412 = vsel %vm2396, 1, 0
        %v2413 = vsel %vm2397, 1, 0
        %v2414 = vsel %vm2398, 1, 0
        %v2415 = vsel %vm2399, 1, 0
        %v2416 = vsel %vm2400, 1, 0
        %v2417 = vsel %vm2401, 1, 0
        %v2418 = vsel %vm2402, 1, 0
        %v2419 = vsel %vm2403, 1, 0
        %v2420 = vsel %vm2404, 1, 0
        %v2421 = vsel %vm2405, 1, 0
        %v2422 = vsel %vm2406, 1, 0
        %v2423 = vcvt.s32.f32 %v2407
        %v2424 = vcvt.s32.f32 %v2408
        %v2425 = vcvt.s32.f32 %v2409
        %v2426 = vcvt.s32.f32 %v2410
        %v2427 = vcvt.s32.f32 %v2411
        %v2428 = vcvt.s32.f32 %v2412
        %v2429 = vcvt.s32.f32 %v2413
        %v2430 = vcvt.s32.f32 %v2414
        %v2431 = vcvt.s32.f32 %v2415
        %v2432 = vcvt.s32.f32 %v2416
        %v2433 = vcvt.s32.f32 %v2417
        %v2434 = vcvt.s32.f32 %v2418
        %v2435 = vcvt.s32.f32 %v2419
        %v2436 = vcvt.s32.f32 %v2420
        %v2437 = vcvt.s32.f32 %v2421
        %v2438 = vcvt.s32.f32 %v2422
        %v2439 = vadd.f32 %v2423, 0.0
        %v2440 = vadd.f32 %v2424, 0.0
        %v2441 = vadd.f32 %v2425, 0.0
        %v2442 = vadd.f32 %v2426, 0.0
        %v2443 = vadd.f32 %v2427, 0.0
        %v2444 = vadd.f32 %v2428, 0.0
        %v2445 = vadd.f32 %v2429, 0.0
        %v2446 = vadd.f32 %v2430, 0.0
        %v2447 = vadd.f32 %v2431, 0.0
        %v2448 = vadd.f32 %v2432, 0.0
        %v2449 = vadd.f32 %v2433, 0.0
        %v2450 = vadd.f32 %v2434, 0.0
        %v2451 = vadd.f32 %v2435, 0.0
        %v2452 = vadd.f32 %v2436, 0.0
        %v2453 = vadd.f32 %v2437, 0.0
        %v2454 = vadd.f32 %v2438, 0.0
        %v2455 = vsel %vm2391, -3.4028235e+38, %v2279
        %v2456 = vsel %vm2392, -3.4028235e+38, %v2280
        %v2457 = vsel %vm2393, -3.4028235e+38, %v2281
        %v2458 = vsel %vm2394, -3.4028235e+38, %v2282
        %v2459 = vsel %vm2395, -3.4028235e+38, %v2283
        %v2460 = vsel %vm2396, -3.4028235e+38, %v2284
        %v2461 = vsel %vm2397, -3.4028235e+38, %v2285
        %v2462 = vsel %vm2398, -3.4028235e+38, %v2286
        %v2463 = vsel %vm2399, -3.4028235e+38, %v2287
        %v2464 = vsel %vm2400, -3.4028235e+38, %v2288
        %v2465 = vsel %vm2401, -3.4028235e+38, %v2289
        %v2466 = vsel %vm2402, -3.4028235e+38, %v2290
        %v2467 = vsel %vm2403, -3.4028235e+38, %v2291
        %v2468 = vsel %vm2404, -3.4028235e+38, %v2292
        %v2469 = vsel %vm2405, -3.4028235e+38, %v2293
        %v2470 = vsel %vm2406, -3.4028235e+38, %v2294
        %2471 = vmax.xlane.f32.xlu0 %v2455
        %v2472 = vpop.xlane.xlu0 %2471
        %2473 = vmax.xlane.f32.xlu0 %v2456
        %v2474 = vpop.xlane.xlu0 %2473
        %2475 = vmax.xlane.f32.xlu0 %v2457
        %v2476 = vpop.xlane.xlu0 %2475
        %2477 = vmax.xlane.f32.xlu0 %v2458
        %v2478 = vpop.xlane.xlu0 %2477
        %2479 = vmax.xlane.f32.xlu0 %v2459
        %v2480 = vpop.xlane.xlu0 %2479
        %2481 = vmax.xlane.f32.xlu0 %v2460
        %v2482 = vpop.xlane.xlu0 %2481
        %2483 = vmax.xlane.f32.xlu0 %v2461
        %v2484 = vpop.xlane.xlu0 %2483
        %2485 = vmax.xlane.f32.xlu0 %v2462
        %v2486 = vpop.xlane.xlu0 %2485
        %2487 = vmax.xlane.f32.xlu0 %v2463
        %v2488 = vpop.xlane.xlu0 %2487
        %2489 = vmax.xlane.f32.xlu0 %v2464
        %v2490 = vpop.xlane.xlu0 %2489
        %2491 = vmax.xlane.f32.xlu0 %v2465
        %v2492 = vpop.xlane.xlu0 %2491
        %2493 = vmax.xlane.f32.xlu0 %v2466
        %v2494 = vpop.xlane.xlu0 %2493
        %2495 = vmax.xlane.f32.xlu0 %v2467
        %v2496 = vpop.xlane.xlu0 %2495
        %2497 = vmax.xlane.f32.xlu0 %v2468
        %v2498 = vpop.xlane.xlu0 %2497
        %2499 = vmax.xlane.f32.xlu0 %v2469
        %v2500 = vpop.xlane.xlu0 %2499
        %2501 = vmax.xlane.f32.xlu0 %v2470
        %v2502 = vpop.xlane.xlu0 %2501
        %vm2503 = vcmp.ge.f32.partialorder %v2455, %v2472
        %vm2504 = vcmp.ge.f32.partialorder %v2456, %v2474
        %vm2505 = vcmp.ge.f32.partialorder %v2457, %v2476
        %vm2506 = vcmp.ge.f32.partialorder %v2458, %v2478
        %vm2507 = vcmp.ge.f32.partialorder %v2459, %v2480
        %vm2508 = vcmp.ge.f32.partialorder %v2460, %v2482
        %vm2509 = vcmp.ge.f32.partialorder %v2461, %v2484
        %vm2510 = vcmp.ge.f32.partialorder %v2462, %v2486
        %vm2511 = vcmp.ge.f32.partialorder %v2463, %v2488
        %vm2512 = vcmp.ge.f32.partialorder %v2464, %v2490
        %vm2513 = vcmp.ge.f32.partialorder %v2465, %v2492
        %vm2514 = vcmp.ge.f32.partialorder %v2466, %v2494
        %vm2515 = vcmp.ge.f32.partialorder %v2467, %v2496
        %vm2516 = vcmp.ge.f32.partialorder %v2468, %v2498
        %vm2517 = vcmp.ge.f32.partialorder %v2469, %v2500
        %vm2518 = vcmp.ge.f32.partialorder %v2470, %v2502
        %v2519 = vsel %vm2503, %v346, 128.0
        %v2520 = vsel %vm2504, %v346, 128.0
        %v2521 = vsel %vm2505, %v346, 128.0
        %v2522 = vsel %vm2506, %v346, 128.0
        %v2523 = vsel %vm2507, %v346, 128.0
        %v2524 = vsel %vm2508, %v346, 128.0
        %v2525 = vsel %vm2509, %v346, 128.0
        %v2526 = vsel %vm2510, %v346, 128.0
        %v2527 = vsel %vm2511, %v346, 128.0
        %v2528 = vsel %vm2512, %v346, 128.0
        %v2529 = vsel %vm2513, %v346, 128.0
        %v2530 = vsel %vm2514, %v346, 128.0
        %v2531 = vsel %vm2515, %v346, 128.0
        %v2532 = vsel %vm2516, %v346, 128.0
        %v2533 = vsel %vm2517, %v346, 128.0
        %v2534 = vsel %vm2518, %v346, 128.0
        %2535 = vmin.xlane.f32.xlu0 %v2519
        %v2536 = vpop.xlane.xlu0 %2535
        %2537 = vmin.xlane.f32.xlu0 %v2520
        %v2538 = vpop.xlane.xlu0 %2537
        %2539 = vmin.xlane.f32.xlu0 %v2521
        %v2540 = vpop.xlane.xlu0 %2539
        %2541 = vmin.xlane.f32.xlu0 %v2522
        %v2542 = vpop.xlane.xlu0 %2541
        %2543 = vmin.xlane.f32.xlu0 %v2523
        %v2544 = vpop.xlane.xlu0 %2543
        %2545 = vmin.xlane.f32.xlu0 %v2524
        %v2546 = vpop.xlane.xlu0 %2545
        %2547 = vmin.xlane.f32.xlu0 %v2525
        %v2548 = vpop.xlane.xlu0 %2547
        %2549 = vmin.xlane.f32.xlu0 %v2526
        %v2550 = vpop.xlane.xlu0 %2549
        %2551 = vmin.xlane.f32.xlu0 %v2527
        %v2552 = vpop.xlane.xlu0 %2551
        %2553 = vmin.xlane.f32.xlu0 %v2528
        %v2554 = vpop.xlane.xlu0 %2553
        %2555 = vmin.xlane.f32.xlu0 %v2529
        %v2556 = vpop.xlane.xlu0 %2555
        %2557 = vmin.xlane.f32.xlu0 %v2530
        %v2558 = vpop.xlane.xlu0 %2557
        %2559 = vmin.xlane.f32.xlu0 %v2531
        %v2560 = vpop.xlane.xlu0 %2559
        %2561 = vmin.xlane.f32.xlu0 %v2532
        %v2562 = vpop.xlane.xlu0 %2561
        %2563 = vmin.xlane.f32.xlu0 %v2533
        %v2564 = vpop.xlane.xlu0 %2563
        %2565 = vmin.xlane.f32.xlu0 %v2534
        %v2566 = vpop.xlane.xlu0 %2565
        %vm2567 = vcmp.eq.f32.partialorder %v346, %v2536
        %vm2568 = vcmp.eq.f32.partialorder %v346, %v2538
        %vm2569 = vcmp.eq.f32.partialorder %v346, %v2540
        %vm2570 = vcmp.eq.f32.partialorder %v346, %v2542
        %vm2571 = vcmp.eq.f32.partialorder %v346, %v2544
        %vm2572 = vcmp.eq.f32.partialorder %v346, %v2546
        %vm2573 = vcmp.eq.f32.partialorder %v346, %v2548
        %vm2574 = vcmp.eq.f32.partialorder %v346, %v2550
        %vm2575 = vcmp.eq.f32.partialorder %v346, %v2552
        %vm2576 = vcmp.eq.f32.partialorder %v346, %v2554
        %vm2577 = vcmp.eq.f32.partialorder %v346, %v2556
        %vm2578 = vcmp.eq.f32.partialorder %v346, %v2558
        %vm2579 = vcmp.eq.f32.partialorder %v346, %v2560
        %vm2580 = vcmp.eq.f32.partialorder %v346, %v2562
        %vm2581 = vcmp.eq.f32.partialorder %v346, %v2564
        %vm2582 = vcmp.eq.f32.partialorder %v346, %v2566
        %v2583 = vsel %vm2567, 1, 0
        %v2584 = vsel %vm2568, 1, 0
        %v2585 = vsel %vm2569, 1, 0
        %v2586 = vsel %vm2570, 1, 0
        %v2587 = vsel %vm2571, 1, 0
        %v2588 = vsel %vm2572, 1, 0
        %v2589 = vsel %vm2573, 1, 0
        %v2590 = vsel %vm2574, 1, 0
        %v2591 = vsel %vm2575, 1, 0
        %v2592 = vsel %vm2576, 1, 0
        %v2593 = vsel %vm2577, 1, 0
        %v2594 = vsel %vm2578, 1, 0
        %v2595 = vsel %vm2579, 1, 0
        %v2596 = vsel %vm2580, 1, 0
        %v2597 = vsel %vm2581, 1, 0
        %v2598 = vsel %vm2582, 1, 0
        %v2599 = vcvt.s32.f32 %v2583
        %v2600 = vcvt.s32.f32 %v2584
        %v2601 = vcvt.s32.f32 %v2585
        %v2602 = vcvt.s32.f32 %v2586
        %v2603 = vcvt.s32.f32 %v2587
        %v2604 = vcvt.s32.f32 %v2588
        %v2605 = vcvt.s32.f32 %v2589
        %v2606 = vcvt.s32.f32 %v2590
        %v2607 = vcvt.s32.f32 %v2591
        %v2608 = vcvt.s32.f32 %v2592
        %v2609 = vcvt.s32.f32 %v2593
        %v2610 = vcvt.s32.f32 %v2594
        %v2611 = vcvt.s32.f32 %v2595
        %v2612 = vcvt.s32.f32 %v2596
        %v2613 = vcvt.s32.f32 %v2597
        %v2614 = vcvt.s32.f32 %v2598
        %v2615 = vadd.f32 %v2439, %v2599
        %v2616 = vadd.f32 %v2440, %v2600
        %v2617 = vadd.f32 %v2441, %v2601
        %v2618 = vadd.f32 %v2442, %v2602
        %v2619 = vadd.f32 %v2443, %v2603
        %v2620 = vadd.f32 %v2444, %v2604
        %v2621 = vadd.f32 %v2445, %v2605
        %v2622 = vadd.f32 %v2446, %v2606
        %v2623 = vadd.f32 %v2447, %v2607
        %v2624 = vadd.f32 %v2448, %v2608
        %v2625 = vadd.f32 %v2449, %v2609
        %v2626 = vadd.f32 %v2450, %v2610
        %v2627 = vadd.f32 %v2451, %v2611
        %v2628 = vadd.f32 %v2452, %v2612
        %v2629 = vadd.f32 %v2453, %v2613
        %v2630 = vadd.f32 %v2454, %v2614
        %v2631 = vsel %vm2567, -3.4028235e+38, %v2455
        %v2632 = vsel %vm2568, -3.4028235e+38, %v2456
        %v2633 = vsel %vm2569, -3.4028235e+38, %v2457
        %v2634 = vsel %vm2570, -3.4028235e+38, %v2458
        %v2635 = vsel %vm2571, -3.4028235e+38, %v2459
        %v2636 = vsel %vm2572, -3.4028235e+38, %v2460
        %v2637 = vsel %vm2573, -3.4028235e+38, %v2461
        %v2638 = vsel %vm2574, -3.4028235e+38, %v2462
        %v2639 = vsel %vm2575, -3.4028235e+38, %v2463
        %v2640 = vsel %vm2576, -3.4028235e+38, %v2464
        %v2641 = vsel %vm2577, -3.4028235e+38, %v2465
        %v2642 = vsel %vm2578, -3.4028235e+38, %v2466
        %v2643 = vsel %vm2579, -3.4028235e+38, %v2467
        %v2644 = vsel %vm2580, -3.4028235e+38, %v2468
        %v2645 = vsel %vm2581, -3.4028235e+38, %v2469
        %v2646 = vsel %vm2582, -3.4028235e+38, %v2470
        %2647 = vmax.xlane.f32.xlu0 %v2631
        %v2648 = vpop.xlane.xlu0 %2647
        %2649 = vmax.xlane.f32.xlu0 %v2632
        %v2650 = vpop.xlane.xlu0 %2649
        %2651 = vmax.xlane.f32.xlu0 %v2633
        %v2652 = vpop.xlane.xlu0 %2651
        %2653 = vmax.xlane.f32.xlu0 %v2634
        %v2654 = vpop.xlane.xlu0 %2653
        %2655 = vmax.xlane.f32.xlu0 %v2635
        %v2656 = vpop.xlane.xlu0 %2655
        %2657 = vmax.xlane.f32.xlu0 %v2636
        %v2658 = vpop.xlane.xlu0 %2657
        %2659 = vmax.xlane.f32.xlu0 %v2637
        %v2660 = vpop.xlane.xlu0 %2659
        %2661 = vmax.xlane.f32.xlu0 %v2638
        %v2662 = vpop.xlane.xlu0 %2661
        %2663 = vmax.xlane.f32.xlu0 %v2639
        %v2664 = vpop.xlane.xlu0 %2663
        %2665 = vmax.xlane.f32.xlu0 %v2640
        %v2666 = vpop.xlane.xlu0 %2665
        %2667 = vmax.xlane.f32.xlu0 %v2641
        %v2668 = vpop.xlane.xlu0 %2667
        %2669 = vmax.xlane.f32.xlu0 %v2642
        %v2670 = vpop.xlane.xlu0 %2669
        %2671 = vmax.xlane.f32.xlu0 %v2643
        %v2672 = vpop.xlane.xlu0 %2671
        %2673 = vmax.xlane.f32.xlu0 %v2644
        %v2674 = vpop.xlane.xlu0 %2673
        %2675 = vmax.xlane.f32.xlu0 %v2645
        %v2676 = vpop.xlane.xlu0 %2675
        %2677 = vmax.xlane.f32.xlu0 %v2646
        %v2678 = vpop.xlane.xlu0 %2677
        %vm2679 = vcmp.ge.f32.partialorder %v2631, %v2648
        %vm2680 = vcmp.ge.f32.partialorder %v2632, %v2650
        %vm2681 = vcmp.ge.f32.partialorder %v2633, %v2652
        %vm2682 = vcmp.ge.f32.partialorder %v2634, %v2654
        %vm2683 = vcmp.ge.f32.partialorder %v2635, %v2656
        %vm2684 = vcmp.ge.f32.partialorder %v2636, %v2658
        %vm2685 = vcmp.ge.f32.partialorder %v2637, %v2660
        %vm2686 = vcmp.ge.f32.partialorder %v2638, %v2662
        %vm2687 = vcmp.ge.f32.partialorder %v2639, %v2664
        %vm2688 = vcmp.ge.f32.partialorder %v2640, %v2666
        %vm2689 = vcmp.ge.f32.partialorder %v2641, %v2668
        %vm2690 = vcmp.ge.f32.partialorder %v2642, %v2670
        %vm2691 = vcmp.ge.f32.partialorder %v2643, %v2672
        %vm2692 = vcmp.ge.f32.partialorder %v2644, %v2674
        %vm2693 = vcmp.ge.f32.partialorder %v2645, %v2676
        %vm2694 = vcmp.ge.f32.partialorder %v2646, %v2678
        %v2695 = vsel %vm2679, %v346, 128.0
        %v2696 = vsel %vm2680, %v346, 128.0
        %v2697 = vsel %vm2681, %v346, 128.0
        %v2698 = vsel %vm2682, %v346, 128.0
        %v2699 = vsel %vm2683, %v346, 128.0
        %v2700 = vsel %vm2684, %v346, 128.0
        %v2701 = vsel %vm2685, %v346, 128.0
        %v2702 = vsel %vm2686, %v346, 128.0
        %v2703 = vsel %vm2687, %v346, 128.0
        %v2704 = vsel %vm2688, %v346, 128.0
        %v2705 = vsel %vm2689, %v346, 128.0
        %v2706 = vsel %vm2690, %v346, 128.0
        %v2707 = vsel %vm2691, %v346, 128.0
        %v2708 = vsel %vm2692, %v346, 128.0
        %v2709 = vsel %vm2693, %v346, 128.0
        %v2710 = vsel %vm2694, %v346, 128.0
        %2711 = vmin.xlane.f32.xlu0 %v2695
        %v2712 = vpop.xlane.xlu0 %2711
        %2713 = vmin.xlane.f32.xlu0 %v2696
        %v2714 = vpop.xlane.xlu0 %2713
        %2715 = vmin.xlane.f32.xlu0 %v2697
        %v2716 = vpop.xlane.xlu0 %2715
        %2717 = vmin.xlane.f32.xlu0 %v2698
        %v2718 = vpop.xlane.xlu0 %2717
        %2719 = vmin.xlane.f32.xlu0 %v2699
        %v2720 = vpop.xlane.xlu0 %2719
        %2721 = vmin.xlane.f32.xlu0 %v2700
        %v2722 = vpop.xlane.xlu0 %2721
        %2723 = vmin.xlane.f32.xlu0 %v2701
        %v2724 = vpop.xlane.xlu0 %2723
        %2725 = vmin.xlane.f32.xlu0 %v2702
        %v2726 = vpop.xlane.xlu0 %2725
        %2727 = vmin.xlane.f32.xlu0 %v2703
        %v2728 = vpop.xlane.xlu0 %2727
        %2729 = vmin.xlane.f32.xlu0 %v2704
        %v2730 = vpop.xlane.xlu0 %2729
        %2731 = vmin.xlane.f32.xlu0 %v2705
        %v2732 = vpop.xlane.xlu0 %2731
        %2733 = vmin.xlane.f32.xlu0 %v2706
        %v2734 = vpop.xlane.xlu0 %2733
        %2735 = vmin.xlane.f32.xlu0 %v2707
        %v2736 = vpop.xlane.xlu0 %2735
        %2737 = vmin.xlane.f32.xlu0 %v2708
        %v2738 = vpop.xlane.xlu0 %2737
        %2739 = vmin.xlane.f32.xlu0 %v2709
        %v2740 = vpop.xlane.xlu0 %2739
        %2741 = vmin.xlane.f32.xlu0 %v2710
        %v2742 = vpop.xlane.xlu0 %2741
        %vm2743 = vcmp.eq.f32.partialorder %v346, %v2712
        %vm2744 = vcmp.eq.f32.partialorder %v346, %v2714
        %vm2745 = vcmp.eq.f32.partialorder %v346, %v2716
        %vm2746 = vcmp.eq.f32.partialorder %v346, %v2718
        %vm2747 = vcmp.eq.f32.partialorder %v346, %v2720
        %vm2748 = vcmp.eq.f32.partialorder %v346, %v2722
        %vm2749 = vcmp.eq.f32.partialorder %v346, %v2724
        %vm2750 = vcmp.eq.f32.partialorder %v346, %v2726
        %vm2751 = vcmp.eq.f32.partialorder %v346, %v2728
        %vm2752 = vcmp.eq.f32.partialorder %v346, %v2730
        %vm2753 = vcmp.eq.f32.partialorder %v346, %v2732
        %vm2754 = vcmp.eq.f32.partialorder %v346, %v2734
        %vm2755 = vcmp.eq.f32.partialorder %v346, %v2736
        %vm2756 = vcmp.eq.f32.partialorder %v346, %v2738
        %vm2757 = vcmp.eq.f32.partialorder %v346, %v2740
        %vm2758 = vcmp.eq.f32.partialorder %v346, %v2742
        %v2759 = vsel %vm2743, 1, 0
        %v2760 = vsel %vm2744, 1, 0
        %v2761 = vsel %vm2745, 1, 0
        %v2762 = vsel %vm2746, 1, 0
        %v2763 = vsel %vm2747, 1, 0
        %v2764 = vsel %vm2748, 1, 0
        %v2765 = vsel %vm2749, 1, 0
        %v2766 = vsel %vm2750, 1, 0
        %v2767 = vsel %vm2751, 1, 0
        %v2768 = vsel %vm2752, 1, 0
        %v2769 = vsel %vm2753, 1, 0
        %v2770 = vsel %vm2754, 1, 0
        %v2771 = vsel %vm2755, 1, 0
        %v2772 = vsel %vm2756, 1, 0
        %v2773 = vsel %vm2757, 1, 0
        %v2774 = vsel %vm2758, 1, 0
        %v2775 = vcvt.s32.f32 %v2759
        %v2776 = vcvt.s32.f32 %v2760
        %v2777 = vcvt.s32.f32 %v2761
        %v2778 = vcvt.s32.f32 %v2762
        %v2779 = vcvt.s32.f32 %v2763
        %v2780 = vcvt.s32.f32 %v2764
        %v2781 = vcvt.s32.f32 %v2765
        %v2782 = vcvt.s32.f32 %v2766
        %v2783 = vcvt.s32.f32 %v2767
        %v2784 = vcvt.s32.f32 %v2768
        %v2785 = vcvt.s32.f32 %v2769
        %v2786 = vcvt.s32.f32 %v2770
        %v2787 = vcvt.s32.f32 %v2771
        %v2788 = vcvt.s32.f32 %v2772
        %v2789 = vcvt.s32.f32 %v2773
        %v2790 = vcvt.s32.f32 %v2774
        %v2791 = vadd.f32 %v2615, %v2775
        %v2792 = vadd.f32 %v2616, %v2776
        %v2793 = vadd.f32 %v2617, %v2777
        %v2794 = vadd.f32 %v2618, %v2778
        %v2795 = vadd.f32 %v2619, %v2779
        %v2796 = vadd.f32 %v2620, %v2780
        %v2797 = vadd.f32 %v2621, %v2781
        %v2798 = vadd.f32 %v2622, %v2782
        %v2799 = vadd.f32 %v2623, %v2783
        %v2800 = vadd.f32 %v2624, %v2784
        %v2801 = vadd.f32 %v2625, %v2785
        %v2802 = vadd.f32 %v2626, %v2786
        %v2803 = vadd.f32 %v2627, %v2787
        %v2804 = vadd.f32 %v2628, %v2788
        %v2805 = vadd.f32 %v2629, %v2789
        %v2806 = vadd.f32 %v2630, %v2790
        %v2807 = vsel %vm2743, -3.4028235e+38, %v2631
        %v2808 = vsel %vm2744, -3.4028235e+38, %v2632
        %v2809 = vsel %vm2745, -3.4028235e+38, %v2633
        %v2810 = vsel %vm2746, -3.4028235e+38, %v2634
        %v2811 = vsel %vm2747, -3.4028235e+38, %v2635
        %v2812 = vsel %vm2748, -3.4028235e+38, %v2636
        %v2813 = vsel %vm2749, -3.4028235e+38, %v2637
        %v2814 = vsel %vm2750, -3.4028235e+38, %v2638
        %v2815 = vsel %vm2751, -3.4028235e+38, %v2639
        %v2816 = vsel %vm2752, -3.4028235e+38, %v2640
        %v2817 = vsel %vm2753, -3.4028235e+38, %v2641
        %v2818 = vsel %vm2754, -3.4028235e+38, %v2642
        %v2819 = vsel %vm2755, -3.4028235e+38, %v2643
        %v2820 = vsel %vm2756, -3.4028235e+38, %v2644
        %v2821 = vsel %vm2757, -3.4028235e+38, %v2645
        %v2822 = vsel %vm2758, -3.4028235e+38, %v2646
        %2823 = vmax.xlane.f32.xlu0 %v2807
        %v2824 = vpop.xlane.xlu0 %2823
        %2825 = vmax.xlane.f32.xlu0 %v2808
        %v2826 = vpop.xlane.xlu0 %2825
        %2827 = vmax.xlane.f32.xlu0 %v2809
        %v2828 = vpop.xlane.xlu0 %2827
        %2829 = vmax.xlane.f32.xlu0 %v2810
        %v2830 = vpop.xlane.xlu0 %2829
        %2831 = vmax.xlane.f32.xlu0 %v2811
        %v2832 = vpop.xlane.xlu0 %2831
        %2833 = vmax.xlane.f32.xlu0 %v2812
        %v2834 = vpop.xlane.xlu0 %2833
        %2835 = vmax.xlane.f32.xlu0 %v2813
        %v2836 = vpop.xlane.xlu0 %2835
        %2837 = vmax.xlane.f32.xlu0 %v2814
        %v2838 = vpop.xlane.xlu0 %2837
        %2839 = vmax.xlane.f32.xlu0 %v2815
        %v2840 = vpop.xlane.xlu0 %2839
        %2841 = vmax.xlane.f32.xlu0 %v2816
        %v2842 = vpop.xlane.xlu0 %2841
        %2843 = vmax.xlane.f32.xlu0 %v2817
        %v2844 = vpop.xlane.xlu0 %2843
        %2845 = vmax.xlane.f32.xlu0 %v2818
        %v2846 = vpop.xlane.xlu0 %2845
        %2847 = vmax.xlane.f32.xlu0 %v2819
        %v2848 = vpop.xlane.xlu0 %2847
        %2849 = vmax.xlane.f32.xlu0 %v2820
        %v2850 = vpop.xlane.xlu0 %2849
        %2851 = vmax.xlane.f32.xlu0 %v2821
        %v2852 = vpop.xlane.xlu0 %2851
        %2853 = vmax.xlane.f32.xlu0 %v2822
        %v2854 = vpop.xlane.xlu0 %2853
        %vm2855 = vcmp.ge.f32.partialorder %v2807, %v2824
        %vm2856 = vcmp.ge.f32.partialorder %v2808, %v2826
        %vm2857 = vcmp.ge.f32.partialorder %v2809, %v2828
        %vm2858 = vcmp.ge.f32.partialorder %v2810, %v2830
        %vm2859 = vcmp.ge.f32.partialorder %v2811, %v2832
        %vm2860 = vcmp.ge.f32.partialorder %v2812, %v2834
        %vm2861 = vcmp.ge.f32.partialorder %v2813, %v2836
        %vm2862 = vcmp.ge.f32.partialorder %v2814, %v2838
        %vm2863 = vcmp.ge.f32.partialorder %v2815, %v2840
        %vm2864 = vcmp.ge.f32.partialorder %v2816, %v2842
        %vm2865 = vcmp.ge.f32.partialorder %v2817, %v2844
        %vm2866 = vcmp.ge.f32.partialorder %v2818, %v2846
        %vm2867 = vcmp.ge.f32.partialorder %v2819, %v2848
        %vm2868 = vcmp.ge.f32.partialorder %v2820, %v2850
        %vm2869 = vcmp.ge.f32.partialorder %v2821, %v2852
        %vm2870 = vcmp.ge.f32.partialorder %v2822, %v2854
        %v2871 = vsel %vm2855, %v346, 128.0
        %v2872 = vsel %vm2856, %v346, 128.0
        %v2873 = vsel %vm2857, %v346, 128.0
        %v2874 = vsel %vm2858, %v346, 128.0
        %v2875 = vsel %vm2859, %v346, 128.0
        %v2876 = vsel %vm2860, %v346, 128.0
        %v2877 = vsel %vm2861, %v346, 128.0
        %v2878 = vsel %vm2862, %v346, 128.0
        %v2879 = vsel %vm2863, %v346, 128.0
        %v2880 = vsel %vm2864, %v346, 128.0
        %v2881 = vsel %vm2865, %v346, 128.0
        %v2882 = vsel %vm2866, %v346, 128.0
        %v2883 = vsel %vm2867, %v346, 128.0
        %v2884 = vsel %vm2868, %v346, 128.0
        %v2885 = vsel %vm2869, %v346, 128.0
        %v2886 = vsel %vm2870, %v346, 128.0
        %2887 = vmin.xlane.f32.xlu0 %v2871
        %v2888 = vpop.xlane.xlu0 %2887
        %2889 = vmin.xlane.f32.xlu0 %v2872
        %v2890 = vpop.xlane.xlu0 %2889
        %2891 = vmin.xlane.f32.xlu0 %v2873
        %v2892 = vpop.xlane.xlu0 %2891
        %2893 = vmin.xlane.f32.xlu0 %v2874
        %v2894 = vpop.xlane.xlu0 %2893
        %2895 = vmin.xlane.f32.xlu0 %v2875
        %v2896 = vpop.xlane.xlu0 %2895
        %2897 = vmin.xlane.f32.xlu0 %v2876
        %v2898 = vpop.xlane.xlu0 %2897
        %2899 = vmin.xlane.f32.xlu0 %v2877
        %v2900 = vpop.xlane.xlu0 %2899
        %2901 = vmin.xlane.f32.xlu0 %v2878
        %v2902 = vpop.xlane.xlu0 %2901
        %2903 = vmin.xlane.f32.xlu0 %v2879
        %v2904 = vpop.xlane.xlu0 %2903
        %2905 = vmin.xlane.f32.xlu0 %v2880
        %v2906 = vpop.xlane.xlu0 %2905
        %2907 = vmin.xlane.f32.xlu0 %v2881
        %v2908 = vpop.xlane.xlu0 %2907
        %2909 = vmin.xlane.f32.xlu0 %v2882
        %v2910 = vpop.xlane.xlu0 %2909
        %2911 = vmin.xlane.f32.xlu0 %v2883
        %v2912 = vpop.xlane.xlu0 %2911
        %2913 = vmin.xlane.f32.xlu0 %v2884
        %v2914 = vpop.xlane.xlu0 %2913
        %2915 = vmin.xlane.f32.xlu0 %v2885
        %v2916 = vpop.xlane.xlu0 %2915
        %2917 = vmin.xlane.f32.xlu0 %v2886
        %v2918 = vpop.xlane.xlu0 %2917
        %vm2919 = vcmp.eq.f32.partialorder %v346, %v2888
        %vm2920 = vcmp.eq.f32.partialorder %v346, %v2890
        %vm2921 = vcmp.eq.f32.partialorder %v346, %v2892
        %vm2922 = vcmp.eq.f32.partialorder %v346, %v2894
        %vm2923 = vcmp.eq.f32.partialorder %v346, %v2896
        %vm2924 = vcmp.eq.f32.partialorder %v346, %v2898
        %vm2925 = vcmp.eq.f32.partialorder %v346, %v2900
        %vm2926 = vcmp.eq.f32.partialorder %v346, %v2902
        %vm2927 = vcmp.eq.f32.partialorder %v346, %v2904
        %vm2928 = vcmp.eq.f32.partialorder %v346, %v2906
        %vm2929 = vcmp.eq.f32.partialorder %v346, %v2908
        %vm2930 = vcmp.eq.f32.partialorder %v346, %v2910
        %vm2931 = vcmp.eq.f32.partialorder %v346, %v2912
        %vm2932 = vcmp.eq.f32.partialorder %v346, %v2914
        %vm2933 = vcmp.eq.f32.partialorder %v346, %v2916
        %vm2934 = vcmp.eq.f32.partialorder %v346, %v2918
        %v2935 = vsel %vm2919, 1, 0
        %v2936 = vsel %vm2920, 1, 0
        %v2937 = vsel %vm2921, 1, 0
        %v2938 = vsel %vm2922, 1, 0
        %v2939 = vsel %vm2923, 1, 0
        %v2940 = vsel %vm2924, 1, 0
        %v2941 = vsel %vm2925, 1, 0
        %v2942 = vsel %vm2926, 1, 0
        %v2943 = vsel %vm2927, 1, 0
        %v2944 = vsel %vm2928, 1, 0
        %v2945 = vsel %vm2929, 1, 0
        %v2946 = vsel %vm2930, 1, 0
        %v2947 = vsel %vm2931, 1, 0
        %v2948 = vsel %vm2932, 1, 0
        %v2949 = vsel %vm2933, 1, 0
        %v2950 = vsel %vm2934, 1, 0
        %v2951 = vcvt.s32.f32 %v2935
        %v2952 = vcvt.s32.f32 %v2936
        %v2953 = vcvt.s32.f32 %v2937
        %v2954 = vcvt.s32.f32 %v2938
        %v2955 = vcvt.s32.f32 %v2939
        %v2956 = vcvt.s32.f32 %v2940
        %v2957 = vcvt.s32.f32 %v2941
        %v2958 = vcvt.s32.f32 %v2942
        %v2959 = vcvt.s32.f32 %v2943
        %v2960 = vcvt.s32.f32 %v2944
        %v2961 = vcvt.s32.f32 %v2945
        %v2962 = vcvt.s32.f32 %v2946
        %v2963 = vcvt.s32.f32 %v2947
        %v2964 = vcvt.s32.f32 %v2948
        %v2965 = vcvt.s32.f32 %v2949
        %v2966 = vcvt.s32.f32 %v2950
        %v2967 = vadd.f32 %v2791, %v2951
        %v2968 = vadd.f32 %v2792, %v2952
        %v2969 = vadd.f32 %v2793, %v2953
        %v2970 = vadd.f32 %v2794, %v2954
        %v2971 = vadd.f32 %v2795, %v2955
        %v2972 = vadd.f32 %v2796, %v2956
        %v2973 = vadd.f32 %v2797, %v2957
        %v2974 = vadd.f32 %v2798, %v2958
        %v2975 = vadd.f32 %v2799, %v2959
        %v2976 = vadd.f32 %v2800, %v2960
        %v2977 = vadd.f32 %v2801, %v2961
        %v2978 = vadd.f32 %v2802, %v2962
        %v2979 = vadd.f32 %v2803, %v2963
        %v2980 = vadd.f32 %v2804, %v2964
        %v2981 = vadd.f32 %v2805, %v2965
        %v2982 = vadd.f32 %v2806, %v2966
        %v2983 = vsel %vm2919, -3.4028235e+38, %v2807
        %v2984 = vsel %vm2920, -3.4028235e+38, %v2808
        %v2985 = vsel %vm2921, -3.4028235e+38, %v2809
        %v2986 = vsel %vm2922, -3.4028235e+38, %v2810
        %v2987 = vsel %vm2923, -3.4028235e+38, %v2811
        %v2988 = vsel %vm2924, -3.4028235e+38, %v2812
        %v2989 = vsel %vm2925, -3.4028235e+38, %v2813
        %v2990 = vsel %vm2926, -3.4028235e+38, %v2814
        %v2991 = vsel %vm2927, -3.4028235e+38, %v2815
        %v2992 = vsel %vm2928, -3.4028235e+38, %v2816
        %v2993 = vsel %vm2929, -3.4028235e+38, %v2817
        %v2994 = vsel %vm2930, -3.4028235e+38, %v2818
        %v2995 = vsel %vm2931, -3.4028235e+38, %v2819
        %v2996 = vsel %vm2932, -3.4028235e+38, %v2820
        %v2997 = vsel %vm2933, -3.4028235e+38, %v2821
        %v2998 = vsel %vm2934, -3.4028235e+38, %v2822
        %2999 = vmax.xlane.f32.xlu0 %v2983
        %v3000 = vpop.xlane.xlu0 %2999
        %3001 = vmax.xlane.f32.xlu0 %v2984
        %v3002 = vpop.xlane.xlu0 %3001
        %3003 = vmax.xlane.f32.xlu0 %v2985
        %v3004 = vpop.xlane.xlu0 %3003
        %3005 = vmax.xlane.f32.xlu0 %v2986
        %v3006 = vpop.xlane.xlu0 %3005
        %3007 = vmax.xlane.f32.xlu0 %v2987
        %v3008 = vpop.xlane.xlu0 %3007
        %3009 = vmax.xlane.f32.xlu0 %v2988
        %v3010 = vpop.xlane.xlu0 %3009
        %3011 = vmax.xlane.f32.xlu0 %v2989
        %v3012 = vpop.xlane.xlu0 %3011
        %3013 = vmax.xlane.f32.xlu0 %v2990
        %v3014 = vpop.xlane.xlu0 %3013
        %3015 = vmax.xlane.f32.xlu0 %v2991
        %v3016 = vpop.xlane.xlu0 %3015
        %3017 = vmax.xlane.f32.xlu0 %v2992
        %v3018 = vpop.xlane.xlu0 %3017
        %3019 = vmax.xlane.f32.xlu0 %v2993
        %v3020 = vpop.xlane.xlu0 %3019
        %3021 = vmax.xlane.f32.xlu0 %v2994
        %v3022 = vpop.xlane.xlu0 %3021
        %3023 = vmax.xlane.f32.xlu0 %v2995
        %v3024 = vpop.xlane.xlu0 %3023
        %3025 = vmax.xlane.f32.xlu0 %v2996
        %v3026 = vpop.xlane.xlu0 %3025
        %3027 = vmax.xlane.f32.xlu0 %v2997
        %v3028 = vpop.xlane.xlu0 %3027
        %3029 = vmax.xlane.f32.xlu0 %v2998
        %v3030 = vpop.xlane.xlu0 %3029
        %vm3031 = vcmp.ge.f32.partialorder %v2983, %v3000
        %vm3032 = vcmp.ge.f32.partialorder %v2984, %v3002
        %vm3033 = vcmp.ge.f32.partialorder %v2985, %v3004
        %vm3034 = vcmp.ge.f32.partialorder %v2986, %v3006
        %vm3035 = vcmp.ge.f32.partialorder %v2987, %v3008
        %vm3036 = vcmp.ge.f32.partialorder %v2988, %v3010
        %vm3037 = vcmp.ge.f32.partialorder %v2989, %v3012
        %vm3038 = vcmp.ge.f32.partialorder %v2990, %v3014
        %vm3039 = vcmp.ge.f32.partialorder %v2991, %v3016
        %vm3040 = vcmp.ge.f32.partialorder %v2992, %v3018
        %vm3041 = vcmp.ge.f32.partialorder %v2993, %v3020
        %vm3042 = vcmp.ge.f32.partialorder %v2994, %v3022
        %vm3043 = vcmp.ge.f32.partialorder %v2995, %v3024
        %vm3044 = vcmp.ge.f32.partialorder %v2996, %v3026
        %vm3045 = vcmp.ge.f32.partialorder %v2997, %v3028
        %vm3046 = vcmp.ge.f32.partialorder %v2998, %v3030
        %v3047 = vsel %vm3031, %v346, 128.0
        %v3048 = vsel %vm3032, %v346, 128.0
        %v3049 = vsel %vm3033, %v346, 128.0
        %v3050 = vsel %vm3034, %v346, 128.0
        %v3051 = vsel %vm3035, %v346, 128.0
        %v3052 = vsel %vm3036, %v346, 128.0
        %v3053 = vsel %vm3037, %v346, 128.0
        %v3054 = vsel %vm3038, %v346, 128.0
        %v3055 = vsel %vm3039, %v346, 128.0
        %v3056 = vsel %vm3040, %v346, 128.0
        %v3057 = vsel %vm3041, %v346, 128.0
        %v3058 = vsel %vm3042, %v346, 128.0
        %v3059 = vsel %vm3043, %v346, 128.0
        %v3060 = vsel %vm3044, %v346, 128.0
        %v3061 = vsel %vm3045, %v346, 128.0
        %v3062 = vsel %vm3046, %v346, 128.0
        %3063 = vmin.xlane.f32.xlu0 %v3047
        %v3064 = vpop.xlane.xlu0 %3063
        %3065 = vmin.xlane.f32.xlu0 %v3048
        %v3066 = vpop.xlane.xlu0 %3065
        %3067 = vmin.xlane.f32.xlu0 %v3049
        %v3068 = vpop.xlane.xlu0 %3067
        %3069 = vmin.xlane.f32.xlu0 %v3050
        %v3070 = vpop.xlane.xlu0 %3069
        %3071 = vmin.xlane.f32.xlu0 %v3051
        %v3072 = vpop.xlane.xlu0 %3071
        %3073 = vmin.xlane.f32.xlu0 %v3052
        %v3074 = vpop.xlane.xlu0 %3073
        %3075 = vmin.xlane.f32.xlu0 %v3053
        %v3076 = vpop.xlane.xlu0 %3075
        %3077 = vmin.xlane.f32.xlu0 %v3054
        %v3078 = vpop.xlane.xlu0 %3077
        %3079 = vmin.xlane.f32.xlu0 %v3055
        %v3080 = vpop.xlane.xlu0 %3079
        %3081 = vmin.xlane.f32.xlu0 %v3056
        %v3082 = vpop.xlane.xlu0 %3081
        %3083 = vmin.xlane.f32.xlu0 %v3057
        %v3084 = vpop.xlane.xlu0 %3083
        %3085 = vmin.xlane.f32.xlu0 %v3058
        %v3086 = vpop.xlane.xlu0 %3085
        %3087 = vmin.xlane.f32.xlu0 %v3059
        %v3088 = vpop.xlane.xlu0 %3087
        %3089 = vmin.xlane.f32.xlu0 %v3060
        %v3090 = vpop.xlane.xlu0 %3089
        %3091 = vmin.xlane.f32.xlu0 %v3061
        %v3092 = vpop.xlane.xlu0 %3091
        %3093 = vmin.xlane.f32.xlu0 %v3062
        %v3094 = vpop.xlane.xlu0 %3093
        %vm3095 = vcmp.eq.f32.partialorder %v346, %v3064
        %vm3096 = vcmp.eq.f32.partialorder %v346, %v3066
        %vm3097 = vcmp.eq.f32.partialorder %v346, %v3068
        %vm3098 = vcmp.eq.f32.partialorder %v346, %v3070
        %vm3099 = vcmp.eq.f32.partialorder %v346, %v3072
        %vm3100 = vcmp.eq.f32.partialorder %v346, %v3074
        %vm3101 = vcmp.eq.f32.partialorder %v346, %v3076
        %vm3102 = vcmp.eq.f32.partialorder %v346, %v3078
        %vm3103 = vcmp.eq.f32.partialorder %v346, %v3080
        %vm3104 = vcmp.eq.f32.partialorder %v346, %v3082
        %vm3105 = vcmp.eq.f32.partialorder %v346, %v3084
        %vm3106 = vcmp.eq.f32.partialorder %v346, %v3086
        %vm3107 = vcmp.eq.f32.partialorder %v346, %v3088
        %vm3108 = vcmp.eq.f32.partialorder %v346, %v3090
        %vm3109 = vcmp.eq.f32.partialorder %v346, %v3092
        %vm3110 = vcmp.eq.f32.partialorder %v346, %v3094
        %v3111 = vsel %vm3095, 1, 0
        %v3112 = vsel %vm3096, 1, 0
        %v3113 = vsel %vm3097, 1, 0
        %v3114 = vsel %vm3098, 1, 0
        %v3115 = vsel %vm3099, 1, 0
        %v3116 = vsel %vm3100, 1, 0
        %v3117 = vsel %vm3101, 1, 0
        %v3118 = vsel %vm3102, 1, 0
        %v3119 = vsel %vm3103, 1, 0
        %v3120 = vsel %vm3104, 1, 0
        %v3121 = vsel %vm3105, 1, 0
        %v3122 = vsel %vm3106, 1, 0
        %v3123 = vsel %vm3107, 1, 0
        %v3124 = vsel %vm3108, 1, 0
        %v3125 = vsel %vm3109, 1, 0
        %v3126 = vsel %vm3110, 1, 0
        %v3127 = vcvt.s32.f32 %v3111
        %v3128 = vcvt.s32.f32 %v3112
        %v3129 = vcvt.s32.f32 %v3113
        %v3130 = vcvt.s32.f32 %v3114
        %v3131 = vcvt.s32.f32 %v3115
        %v3132 = vcvt.s32.f32 %v3116
        %v3133 = vcvt.s32.f32 %v3117
        %v3134 = vcvt.s32.f32 %v3118
        %v3135 = vcvt.s32.f32 %v3119
        %v3136 = vcvt.s32.f32 %v3120
        %v3137 = vcvt.s32.f32 %v3121
        %v3138 = vcvt.s32.f32 %v3122
        %v3139 = vcvt.s32.f32 %v3123
        %v3140 = vcvt.s32.f32 %v3124
        %v3141 = vcvt.s32.f32 %v3125
        %v3142 = vcvt.s32.f32 %v3126
        %v3143 = vadd.f32 %v2967, %v3127
        %v3144 = vadd.f32 %v2968, %v3128
        %v3145 = vadd.f32 %v2969, %v3129
        %v3146 = vadd.f32 %v2970, %v3130
        %v3147 = vadd.f32 %v2971, %v3131
        %v3148 = vadd.f32 %v2972, %v3132
        %v3149 = vadd.f32 %v2973, %v3133
        %v3150 = vadd.f32 %v2974, %v3134
        %v3151 = vadd.f32 %v2975, %v3135
        %v3152 = vadd.f32 %v2976, %v3136
        %v3153 = vadd.f32 %v2977, %v3137
        %v3154 = vadd.f32 %v2978, %v3138
        %v3155 = vadd.f32 %v2979, %v3139
        %v3156 = vadd.f32 %v2980, %v3140
        %v3157 = vadd.f32 %v2981, %v3141
        %v3158 = vadd.f32 %v2982, %v3142
        %v3159 = vsel %vm3095, -3.4028235e+38, %v2983
        %v3160 = vsel %vm3096, -3.4028235e+38, %v2984
        %v3161 = vsel %vm3097, -3.4028235e+38, %v2985
        %v3162 = vsel %vm3098, -3.4028235e+38, %v2986
        %v3163 = vsel %vm3099, -3.4028235e+38, %v2987
        %v3164 = vsel %vm3100, -3.4028235e+38, %v2988
        %v3165 = vsel %vm3101, -3.4028235e+38, %v2989
        %v3166 = vsel %vm3102, -3.4028235e+38, %v2990
        %v3167 = vsel %vm3103, -3.4028235e+38, %v2991
        %v3168 = vsel %vm3104, -3.4028235e+38, %v2992
        %v3169 = vsel %vm3105, -3.4028235e+38, %v2993
        %v3170 = vsel %vm3106, -3.4028235e+38, %v2994
        %v3171 = vsel %vm3107, -3.4028235e+38, %v2995
        %v3172 = vsel %vm3108, -3.4028235e+38, %v2996
        %v3173 = vsel %vm3109, -3.4028235e+38, %v2997
        %v3174 = vsel %vm3110, -3.4028235e+38, %v2998
        %3175 = vmax.xlane.f32.xlu0 %v3159
        %v3176 = vpop.xlane.xlu0 %3175
        %3177 = vmax.xlane.f32.xlu0 %v3160
        %v3178 = vpop.xlane.xlu0 %3177
        %3179 = vmax.xlane.f32.xlu0 %v3161
        %v3180 = vpop.xlane.xlu0 %3179
        %3181 = vmax.xlane.f32.xlu0 %v3162
        %v3182 = vpop.xlane.xlu0 %3181
        %3183 = vmax.xlane.f32.xlu0 %v3163
        %v3184 = vpop.xlane.xlu0 %3183
        %3185 = vmax.xlane.f32.xlu0 %v3164
        %v3186 = vpop.xlane.xlu0 %3185
        %3187 = vmax.xlane.f32.xlu0 %v3165
        %v3188 = vpop.xlane.xlu0 %3187
        %3189 = vmax.xlane.f32.xlu0 %v3166
        %v3190 = vpop.xlane.xlu0 %3189
        %3191 = vmax.xlane.f32.xlu0 %v3167
        %v3192 = vpop.xlane.xlu0 %3191
        %3193 = vmax.xlane.f32.xlu0 %v3168
        %v3194 = vpop.xlane.xlu0 %3193
        %3195 = vmax.xlane.f32.xlu0 %v3169
        %v3196 = vpop.xlane.xlu0 %3195
        %3197 = vmax.xlane.f32.xlu0 %v3170
        %v3198 = vpop.xlane.xlu0 %3197
        %3199 = vmax.xlane.f32.xlu0 %v3171
        %v3200 = vpop.xlane.xlu0 %3199
        %3201 = vmax.xlane.f32.xlu0 %v3172
        %v3202 = vpop.xlane.xlu0 %3201
        %3203 = vmax.xlane.f32.xlu0 %v3173
        %v3204 = vpop.xlane.xlu0 %3203
        %3205 = vmax.xlane.f32.xlu0 %v3174
        %v3206 = vpop.xlane.xlu0 %3205
        %vm3207 = vcmp.ge.f32.partialorder %v3159, %v3176
        %vm3208 = vcmp.ge.f32.partialorder %v3160, %v3178
        %vm3209 = vcmp.ge.f32.partialorder %v3161, %v3180
        %vm3210 = vcmp.ge.f32.partialorder %v3162, %v3182
        %vm3211 = vcmp.ge.f32.partialorder %v3163, %v3184
        %vm3212 = vcmp.ge.f32.partialorder %v3164, %v3186
        %vm3213 = vcmp.ge.f32.partialorder %v3165, %v3188
        %vm3214 = vcmp.ge.f32.partialorder %v3166, %v3190
        %vm3215 = vcmp.ge.f32.partialorder %v3167, %v3192
        %vm3216 = vcmp.ge.f32.partialorder %v3168, %v3194
        %vm3217 = vcmp.ge.f32.partialorder %v3169, %v3196
        %vm3218 = vcmp.ge.f32.partialorder %v3170, %v3198
        %vm3219 = vcmp.ge.f32.partialorder %v3171, %v3200
        %vm3220 = vcmp.ge.f32.partialorder %v3172, %v3202
        %vm3221 = vcmp.ge.f32.partialorder %v3173, %v3204
        %vm3222 = vcmp.ge.f32.partialorder %v3174, %v3206
        %v3223 = vsel %vm3207, %v346, 128.0
        %v3224 = vsel %vm3208, %v346, 128.0
        %v3225 = vsel %vm3209, %v346, 128.0
        %v3226 = vsel %vm3210, %v346, 128.0
        %v3227 = vsel %vm3211, %v346, 128.0
        %v3228 = vsel %vm3212, %v346, 128.0
        %v3229 = vsel %vm3213, %v346, 128.0
        %v3230 = vsel %vm3214, %v346, 128.0
        %v3231 = vsel %vm3215, %v346, 128.0
        %v3232 = vsel %vm3216, %v346, 128.0
        %v3233 = vsel %vm3217, %v346, 128.0
        %v3234 = vsel %vm3218, %v346, 128.0
        %v3235 = vsel %vm3219, %v346, 128.0
        %v3236 = vsel %vm3220, %v346, 128.0
        %v3237 = vsel %vm3221, %v346, 128.0
        %v3238 = vsel %vm3222, %v346, 128.0
        %3239 = vmin.xlane.f32.xlu0 %v3223
        %v3240 = vpop.xlane.xlu0 %3239
        %3241 = vmin.xlane.f32.xlu0 %v3224
        %v3242 = vpop.xlane.xlu0 %3241
        %3243 = vmin.xlane.f32.xlu0 %v3225
        %v3244 = vpop.xlane.xlu0 %3243
        %3245 = vmin.xlane.f32.xlu0 %v3226
        %v3246 = vpop.xlane.xlu0 %3245
        %3247 = vmin.xlane.f32.xlu0 %v3227
        %v3248 = vpop.xlane.xlu0 %3247
        %3249 = vmin.xlane.f32.xlu0 %v3228
        %v3250 = vpop.xlane.xlu0 %3249
        %3251 = vmin.xlane.f32.xlu0 %v3229
        %v3252 = vpop.xlane.xlu0 %3251
        %3253 = vmin.xlane.f32.xlu0 %v3230
        %v3254 = vpop.xlane.xlu0 %3253
        %3255 = vmin.xlane.f32.xlu0 %v3231
        %v3256 = vpop.xlane.xlu0 %3255
        %3257 = vmin.xlane.f32.xlu0 %v3232
        %v3258 = vpop.xlane.xlu0 %3257
        %3259 = vmin.xlane.f32.xlu0 %v3233
        %v3260 = vpop.xlane.xlu0 %3259
        %3261 = vmin.xlane.f32.xlu0 %v3234
        %v3262 = vpop.xlane.xlu0 %3261
        %3263 = vmin.xlane.f32.xlu0 %v3235
        %v3264 = vpop.xlane.xlu0 %3263
        %3265 = vmin.xlane.f32.xlu0 %v3236
        %v3266 = vpop.xlane.xlu0 %3265
        %3267 = vmin.xlane.f32.xlu0 %v3237
        %v3268 = vpop.xlane.xlu0 %3267
        %3269 = vmin.xlane.f32.xlu0 %v3238
        %v3270 = vpop.xlane.xlu0 %3269
        %vm3271 = vcmp.eq.f32.partialorder %v346, %v3240
        %vm3272 = vcmp.eq.f32.partialorder %v346, %v3242
        %vm3273 = vcmp.eq.f32.partialorder %v346, %v3244
        %vm3274 = vcmp.eq.f32.partialorder %v346, %v3246
        %vm3275 = vcmp.eq.f32.partialorder %v346, %v3248
        %vm3276 = vcmp.eq.f32.partialorder %v346, %v3250
        %vm3277 = vcmp.eq.f32.partialorder %v346, %v3252
        %vm3278 = vcmp.eq.f32.partialorder %v346, %v3254
        %vm3279 = vcmp.eq.f32.partialorder %v346, %v3256
        %vm3280 = vcmp.eq.f32.partialorder %v346, %v3258
        %vm3281 = vcmp.eq.f32.partialorder %v346, %v3260
        %vm3282 = vcmp.eq.f32.partialorder %v346, %v3262
        %vm3283 = vcmp.eq.f32.partialorder %v346, %v3264
        %vm3284 = vcmp.eq.f32.partialorder %v346, %v3266
        %vm3285 = vcmp.eq.f32.partialorder %v346, %v3268
        %vm3286 = vcmp.eq.f32.partialorder %v346, %v3270
        %v3287 = vsel %vm3271, 1, 0
        %v3288 = vsel %vm3272, 1, 0
        %v3289 = vsel %vm3273, 1, 0
        %v3290 = vsel %vm3274, 1, 0
        %v3291 = vsel %vm3275, 1, 0
        %v3292 = vsel %vm3276, 1, 0
        %v3293 = vsel %vm3277, 1, 0
        %v3294 = vsel %vm3278, 1, 0
        %v3295 = vsel %vm3279, 1, 0
        %v3296 = vsel %vm3280, 1, 0
        %v3297 = vsel %vm3281, 1, 0
        %v3298 = vsel %vm3282, 1, 0
        %v3299 = vsel %vm3283, 1, 0
        %v3300 = vsel %vm3284, 1, 0
        %v3301 = vsel %vm3285, 1, 0
        %v3302 = vsel %vm3286, 1, 0
        %v3303 = vcvt.s32.f32 %v3287
        %v3304 = vcvt.s32.f32 %v3288
        %v3305 = vcvt.s32.f32 %v3289
        %v3306 = vcvt.s32.f32 %v3290
        %v3307 = vcvt.s32.f32 %v3291
        %v3308 = vcvt.s32.f32 %v3292
        %v3309 = vcvt.s32.f32 %v3293
        %v3310 = vcvt.s32.f32 %v3294
        %v3311 = vcvt.s32.f32 %v3295
        %v3312 = vcvt.s32.f32 %v3296
        %v3313 = vcvt.s32.f32 %v3297
        %v3314 = vcvt.s32.f32 %v3298
        %v3315 = vcvt.s32.f32 %v3299
        %v3316 = vcvt.s32.f32 %v3300
        %v3317 = vcvt.s32.f32 %v3301
        %v3318 = vcvt.s32.f32 %v3302
        %v3319 = vadd.f32 %v3143, %v3303
        %v3320 = vadd.f32 %v3144, %v3304
        %v3321 = vadd.f32 %v3145, %v3305
        %v3322 = vadd.f32 %v3146, %v3306
        %v3323 = vadd.f32 %v3147, %v3307
        %v3324 = vadd.f32 %v3148, %v3308
        %v3325 = vadd.f32 %v3149, %v3309
        %v3326 = vadd.f32 %v3150, %v3310
        %v3327 = vadd.f32 %v3151, %v3311
        %v3328 = vadd.f32 %v3152, %v3312
        %v3329 = vadd.f32 %v3153, %v3313
        %v3330 = vadd.f32 %v3154, %v3314
        %v3331 = vadd.f32 %v3155, %v3315
        %v3332 = vadd.f32 %v3156, %v3316
        %v3333 = vadd.f32 %v3157, %v3317
        %v3334 = vadd.f32 %v3158, %v3318
        %v3335 = vsel %vm3271, -3.4028235e+38, %v3159
        %v3336 = vsel %vm3272, -3.4028235e+38, %v3160
        %v3337 = vsel %vm3273, -3.4028235e+38, %v3161
        %v3338 = vsel %vm3274, -3.4028235e+38, %v3162
        %v3339 = vsel %vm3275, -3.4028235e+38, %v3163
        %v3340 = vsel %vm3276, -3.4028235e+38, %v3164
        %v3341 = vsel %vm3277, -3.4028235e+38, %v3165
        %v3342 = vsel %vm3278, -3.4028235e+38, %v3166
        %v3343 = vsel %vm3279, -3.4028235e+38, %v3167
        %v3344 = vsel %vm3280, -3.4028235e+38, %v3168
        %v3345 = vsel %vm3281, -3.4028235e+38, %v3169
        %v3346 = vsel %vm3282, -3.4028235e+38, %v3170
        %v3347 = vsel %vm3283, -3.4028235e+38, %v3171
        %v3348 = vsel %vm3284, -3.4028235e+38, %v3172
        %v3349 = vsel %vm3285, -3.4028235e+38, %v3173
        %v3350 = vsel %vm3286, -3.4028235e+38, %v3174
        %3351 = vmax.xlane.f32.xlu0 %v3335
        %v3352 = vpop.xlane.xlu0 %3351
        %3353 = vmax.xlane.f32.xlu0 %v3336
        %v3354 = vpop.xlane.xlu0 %3353
        %3355 = vmax.xlane.f32.xlu0 %v3337
        %v3356 = vpop.xlane.xlu0 %3355
        %3357 = vmax.xlane.f32.xlu0 %v3338
        %v3358 = vpop.xlane.xlu0 %3357
        %3359 = vmax.xlane.f32.xlu0 %v3339
        %v3360 = vpop.xlane.xlu0 %3359
        %3361 = vmax.xlane.f32.xlu0 %v3340
        %v3362 = vpop.xlane.xlu0 %3361
        %3363 = vmax.xlane.f32.xlu0 %v3341
        %v3364 = vpop.xlane.xlu0 %3363
        %3365 = vmax.xlane.f32.xlu0 %v3342
        %v3366 = vpop.xlane.xlu0 %3365
        %3367 = vmax.xlane.f32.xlu0 %v3343
        %v3368 = vpop.xlane.xlu0 %3367
        %3369 = vmax.xlane.f32.xlu0 %v3344
        %v3370 = vpop.xlane.xlu0 %3369
        %3371 = vmax.xlane.f32.xlu0 %v3345
        %v3372 = vpop.xlane.xlu0 %3371
        %3373 = vmax.xlane.f32.xlu0 %v3346
        %v3374 = vpop.xlane.xlu0 %3373
        %3375 = vmax.xlane.f32.xlu0 %v3347
        %v3376 = vpop.xlane.xlu0 %3375
        %3377 = vmax.xlane.f32.xlu0 %v3348
        %v3378 = vpop.xlane.xlu0 %3377
        %3379 = vmax.xlane.f32.xlu0 %v3349
        %v3380 = vpop.xlane.xlu0 %3379
        %3381 = vmax.xlane.f32.xlu0 %v3350
        %v3382 = vpop.xlane.xlu0 %3381
        %vm3383 = vcmp.ge.f32.partialorder %v3335, %v3352
        %vm3384 = vcmp.ge.f32.partialorder %v3336, %v3354
        %vm3385 = vcmp.ge.f32.partialorder %v3337, %v3356
        %vm3386 = vcmp.ge.f32.partialorder %v3338, %v3358
        %vm3387 = vcmp.ge.f32.partialorder %v3339, %v3360
        %vm3388 = vcmp.ge.f32.partialorder %v3340, %v3362
        %vm3389 = vcmp.ge.f32.partialorder %v3341, %v3364
        %vm3390 = vcmp.ge.f32.partialorder %v3342, %v3366
        %vm3391 = vcmp.ge.f32.partialorder %v3343, %v3368
        %vm3392 = vcmp.ge.f32.partialorder %v3344, %v3370
        %vm3393 = vcmp.ge.f32.partialorder %v3345, %v3372
        %vm3394 = vcmp.ge.f32.partialorder %v3346, %v3374
        %vm3395 = vcmp.ge.f32.partialorder %v3347, %v3376
        %vm3396 = vcmp.ge.f32.partialorder %v3348, %v3378
        %vm3397 = vcmp.ge.f32.partialorder %v3349, %v3380
        %vm3398 = vcmp.ge.f32.partialorder %v3350, %v3382
        %v3399 = vsel %vm3383, %v346, 128.0
        %v3400 = vsel %vm3384, %v346, 128.0
        %v3401 = vsel %vm3385, %v346, 128.0
        %v3402 = vsel %vm3386, %v346, 128.0
        %v3403 = vsel %vm3387, %v346, 128.0
        %v3404 = vsel %vm3388, %v346, 128.0
        %v3405 = vsel %vm3389, %v346, 128.0
        %v3406 = vsel %vm3390, %v346, 128.0
        %v3407 = vsel %vm3391, %v346, 128.0
        %v3408 = vsel %vm3392, %v346, 128.0
        %v3409 = vsel %vm3393, %v346, 128.0
        %v3410 = vsel %vm3394, %v346, 128.0
        %v3411 = vsel %vm3395, %v346, 128.0
        %v3412 = vsel %vm3396, %v346, 128.0
        %v3413 = vsel %vm3397, %v346, 128.0
        %v3414 = vsel %vm3398, %v346, 128.0
        %3415 = vmin.xlane.f32.xlu0 %v3399
        %v3416 = vpop.xlane.xlu0 %3415
        %3417 = vmin.xlane.f32.xlu0 %v3400
        %v3418 = vpop.xlane.xlu0 %3417
        %3419 = vmin.xlane.f32.xlu0 %v3401
        %v3420 = vpop.xlane.xlu0 %3419
        %3421 = vmin.xlane.f32.xlu0 %v3402
        %v3422 = vpop.xlane.xlu0 %3421
        %3423 = vmin.xlane.f32.xlu0 %v3403
        %v3424 = vpop.xlane.xlu0 %3423
        %3425 = vmin.xlane.f32.xlu0 %v3404
        %v3426 = vpop.xlane.xlu0 %3425
        %3427 = vmin.xlane.f32.xlu0 %v3405
        %v3428 = vpop.xlane.xlu0 %3427
        %3429 = vmin.xlane.f32.xlu0 %v3406
        %v3430 = vpop.xlane.xlu0 %3429
        %3431 = vmin.xlane.f32.xlu0 %v3407
        %v3432 = vpop.xlane.xlu0 %3431
        %3433 = vmin.xlane.f32.xlu0 %v3408
        %v3434 = vpop.xlane.xlu0 %3433
        %3435 = vmin.xlane.f32.xlu0 %v3409
        %v3436 = vpop.xlane.xlu0 %3435
        %3437 = vmin.xlane.f32.xlu0 %v3410
        %v3438 = vpop.xlane.xlu0 %3437
        %3439 = vmin.xlane.f32.xlu0 %v3411
        %v3440 = vpop.xlane.xlu0 %3439
        %3441 = vmin.xlane.f32.xlu0 %v3412
        %v3442 = vpop.xlane.xlu0 %3441
        %3443 = vmin.xlane.f32.xlu0 %v3413
        %v3444 = vpop.xlane.xlu0 %3443
        %3445 = vmin.xlane.f32.xlu0 %v3414
        %v3446 = vpop.xlane.xlu0 %3445
        %vm3447 = vcmp.eq.f32.partialorder %v346, %v3416
        %vm3448 = vcmp.eq.f32.partialorder %v346, %v3418
        %vm3449 = vcmp.eq.f32.partialorder %v346, %v3420
        %vm3450 = vcmp.eq.f32.partialorder %v346, %v3422
        %vm3451 = vcmp.eq.f32.partialorder %v346, %v3424
        %vm3452 = vcmp.eq.f32.partialorder %v346, %v3426
        %vm3453 = vcmp.eq.f32.partialorder %v346, %v3428
        %vm3454 = vcmp.eq.f32.partialorder %v346, %v3430
        %vm3455 = vcmp.eq.f32.partialorder %v346, %v3432
        %vm3456 = vcmp.eq.f32.partialorder %v346, %v3434
        %vm3457 = vcmp.eq.f32.partialorder %v346, %v3436
        %vm3458 = vcmp.eq.f32.partialorder %v346, %v3438
        %vm3459 = vcmp.eq.f32.partialorder %v346, %v3440
        %vm3460 = vcmp.eq.f32.partialorder %v346, %v3442
        %vm3461 = vcmp.eq.f32.partialorder %v346, %v3444
        %vm3462 = vcmp.eq.f32.partialorder %v346, %v3446
        %v3463 = vsel %vm3447, 1, 0
        %v3464 = vsel %vm3448, 1, 0
        %v3465 = vsel %vm3449, 1, 0
        %v3466 = vsel %vm3450, 1, 0
        %v3467 = vsel %vm3451, 1, 0
        %v3468 = vsel %vm3452, 1, 0
        %v3469 = vsel %vm3453, 1, 0
        %v3470 = vsel %vm3454, 1, 0
        %v3471 = vsel %vm3455, 1, 0
        %v3472 = vsel %vm3456, 1, 0
        %v3473 = vsel %vm3457, 1, 0
        %v3474 = vsel %vm3458, 1, 0
        %v3475 = vsel %vm3459, 1, 0
        %v3476 = vsel %vm3460, 1, 0
        %v3477 = vsel %vm3461, 1, 0
        %v3478 = vsel %vm3462, 1, 0
        %v3479 = vcvt.s32.f32 %v3463
        %v3480 = vcvt.s32.f32 %v3464
        %v3481 = vcvt.s32.f32 %v3465
        %v3482 = vcvt.s32.f32 %v3466
        %v3483 = vcvt.s32.f32 %v3467
        %v3484 = vcvt.s32.f32 %v3468
        %v3485 = vcvt.s32.f32 %v3469
        %v3486 = vcvt.s32.f32 %v3470
        %v3487 = vcvt.s32.f32 %v3471
        %v3488 = vcvt.s32.f32 %v3472
        %v3489 = vcvt.s32.f32 %v3473
        %v3490 = vcvt.s32.f32 %v3474
        %v3491 = vcvt.s32.f32 %v3475
        %v3492 = vcvt.s32.f32 %v3476
        %v3493 = vcvt.s32.f32 %v3477
        %v3494 = vcvt.s32.f32 %v3478
        %v3495 = vadd.f32 %v3319, %v3479
        %v3496 = vadd.f32 %v3320, %v3480
        %v3497 = vadd.f32 %v3321, %v3481
        %v3498 = vadd.f32 %v3322, %v3482
        %v3499 = vadd.f32 %v3323, %v3483
        %v3500 = vadd.f32 %v3324, %v3484
        %v3501 = vadd.f32 %v3325, %v3485
        %v3502 = vadd.f32 %v3326, %v3486
        %v3503 = vadd.f32 %v3327, %v3487
        %v3504 = vadd.f32 %v3328, %v3488
        %v3505 = vadd.f32 %v3329, %v3489
        %v3506 = vadd.f32 %v3330, %v3490
        %v3507 = vadd.f32 %v3331, %v3491
        %v3508 = vadd.f32 %v3332, %v3492
        %v3509 = vadd.f32 %v3333, %v3493
        %v3510 = vadd.f32 %v3334, %v3494
        %v3511 = vsel %vm3447, -3.4028235e+38, %v3335
        %v3512 = vsel %vm3448, -3.4028235e+38, %v3336
        %v3513 = vsel %vm3449, -3.4028235e+38, %v3337
        %v3514 = vsel %vm3450, -3.4028235e+38, %v3338
        %v3515 = vsel %vm3451, -3.4028235e+38, %v3339
        %v3516 = vsel %vm3452, -3.4028235e+38, %v3340
        %v3517 = vsel %vm3453, -3.4028235e+38, %v3341
        %v3518 = vsel %vm3454, -3.4028235e+38, %v3342
        %v3519 = vsel %vm3455, -3.4028235e+38, %v3343
        %v3520 = vsel %vm3456, -3.4028235e+38, %v3344
        %v3521 = vsel %vm3457, -3.4028235e+38, %v3345
        %v3522 = vsel %vm3458, -3.4028235e+38, %v3346
        %v3523 = vsel %vm3459, -3.4028235e+38, %v3347
        %v3524 = vsel %vm3460, -3.4028235e+38, %v3348
        %v3525 = vsel %vm3461, -3.4028235e+38, %v3349
        %v3526 = vsel %vm3462, -3.4028235e+38, %v3350
        %3527 = vmax.xlane.f32.xlu0 %v3511
        %v3528 = vpop.xlane.xlu0 %3527
        %3529 = vmax.xlane.f32.xlu0 %v3512
        %v3530 = vpop.xlane.xlu0 %3529
        %3531 = vmax.xlane.f32.xlu0 %v3513
        %v3532 = vpop.xlane.xlu0 %3531
        %3533 = vmax.xlane.f32.xlu0 %v3514
        %v3534 = vpop.xlane.xlu0 %3533
        %3535 = vmax.xlane.f32.xlu0 %v3515
        %v3536 = vpop.xlane.xlu0 %3535
        %3537 = vmax.xlane.f32.xlu0 %v3516
        %v3538 = vpop.xlane.xlu0 %3537
        %3539 = vmax.xlane.f32.xlu0 %v3517
        %v3540 = vpop.xlane.xlu0 %3539
        %3541 = vmax.xlane.f32.xlu0 %v3518
        %v3542 = vpop.xlane.xlu0 %3541
        %3543 = vmax.xlane.f32.xlu0 %v3519
        %v3544 = vpop.xlane.xlu0 %3543
        %3545 = vmax.xlane.f32.xlu0 %v3520
        %v3546 = vpop.xlane.xlu0 %3545
        %3547 = vmax.xlane.f32.xlu0 %v3521
        %v3548 = vpop.xlane.xlu0 %3547
        %3549 = vmax.xlane.f32.xlu0 %v3522
        %v3550 = vpop.xlane.xlu0 %3549
        %3551 = vmax.xlane.f32.xlu0 %v3523
        %v3552 = vpop.xlane.xlu0 %3551
        %3553 = vmax.xlane.f32.xlu0 %v3524
        %v3554 = vpop.xlane.xlu0 %3553
        %3555 = vmax.xlane.f32.xlu0 %v3525
        %v3556 = vpop.xlane.xlu0 %3555
        %3557 = vmax.xlane.f32.xlu0 %v3526
        %v3558 = vpop.xlane.xlu0 %3557
        %vm3559 = vcmp.ge.f32.partialorder %v3511, %v3528
        %vm3560 = vcmp.ge.f32.partialorder %v3512, %v3530
        %vm3561 = vcmp.ge.f32.partialorder %v3513, %v3532
        %vm3562 = vcmp.ge.f32.partialorder %v3514, %v3534
        %vm3563 = vcmp.ge.f32.partialorder %v3515, %v3536
        %vm3564 = vcmp.ge.f32.partialorder %v3516, %v3538
        %vm3565 = vcmp.ge.f32.partialorder %v3517, %v3540
        %vm3566 = vcmp.ge.f32.partialorder %v3518, %v3542
        %vm3567 = vcmp.ge.f32.partialorder %v3519, %v3544
        %vm3568 = vcmp.ge.f32.partialorder %v3520, %v3546
        %vm3569 = vcmp.ge.f32.partialorder %v3521, %v3548
        %vm3570 = vcmp.ge.f32.partialorder %v3522, %v3550
        %vm3571 = vcmp.ge.f32.partialorder %v3523, %v3552
        %vm3572 = vcmp.ge.f32.partialorder %v3524, %v3554
        %vm3573 = vcmp.ge.f32.partialorder %v3525, %v3556
        %vm3574 = vcmp.ge.f32.partialorder %v3526, %v3558
        %v3575 = vsel %vm3559, %v346, 128.0
        %v3576 = vsel %vm3560, %v346, 128.0
        %v3577 = vsel %vm3561, %v346, 128.0
        %v3578 = vsel %vm3562, %v346, 128.0
        %v3579 = vsel %vm3563, %v346, 128.0
        %v3580 = vsel %vm3564, %v346, 128.0
        %v3581 = vsel %vm3565, %v346, 128.0
        %v3582 = vsel %vm3566, %v346, 128.0
        %v3583 = vsel %vm3567, %v346, 128.0
        %v3584 = vsel %vm3568, %v346, 128.0
        %v3585 = vsel %vm3569, %v346, 128.0
        %v3586 = vsel %vm3570, %v346, 128.0
        %v3587 = vsel %vm3571, %v346, 128.0
        %v3588 = vsel %vm3572, %v346, 128.0
        %v3589 = vsel %vm3573, %v346, 128.0
        %v3590 = vsel %vm3574, %v346, 128.0
        %3591 = vmin.xlane.f32.xlu0 %v3575
        %v3592 = vpop.xlane.xlu0 %3591
        %3593 = vmin.xlane.f32.xlu0 %v3576
        %v3594 = vpop.xlane.xlu0 %3593
        %3595 = vmin.xlane.f32.xlu0 %v3577
        %v3596 = vpop.xlane.xlu0 %3595
        %3597 = vmin.xlane.f32.xlu0 %v3578
        %v3598 = vpop.xlane.xlu0 %3597
        %3599 = vmin.xlane.f32.xlu0 %v3579
        %v3600 = vpop.xlane.xlu0 %3599
        %3601 = vmin.xlane.f32.xlu0 %v3580
        %v3602 = vpop.xlane.xlu0 %3601
        %3603 = vmin.xlane.f32.xlu0 %v3581
        %v3604 = vpop.xlane.xlu0 %3603
        %3605 = vmin.xlane.f32.xlu0 %v3582
        %v3606 = vpop.xlane.xlu0 %3605
        %3607 = vmin.xlane.f32.xlu0 %v3583
        %v3608 = vpop.xlane.xlu0 %3607
        %3609 = vmin.xlane.f32.xlu0 %v3584
        %v3610 = vpop.xlane.xlu0 %3609
        %3611 = vmin.xlane.f32.xlu0 %v3585
        %v3612 = vpop.xlane.xlu0 %3611
        %3613 = vmin.xlane.f32.xlu0 %v3586
        %v3614 = vpop.xlane.xlu0 %3613
        %3615 = vmin.xlane.f32.xlu0 %v3587
        %v3616 = vpop.xlane.xlu0 %3615
        %3617 = vmin.xlane.f32.xlu0 %v3588
        %v3618 = vpop.xlane.xlu0 %3617
        %3619 = vmin.xlane.f32.xlu0 %v3589
        %v3620 = vpop.xlane.xlu0 %3619
        %3621 = vmin.xlane.f32.xlu0 %v3590
        %v3622 = vpop.xlane.xlu0 %3621
        %vm3623 = vcmp.eq.f32.partialorder %v346, %v3592
        %vm3624 = vcmp.eq.f32.partialorder %v346, %v3594
        %vm3625 = vcmp.eq.f32.partialorder %v346, %v3596
        %vm3626 = vcmp.eq.f32.partialorder %v346, %v3598
        %vm3627 = vcmp.eq.f32.partialorder %v346, %v3600
        %vm3628 = vcmp.eq.f32.partialorder %v346, %v3602
        %vm3629 = vcmp.eq.f32.partialorder %v346, %v3604
        %vm3630 = vcmp.eq.f32.partialorder %v346, %v3606
        %vm3631 = vcmp.eq.f32.partialorder %v346, %v3608
        %vm3632 = vcmp.eq.f32.partialorder %v346, %v3610
        %vm3633 = vcmp.eq.f32.partialorder %v346, %v3612
        %vm3634 = vcmp.eq.f32.partialorder %v346, %v3614
        %vm3635 = vcmp.eq.f32.partialorder %v346, %v3616
        %vm3636 = vcmp.eq.f32.partialorder %v346, %v3618
        %vm3637 = vcmp.eq.f32.partialorder %v346, %v3620
        %vm3638 = vcmp.eq.f32.partialorder %v346, %v3622
        %v3639 = vsel %vm3623, 1, 0
        %v3640 = vsel %vm3624, 1, 0
        %v3641 = vsel %vm3625, 1, 0
        %v3642 = vsel %vm3626, 1, 0
        %v3643 = vsel %vm3627, 1, 0
        %v3644 = vsel %vm3628, 1, 0
        %v3645 = vsel %vm3629, 1, 0
        %v3646 = vsel %vm3630, 1, 0
        %v3647 = vsel %vm3631, 1, 0
        %v3648 = vsel %vm3632, 1, 0
        %v3649 = vsel %vm3633, 1, 0
        %v3650 = vsel %vm3634, 1, 0
        %v3651 = vsel %vm3635, 1, 0
        %v3652 = vsel %vm3636, 1, 0
        %v3653 = vsel %vm3637, 1, 0
        %v3654 = vsel %vm3638, 1, 0
        %v3655 = vcvt.s32.f32 %v3639
        %v3656 = vcvt.s32.f32 %v3640
        %v3657 = vcvt.s32.f32 %v3641
        %v3658 = vcvt.s32.f32 %v3642
        %v3659 = vcvt.s32.f32 %v3643
        %v3660 = vcvt.s32.f32 %v3644
        %v3661 = vcvt.s32.f32 %v3645
        %v3662 = vcvt.s32.f32 %v3646
        %v3663 = vcvt.s32.f32 %v3647
        %v3664 = vcvt.s32.f32 %v3648
        %v3665 = vcvt.s32.f32 %v3649
        %v3666 = vcvt.s32.f32 %v3650
        %v3667 = vcvt.s32.f32 %v3651
        %v3668 = vcvt.s32.f32 %v3652
        %v3669 = vcvt.s32.f32 %v3653
        %v3670 = vcvt.s32.f32 %v3654
        %v3671 = vadd.f32 %v3495, %v3655
        %v3672 = vadd.f32 %v3496, %v3656
        %v3673 = vadd.f32 %v3497, %v3657
        %v3674 = vadd.f32 %v3498, %v3658
        %v3675 = vadd.f32 %v3499, %v3659
        %v3676 = vadd.f32 %v3500, %v3660
        %v3677 = vadd.f32 %v3501, %v3661
        %v3678 = vadd.f32 %v3502, %v3662
        %v3679 = vadd.f32 %v3503, %v3663
        %v3680 = vadd.f32 %v3504, %v3664
        %v3681 = vadd.f32 %v3505, %v3665
        %v3682 = vadd.f32 %v3506, %v3666
        %v3683 = vadd.f32 %v3507, %v3667
        %v3684 = vadd.f32 %v3508, %v3668
        %v3685 = vadd.f32 %v3509, %v3669
        %v3686 = vadd.f32 %v3510, %v3670
        %3687 = vmatpush.xpose.msra.mxu0 %v3686
        %3688 = vmatpush.xpose.msra.mxu0 %v3685
        %3689 = vmatpush.xpose.msra.mxu0 %v3684
        %3690 = vmatpush.xpose.msra.mxu0 %v3683
        %3691 = vmatpush.xpose.msra.mxu0 %v3682
        %3692 = vmatpush.xpose.msra.mxu0 %v3681
        %3693 = vmatpush.xpose.msra.mxu0 %v3680
        %3694 = vmatpush.xpose.msra.mxu0 %v3679
        %3695 = vmatpush.xpose.msra.mxu0 %v3678
        %3696 = vmatpush.xpose.msra.mxu0 %v3677
        %3697 = vmatpush.xpose.msra.mxu0 %v3676
        %3698 = vmatpush.xpose.msra.mxu0 %v3675
        %3699 = vmatpush.xpose.msra.mxu0 %v3674
        %3700 = vmatpush.xpose.msra.mxu0 %v3673
        %3701 = vmatpush.xpose.msra.mxu0 %v3672
        %3702 = vmatpush.xpose.msra.mxu0 %v3671
        %3703 = vmatmul.f32.gmra.mxu0 %v2101
        %v3704 = vpop.f32.mrf.mxu0
        %v3705 = vadd.f32 0.0, %v3704
        %3706 = vmatmul.f32.gmra.mxu0 %v2102
        %v3707 = vpop.f32.mrf.mxu0
        %v3708 = vadd.f32 0.0, %v3707
        %3709 = vmatmul.f32.gmra.mxu0 %v2103
        %v3710 = vpop.f32.mrf.mxu0
        %v3711 = vadd.f32 0.0, %v3710
        %3712 = vmatmul.f32.gmra.mxu0 %v2104
        %v3713 = vpop.f32.mrf.mxu0
        %v3714 = vadd.f32 0.0, %v3713
        %3715 = vdwg.mxu0
        %v3716 = vmul.f32 %v3705, 0.125
        %v3717 = vmul.f32 %v3708, 0.125
        %v3718 = vmul.f32 %v3711, 0.125
        %v3719 = vmul.f32 %v3714, 0.125
        %v3720 = vsub.f32 %v3716, %v2101
        %v3721 = vsub.f32 %v3717, %v2102
        %v3722 = vsub.f32 %v3718, %v2103
        %v3723 = vsub.f32 %v3719, %v2104
        %v3725 = vsel %vm407, %v363, 0
        %v3728 = vsel %vm407, %v364, 0
        %v3731 = vsel %vm407, %v365, 0
        %v3734 = vsel %vm407, %v366, 0
        %3736 = vmatpush.msra.mxu0 0.0
        %3737 = vmatpush.msra.mxu0 0.0
        %3738 = vmatpush.msra.mxu0 0.0
        %3739 = vmatpush.msra.mxu0 0.0
        %3740 = vmatpush.msra.mxu0 0.0
        %3741 = vmatpush.msra.mxu0 0.0
        %3742 = vmatpush.msra.mxu0 0.0
        %3743 = vmatpush.msra.mxu0 0.0
        %3744 = vmatpush.msra.mxu0 0.0
        %3745 = vmatpush.msra.mxu0 0.0
        %3746 = vmatpush.msra.mxu0 0.0
        %3747 = vmatpush.msra.mxu0 0.0
        %3748 = vmatpush.msra.mxu0 %v2104
        %3749 = vmatpush.msra.mxu0 %v2103
        %3750 = vmatpush.msra.mxu0 %v2102
        %3751 = vmatpush.msra.mxu0 %v2101
        %3752 = vmatmul.f32.gmra.mxu0 %v3725
        %v3753 = vpop.f32.mrf.mxu0
        %v3754 = vadd.f32 0.0, %v3753
        %3755 = vmatmul.f32.gmra.mxu0 %v3728
        %v3756 = vpop.f32.mrf.mxu0
        %v3757 = vadd.f32 0.0, %v3756
        %3758 = vmatmul.f32.gmra.mxu0 %v3731
        %v3759 = vpop.f32.mrf.mxu0
        %v3760 = vadd.f32 0.0, %v3759
        %3761 = vmatmul.f32.gmra.mxu0 %v3734
        %v3762 = vpop.f32.mrf.mxu0
        %v3763 = vadd.f32 0.0, %v3762
        %3764 = vdwg.mxu0
        %v3766 = vsel %vm407, %v359, 0
        %v3769 = vsel %vm407, %v360, 0
        %v3772 = vsel %vm407, %v361, 0
        %v3775 = vsel %vm407, %v362, 0
        %3777 = vmatpush.msra.mxu0 0.0
        %3778 = vmatpush.msra.mxu0 0.0
        %3779 = vmatpush.msra.mxu0 0.0
        %3780 = vmatpush.msra.mxu0 0.0
        %3781 = vmatpush.msra.mxu0 0.0
        %3782 = vmatpush.msra.mxu0 0.0
        %3783 = vmatpush.msra.mxu0 0.0
        %3784 = vmatpush.msra.mxu0 0.0
        %3785 = vmatpush.msra.mxu0 0.0
        %3786 = vmatpush.msra.mxu0 0.0
        %3787 = vmatpush.msra.mxu0 0.0
        %3788 = vmatpush.msra.mxu0 0.0
        %3789 = vmatpush.msra.mxu0 %v3723
        %3790 = vmatpush.msra.mxu0 %v3722
        %3791 = vmatpush.msra.mxu0 %v3721
        %3792 = vmatpush.msra.mxu0 %v3720
        %3793 = vmatmul.f32.gmra.mxu0 %v3766
        %v3794 = vpop.f32.mrf.mxu0
        %v3795 = vadd.f32 %v3754, %v3794
        %3796 = vmatmul.f32.gmra.mxu0 %v3769
        %v3797 = vpop.f32.mrf.mxu0
        %v3798 = vadd.f32 %v3757, %v3797
        %3799 = vmatmul.f32.gmra.mxu0 %v3772
        %v3800 = vpop.f32.mrf.mxu0
        %v3801 = vadd.f32 %v3760, %v3800
        %3802 = vmatmul.f32.gmra.mxu0 %v3775
        %v3803 = vpop.f32.mrf.mxu0
        %v3804 = vadd.f32 %v3763, %v3803
        %3805 = vdwg.mxu0
        %3807 = vset.pattern.permute.xlu0 0
        %3808 = vperm.xlu0 %3807, %v367
        %v3809 = vpop.permute.xlu0 %3808
        %3812 = vset.pattern.permute.xlu0 0
        %3813 = vperm.xlu0 %3812, %v368
        %v3814 = vpop.permute.xlu0 %3813
        %3817 = vset.pattern.permute.xlu0 0
        %3818 = vperm.xlu0 %3817, %v369
        %v3819 = vpop.permute.xlu0 %3818
        %3822 = vset.pattern.permute.xlu0 0
        %3823 = vperm.xlu0 %3822, %v370
        %v3824 = vpop.permute.xlu0 %3823
        %v3826 = vadd.f32 %v3795, %v3809
        %v3827 = vadd.f32 %v3798, %v3814
        %v3828 = vadd.f32 %v3801, %v3819
        %v3829 = vadd.f32 %v3804, %v3824
        %v3830 = vmax.f32 %v3826, 0.0
        %v3831 = vmax.f32 %v3827, 0.0
        %v3832 = vmax.f32 %v3828, 0.0
        %v3833 = vmax.f32 %v3829, 0.0
        %v3834 = vadd.f32 %v3830, %v371
        %v3835 = vadd.f32 %v3831, %v372
        %v3836 = vadd.f32 %v3832, %v373
        %v3837 = vadd.f32 %v3833, %v374
        %3838 = vst [vmem:[%s338] sm:$0xff] %v3834
        %3839 = vst [vmem:[%s338 + $0x8] sm:$0xff] %v3835
        %3840 = vst [vmem:[%s338 + $0x10] sm:$0xff] %v3836
        %3841 = vst [vmem:[%s338 + $0x18] sm:$0xff] %v3837
        %s3842 = sand.u32 %s184, 1
        %s3843 = scalar_lea.sflag [#allocation4], %s3842
        %s3844 = sand.u32 %s184, 1
        %s3845 = smul.addr %s3844, 32
        %s3846 = scalar_lea.vmem [#allocation10], %s3845
        // Predicated region
        $region65: #{tpu_custom_call.1} parent=47 // pred_check
          %p3847 = pneg %p194
        $region66: #{tpu_custom_call.1} parent=47 // pred_check_branch
          %3849 = sbr.rel (%p3847) target = $region68
        $region67: #{tpu_custom_call.1} parent=47 // pred_region
          %3851 = vsyncadd %s3843, 0
          %s3852 = smul.addr %s24, 4
          %s3853 = smul.addr %s3852, 8
          %s3854 = scalar_lea.hbm %s7, %s3853
          %s3855 = sshll.u32 %s3846, 4
          %s3856 = int_to_ptr.vmem [resolvable:$true] %s3855
          %s3857 = sshll.u32 %s3854, 4
          %s3858 = int_to_ptr.hbm [resolvable:$true] %s3857
          %3863 = dma.vmem_to_hbm [thread:$0]  %s3856, 512, %s3858, %s3843, 128, 128, 8
        $region68: #{tpu_custom_call.1} parent=47 // pred_fallthru
          _
      $region48: #{tpu_custom_call.1} parent=5 // pred_fallthru
        _
      %p3864 = scmp.le.s32.totalorder 2, %s19
      // Predicated region
      $region69: #{tpu_custom_call.1} parent=5 // pred_check
        %p3865 = pneg %p3864
      $region70: #{tpu_custom_call.1} parent=5 // pred_check_branch
        %3867 = sbr.rel (%p3865) target = $region72
      $region71: #{tpu_custom_call.1} parent=5 // pred_region
        %s3868 = ssub.s32 %s19, 2
        // Predicated region
        $region73: #{tpu_custom_call.1} parent=71 // pred_check
          %p3869 = pneg %p200
        $region74: #{tpu_custom_call.1} parent=71 // pred_check_branch
          %3871 = sbr.rel (%p3869) target = $region76
        $region75: #{tpu_custom_call.1} parent=71 // pred_region
          %s3872 = sand.u32 %s185, 1
          %s3873 = scalar_lea.sflag [#allocation4], %s3872
          %s3874 = sand.u32 %s185, 1
          %s3875 = smul.addr %s3874, 32
          %s3876 = scalar_lea.vmem [#allocation10], %s3875
          %3878 = dma.done %s3873, 512
        $region76: #{tpu_custom_call.1} parent=71 // pred_fallthru
          _
      $region72: #{tpu_custom_call.1} parent=5 // pred_fallthru
        _
    $region6: #{tpu_custom_call.1} parent=1 // loop_footer
      %s23 = sadd.s32 1, %s19
    $region7: #{tpu_custom_call.1} parent=1 // loop_footer_branch
      %18 = sbr.rel target = $region3
    $region8: #{tpu_custom_call.1} parent=1 // loop_exit
      _
    %3879 = vsyncpa [#allocation3], 1
    %s3880 = scalar_lea.sflag [#allocation3], 1
    %3881 = vsyncpa %s3880, 1
    %3882 = vsyncpa [#allocation6], 1
    %3883 = vsyncpa [#allocation9], 1
    %3884 = vsyncpa [#allocation4], 1
    %s3885 = scalar_lea.sflag [#allocation4], 1
    %3886 = vsyncpa %s3885, 1

</llo_original>
